<compile_context>
chip_gen: v5e
topology: v5e:2x2
jax: 0.10.0
libtpu: 0.0.40
codegen_flags: <defaults>
</compile_context>

<pallas_src>
import functools

import jax
import jax.numpy as jnp
from jax.experimental import pallas as pl
from jax.experimental.pallas import tpu as pltpu


NUM_LAYERS = 10          # 5 encoder + 5 decoder Linear layers
NO_TANH_LAYERS = (4, 9)  # latent output and final reconstruction have no tanh


def _round_up(n, m):
    return ((n + m - 1) // m) * m


def dae_kernel(x_ref, w_ref, b_ref, out_ref, *, in_features, num_streams):
    """One batch tile through the full encoder+decoder.

    x_ref   : (TB, in_features)  activations tile (true feature width)
    w_ref   : (10, P, P)         all layer weights, resident in VMEM
    b_ref   : (10, 1, P)         all layer biases, resident in VMEM
    out_ref : (TB, P)            reconstruction tile (lane-padded, sliced later)

    The tile is split into `num_streams` independent sub-streams that are
    interleaved per layer so MXU and EUP (tanh) work from different streams
    can overlap instead of serializing on one dependent chain.
    """
    tb = x_ref.shape[0]
    half = tb // num_streams

    # Layer 0: only the first `in_features` weight rows matter (static Ref
    # slice is free); padded output columns get zero weight cols + zero bias.
    w0 = w_ref[0, :in_features, :]
    b0 = b_ref[0]
    streams = []
    for s in range(num_streams):
        xs = x_ref[s * half:(s + 1) * half, :]
        h = jnp.dot(xs, w0, preferred_element_type=jnp.float32) + b0
        streams.append(jnp.tanh(h))  # layer 0 always has tanh

    # Remaining layers: full padded (P, P) weights; padded columns stay zero
    # (zero weight rows/cols, zero bias, tanh(0)=0).
    for i in range(1, NUM_LAYERS):
        w = w_ref[i]          # (P, P)
        b = b_ref[i]          # (1, P)
        new_streams = []
        for s in range(num_streams):
            h = jnp.dot(streams[s], w, preferred_element_type=jnp.float32) + b
            if i not in NO_TANH_LAYERS:
                h = jnp.tanh(h)
            new_streams.append(h)
        streams = new_streams

    for s in range(num_streams):
        out_ref[s * half:(s + 1) * half, :] = streams[s].astype(out_ref.dtype)


def pack_params(params, pad_width):
    """Pack flat [w0, b0, ..., w9, b9] into lane-padded weight/bias slabs."""
    w_stack = jnp.zeros((NUM_LAYERS, pad_width, pad_width), jnp.float32)
    b_stack = jnp.zeros((NUM_LAYERS, 1, pad_width), jnp.float32)
    for i in range(NUM_LAYERS):
        w = params[2 * i]          # (fan_in, fan_out)
        b = params[2 * i + 1]      # (1, fan_out)
        w_stack = w_stack.at[i, : w.shape[0], : w.shape[1]].set(w)
        b_stack = b_stack.at[i, :, : b.shape[1]].set(b)
    return w_stack, b_stack


def _choose_batch_tile(batch, max_tb=512):
    """Batch tile: multiple of 16 (two 8-sublane sub-streams), large enough to
    amortize per-step overhead, small enough that the grid has >= 2 steps
    whenever the batch allows (keeps both v7x TensorCores busy)."""
    if batch <= 16:
        return 16
    tb = _round_up(pl.cdiv(batch, 2), 16)
    return min(max_tb, tb)


def denoising_autoencoder(x, w_stack, b_stack, *, max_block_b=512):
    """x: (B, input_size) f32; w_stack: (10, P, P); b_stack: (10, 1, P)."""
    batch, in_features = x.shape
    pad_width = w_stack.shape[-1]

    tb = _choose_batch_tile(batch, max_block_b)
    batch_p = _round_up(batch, tb)
    num_streams = 2 if (tb % 16 == 0) else 1

    # Only batch padding (rows discarded afterwards); features stay unpadded.
    x_p = x.astype(jnp.float32)
    if batch_p != batch:
        x_p = jnp.pad(x_p, ((0, batch_p - batch), (0, 0)))

    grid = (batch_p // tb,)
    kernel_fn = functools.partial(
        dae_kernel, in_features=in_features, num_streams=num_streams)

    def _make_call(single_buffer_params):
        param_kwargs = {}
        if single_buffer_params:
            # Constant index_map -> slabs resident for the whole grid; no need
            # for the default double-buffer (halves resident-param VMEM).
            param_kwargs["pipeline_mode"] = pl.Buffered(1)
        in_specs = [
            pl.BlockSpec((tb, in_features), lambda i: (i, 0)),
            pl.BlockSpec((NUM_LAYERS, pad_width, pad_width),
                         lambda i: (0, 0, 0), **param_kwargs),
            pl.BlockSpec((NUM_LAYERS, 1, pad_width),
                         lambda i: (0, 0, 0), **param_kwargs),
        ]
        return pl.pallas_call(
            kernel_fn,
            out_shape=jax.ShapeDtypeStruct((batch_p, pad_width), jnp.float32),
            grid=grid,
            in_specs=in_specs,
            out_specs=pl.BlockSpec((tb, pad_width), lambda i: (i, 0)),
            compiler_params=pltpu.CompilerParams(
                dimension_semantics=("parallel",)),
        )

    try:
        out_p = _make_call(True)(x_p, w_stack, b_stack)
    except Exception:
        # Some jax versions reject pipeline_mode on top-level pallas_call
        # BlockSpecs; fall back to default buffering (correctness identical).
        out_p = _make_call(False)(x_p, w_stack, b_stack)

    return out_p[:batch, :in_features]


def init_params(key, input_size, hidden_size, latent_size):
    """Deterministic init; same shapes as the PyTorch module's Linear layers."""
    enc_dims = [input_size, hidden_size, hidden_size, hidden_size, hidden_size,
                latent_size]
    dec_dims = [latent_size, hidden_size, hidden_size, hidden_size, hidden_size,
                input_size]
    dims = list(zip(enc_dims[:-1], enc_dims[1:])) + \
           list(zip(dec_dims[:-1], dec_dims[1:]))
    params = []
    for (fan_in, fan_out) in dims:
        key, kw, kb = jax.random.split(key, 3)
        bound = 1.0 / jnp.sqrt(jnp.float32(fan_in))
        w = jax.random.uniform(kw, (fan_in, fan_out), jnp.float32,
                               minval=-bound, maxval=bound)
        b = jax.random.uniform(kb, (1, fan_out), jnp.float32,
                               minval=-bound, maxval=bound)
        params.extend([w, b])
    return params


def reference_forward(x, params):
    """Plain-JAX reference of the same forward pass (unpadded)."""
    h = x
    for i in range(NUM_LAYERS):
        w, b = params[2 * i], params[2 * i + 1]
        h = h @ w + b
        if i not in NO_TANH_LAYERS:
            h = jnp.tanh(h)
    return h


if __name__ == "__main__":
    batch = 200          # -> TB=112, grid of 2 tiles (both TCs), batch padding
    input_size = 16
    hidden_size = 32
    latent_size = 8

    key = jax.random.PRNGKey(0)
    key, kx = jax.random.split(key)
    x = jax.random.normal(kx, (batch, input_size), jnp.float32)

    params = init_params(key, input_size, hidden_size, latent_size)

    pad_width = 128 * pl.cdiv(max(input_size, hidden_size, latent_size), 128)
    w_stack, b_stack = pack_params(params, pad_width)

    out = denoising_autoencoder(x, w_stack, b_stack)
    out = jax.block_until_ready(out)

    ref = reference_forward(x, params)
    assert out.shape == (batch, input_size)
    assert jnp.allclose(out, ref, atol=2e-5, rtol=1e-4), "mismatch vs reference"

    print("KERNEL_OK")
</pallas_src>

<mosaic_0001>
module attributes {stable_mosaic.version = 11 : i64} {
  func.func @dae_kernel(%arg0: i32, %arg1: memref<112x16xf32, #tpu.memory_space<vmem>>, %arg2: memref<10x128x128xf32, #tpu.memory_space<vmem>>, %arg3: memref<10x1x128xf32, #tpu.memory_space<vmem>>, %arg4: memref<112x128xf32, #tpu.memory_space<vmem>>) attributes {dimension_semantics = [#tpu.dimension_semantics<parallel>], iteration_bounds = array<i64: 2>, scalar_prefetch = 0 : i64, scratch_operands = 0 : i64, tpu.core_type = #tpu.core_type<tc>, window_params = [{transform_indices = @transform_0, window_bounds = array<i64: 112, 16>}, {pipeline_mode = #tpu.pipeline_mode<synchronous>, transform_indices = @transform_1, window_bounds = array<i64: 10, 128, 128>}, {pipeline_mode = #tpu.pipeline_mode<synchronous>, transform_indices = @transform_2, window_bounds = array<i64: 10, 1, 128>}, {transform_indices = @transform_3, window_bounds = array<i64: 112, 128>}]} {
    %c0 = arith.constant 0 : index
    %c0_0 = arith.constant 0 : index
    %c0_1 = arith.constant 0 : index
    %0 = vector.load %arg2[%c0, %c0_0, %c0_1] : memref<10x128x128xf32, #tpu.memory_space<vmem>>, vector<1x16x128xf32>
    %1 = vector.shape_cast %0 : vector<1x16x128xf32> to vector<16x128xf32>
    %c0_2 = arith.constant 0 : index
    %c0_3 = arith.constant 0 : index
    %c0_4 = arith.constant 0 : index
    %2 = vector.load %arg3[%c0_2, %c0_3, %c0_4] : memref<10x1x128xf32, #tpu.memory_space<vmem>>, vector<1x1x128xf32>
    %3 = vector.shape_cast %2 : vector<1x1x128xf32> to vector<1x128xf32>
    %c0_5 = arith.constant 0 : index
    %c0_6 = arith.constant 0 : index
    %4 = vector.load %arg1[%c0_5, %c0_6] : memref<112x16xf32, #tpu.memory_space<vmem>>, vector<56x16xf32>
    %cst = arith.constant dense<0.000000e+00> : vector<56x128xf32>
    %5 = tpu.matmul %4, %1, %cst {dimension_numbers = #tpu.dot_dimension_numbers<[1], [0], [0], [1], [0, 0, 1, 1], [], []>} : vector<56x16xf32>, vector<16x128xf32>, vector<56x128xf32> -> vector<56x128xf32>
    %6 = vector.broadcast %3 : vector<1x128xf32> to vector<56x128xf32>
    %7 = arith.addf %5, %6 : vector<56x128xf32>
    %8 = math.tanh %7 : vector<56x128xf32>
    %c56 = arith.constant 56 : index
    %c0_7 = arith.constant 0 : index
    %9 = vector.load %arg1[%c56, %c0_7] : memref<112x16xf32, #tpu.memory_space<vmem>>, vector<56x16xf32>
    %cst_8 = arith.constant dense<0.000000e+00> : vector<56x128xf32>
    %10 = tpu.matmul %9, %1, %cst_8 {dimension_numbers = #tpu.dot_dimension_numbers<[1], [0], [0], [1], [0, 0, 1, 1], [], []>} : vector<56x16xf32>, vector<16x128xf32>, vector<56x128xf32> -> vector<56x128xf32>
    %11 = vector.broadcast %3 : vector<1x128xf32> to vector<56x128xf32>
    %12 = arith.addf %10, %11 : vector<56x128xf32>
    %13 = math.tanh %12 : vector<56x128xf32>
    %c1 = arith.constant 1 : index
    %c0_9 = arith.constant 0 : index
    %c0_10 = arith.constant 0 : index
    %14 = vector.load %arg2[%c1, %c0_9, %c0_10] : memref<10x128x128xf32, #tpu.memory_space<vmem>>, vector<1x128x128xf32>
    %15 = vector.shape_cast %14 : vector<1x128x128xf32> to vector<128x128xf32>
    %c1_11 = arith.constant 1 : index
    %c0_12 = arith.constant 0 : index
    %c0_13 = arith.constant 0 : index
    %16 = vector.load %arg3[%c1_11, %c0_12, %c0_13] : memref<10x1x128xf32, #tpu.memory_space<vmem>>, vector<1x1x128xf32>
    %17 = vector.shape_cast %16 : vector<1x1x128xf32> to vector<1x128xf32>
    %cst_14 = arith.constant dense<0.000000e+00> : vector<56x128xf32>
    %18 = tpu.matmul %8, %15, %cst_14 {dimension_numbers = #tpu.dot_dimension_numbers<[1], [0], [0], [1], [0, 0, 1, 1], [], []>} : vector<56x128xf32>, vector<128x128xf32>, vector<56x128xf32> -> vector<56x128xf32>
    %19 = vector.broadcast %17 : vector<1x128xf32> to vector<56x128xf32>
    %20 = arith.addf %18, %19 : vector<56x128xf32>
    %21 = math.tanh %20 : vector<56x128xf32>
    %cst_15 = arith.constant dense<0.000000e+00> : vector<56x128xf32>
    %22 = tpu.matmul %13, %15, %cst_15 {dimension_numbers = #tpu.dot_dimension_numbers<[1], [0], [0], [1], [0, 0, 1, 1], [], []>} : vector<56x128xf32>, vector<128x128xf32>, vector<56x128xf32> -> vector<56x128xf32>
    %23 = vector.broadcast %17 : vector<1x128xf32> to vector<56x128xf32>
    %24 = arith.addf %22, %23 : vector<56x128xf32>
    %25 = math.tanh %24 : vector<56x128xf32>
    %c2 = arith.constant 2 : index
    %c0_16 = arith.constant 0 : index
    %c0_17 = arith.constant 0 : index
    %26 = vector.load %arg2[%c2, %c0_16, %c0_17] : memref<10x128x128xf32, #tpu.memory_space<vmem>>, vector<1x128x128xf32>
    %27 = vector.shape_cast %26 : vector<1x128x128xf32> to vector<128x128xf32>
    %c2_18 = arith.constant 2 : index
    %c0_19 = arith.constant 0 : index
    %c0_20 = arith.constant 0 : index
    %28 = vector.load %arg3[%c2_18, %c0_19, %c0_20] : memref<10x1x128xf32, #tpu.memory_space<vmem>>, vector<1x1x128xf32>
    %29 = vector.shape_cast %28 : vector<1x1x128xf32> to vector<1x128xf32>
    %cst_21 = arith.constant dense<0.000000e+00> : vector<56x128xf32>
    %30 = tpu.matmul %21, %27, %cst_21 {dimension_numbers = #tpu.dot_dimension_numbers<[1], [0], [0], [1], [0, 0, 1, 1], [], []>} : vector<56x128xf32>, vector<128x128xf32>, vector<56x128xf32> -> vector<56x128xf32>
    %31 = vector.broadcast %29 : vector<1x128xf32> to vector<56x128xf32>
    %32 = arith.addf %30, %31 : vector<56x128xf32>
    %33 = math.tanh %32 : vector<56x128xf32>
    %cst_22 = arith.constant dense<0.000000e+00> : vector<56x128xf32>
    %34 = tpu.matmul %25, %27, %cst_22 {dimension_numbers = #tpu.dot_dimension_numbers<[1], [0], [0], [1], [0, 0, 1, 1], [], []>} : vector<56x128xf32>, vector<128x128xf32>, vector<56x128xf32> -> vector<56x128xf32>
    %35 = vector.broadcast %29 : vector<1x128xf32> to vector<56x128xf32>
    %36 = arith.addf %34, %35 : vector<56x128xf32>
    %37 = math.tanh %36 : vector<56x128xf32>
    %c3 = arith.constant 3 : index
    %c0_23 = arith.constant 0 : index
    %c0_24 = arith.constant 0 : index
    %38 = vector.load %arg2[%c3, %c0_23, %c0_24] : memref<10x128x128xf32, #tpu.memory_space<vmem>>, vector<1x128x128xf32>
    %39 = vector.shape_cast %38 : vector<1x128x128xf32> to vector<128x128xf32>
    %c3_25 = arith.constant 3 : index
    %c0_26 = arith.constant 0 : index
    %c0_27 = arith.constant 0 : index
    %40 = vector.load %arg3[%c3_25, %c0_26, %c0_27] : memref<10x1x128xf32, #tpu.memory_space<vmem>>, vector<1x1x128xf32>
    %41 = vector.shape_cast %40 : vector<1x1x128xf32> to vector<1x128xf32>
    %cst_28 = arith.constant dense<0.000000e+00> : vector<56x128xf32>
    %42 = tpu.matmul %33, %39, %cst_28 {dimension_numbers = #tpu.dot_dimension_numbers<[1], [0], [0], [1], [0, 0, 1, 1], [], []>} : vector<56x128xf32>, vector<128x128xf32>, vector<56x128xf32> -> vector<56x128xf32>
    %43 = vector.broadcast %41 : vector<1x128xf32> to vector<56x128xf32>
    %44 = arith.addf %42, %43 : vector<56x128xf32>
    %45 = math.tanh %44 : vector<56x128xf32>
    %cst_29 = arith.constant dense<0.000000e+00> : vector<56x128xf32>
    %46 = tpu.matmul %37, %39, %cst_29 {dimension_numbers = #tpu.dot_dimension_numbers<[1], [0], [0], [1], [0, 0, 1, 1], [], []>} : vector<56x128xf32>, vector<128x128xf32>, vector<56x128xf32> -> vector<56x128xf32>
    %47 = vector.broadcast %41 : vector<1x128xf32> to vector<56x128xf32>
    %48 = arith.addf %46, %47 : vector<56x128xf32>
    %49 = math.tanh %48 : vector<56x128xf32>
    %c4 = arith.constant 4 : index
    %c0_30 = arith.constant 0 : index
    %c0_31 = arith.constant 0 : index
    %50 = vector.load %arg2[%c4, %c0_30, %c0_31] : memref<10x128x128xf32, #tpu.memory_space<vmem>>, vector<1x128x128xf32>
    %51 = vector.shape_cast %50 : vector<1x128x128xf32> to vector<128x128xf32>
    %c4_32 = arith.constant 4 : index
    %c0_33 = arith.constant 0 : index
    %c0_34 = arith.constant 0 : index
    %52 = vector.load %arg3[%c4_32, %c0_33, %c0_34] : memref<10x1x128xf32, #tpu.memory_space<vmem>>, vector<1x1x128xf32>
    %53 = vector.shape_cast %52 : vector<1x1x128xf32> to vector<1x128xf32>
    %cst_35 = arith.constant dense<0.000000e+00> : vector<56x128xf32>
    %54 = tpu.matmul %45, %51, %cst_35 {dimension_numbers = #tpu.dot_dimension_numbers<[1], [0], [0], [1], [0, 0, 1, 1], [], []>} : vector<56x128xf32>, vector<128x128xf32>, vector<56x128xf32> -> vector<56x128xf32>
    %55 = vector.broadcast %53 : vector<1x128xf32> to vector<56x128xf32>
    %56 = arith.addf %54, %55 : vector<56x128xf32>
    %cst_36 = arith.constant dense<0.000000e+00> : vector<56x128xf32>
    %57 = tpu.matmul %49, %51, %cst_36 {dimension_numbers = #tpu.dot_dimension_numbers<[1], [0], [0], [1], [0, 0, 1, 1], [], []>} : vector<56x128xf32>, vector<128x128xf32>, vector<56x128xf32> -> vector<56x128xf32>
    %58 = vector.broadcast %53 : vector<1x128xf32> to vector<56x128xf32>
    %59 = arith.addf %57, %58 : vector<56x128xf32>
    %c5 = arith.constant 5 : index
    %c0_37 = arith.constant 0 : index
    %c0_38 = arith.constant 0 : index
    %60 = vector.load %arg2[%c5, %c0_37, %c0_38] : memref<10x128x128xf32, #tpu.memory_space<vmem>>, vector<1x128x128xf32>
    %61 = vector.shape_cast %60 : vector<1x128x128xf32> to vector<128x128xf32>
    %c5_39 = arith.constant 5 : index
    %c0_40 = arith.constant 0 : index
    %c0_41 = arith.constant 0 : index
    %62 = vector.load %arg3[%c5_39, %c0_40, %c0_41] : memref<10x1x128xf32, #tpu.memory_space<vmem>>, vector<1x1x128xf32>
    %63 = vector.shape_cast %62 : vector<1x1x128xf32> to vector<1x128xf32>
    %cst_42 = arith.constant dense<0.000000e+00> : vector<56x128xf32>
    %64 = tpu.matmul %56, %61, %cst_42 {dimension_numbers = #tpu.dot_dimension_numbers<[1], [0], [0], [1], [0, 0, 1, 1], [], []>} : vector<56x128xf32>, vector<128x128xf32>, vector<56x128xf32> -> vector<56x128xf32>
    %65 = vector.broadcast %63 : vector<1x128xf32> to vector<56x128xf32>
    %66 = arith.addf %64, %65 : vector<56x128xf32>
    %67 = math.tanh %66 : vector<56x128xf32>
    %cst_43 = arith.constant dense<0.000000e+00> : vector<56x128xf32>
    %68 = tpu.matmul %59, %61, %cst_43 {dimension_numbers = #tpu.dot_dimension_numbers<[1], [0], [0], [1], [0, 0, 1, 1], [], []>} : vector<56x128xf32>, vector<128x128xf32>, vector<56x128xf32> -> vector<56x128xf32>
    %69 = vector.broadcast %63 : vector<1x128xf32> to vector<56x128xf32>
    %70 = arith.addf %68, %69 : vector<56x128xf32>
    %71 = math.tanh %70 : vector<56x128xf32>
    %c6 = arith.constant 6 : index
    %c0_44 = arith.constant 0 : index
    %c0_45 = arith.constant 0 : index
    %72 = vector.load %arg2[%c6, %c0_44, %c0_45] : memref<10x128x128xf32, #tpu.memory_space<vmem>>, vector<1x128x128xf32>
    %73 = vector.shape_cast %72 : vector<1x128x128xf32> to vector<128x128xf32>
    %c6_46 = arith.constant 6 : index
    %c0_47 = arith.constant 0 : index
    %c0_48 = arith.constant 0 : index
    %74 = vector.load %arg3[%c6_46, %c0_47, %c0_48] : memref<10x1x128xf32, #tpu.memory_space<vmem>>, vector<1x1x128xf32>
    %75 = vector.shape_cast %74 : vector<1x1x128xf32> to vector<1x128xf32>
    %cst_49 = arith.constant dense<0.000000e+00> : vector<56x128xf32>
    %76 = tpu.matmul %67, %73, %cst_49 {dimension_numbers = #tpu.dot_dimension_numbers<[1], [0], [0], [1], [0, 0, 1, 1], [], []>} : vector<56x128xf32>, vector<128x128xf32>, vector<56x128xf32> -> vector<56x128xf32>
    %77 = vector.broadcast %75 : vector<1x128xf32> to vector<56x128xf32>
    %78 = arith.addf %76, %77 : vector<56x128xf32>
    %79 = math.tanh %78 : vector<56x128xf32>
    %cst_50 = arith.constant dense<0.000000e+00> : vector<56x128xf32>
    %80 = tpu.matmul %71, %73, %cst_50 {dimension_numbers = #tpu.dot_dimension_numbers<[1], [0], [0], [1], [0, 0, 1, 1], [], []>} : vector<56x128xf32>, vector<128x128xf32>, vector<56x128xf32> -> vector<56x128xf32>
    %81 = vector.broadcast %75 : vector<1x128xf32> to vector<56x128xf32>
    %82 = arith.addf %80, %81 : vector<56x128xf32>
    %83 = math.tanh %82 : vector<56x128xf32>
    %c7 = arith.constant 7 : index
    %c0_51 = arith.constant 0 : index
    %c0_52 = arith.constant 0 : index
    %84 = vector.load %arg2[%c7, %c0_51, %c0_52] : memref<10x128x128xf32, #tpu.memory_space<vmem>>, vector<1x128x128xf32>
    %85 = vector.shape_cast %84 : vector<1x128x128xf32> to vector<128x128xf32>
    %c7_53 = arith.constant 7 : index
    %c0_54 = arith.constant 0 : index
    %c0_55 = arith.constant 0 : index
    %86 = vector.load %arg3[%c7_53, %c0_54, %c0_55] : memref<10x1x128xf32, #tpu.memory_space<vmem>>, vector<1x1x128xf32>
    %87 = vector.shape_cast %86 : vector<1x1x128xf32> to vector<1x128xf32>
    %cst_56 = arith.constant dense<0.000000e+00> : vector<56x128xf32>
    %88 = tpu.matmul %79, %85, %cst_56 {dimension_numbers = #tpu.dot_dimension_numbers<[1], [0], [0], [1], [0, 0, 1, 1], [], []>} : vector<56x128xf32>, vector<128x128xf32>, vector<56x128xf32> -> vector<56x128xf32>
    %89 = vector.broadcast %87 : vector<1x128xf32> to vector<56x128xf32>
    %90 = arith.addf %88, %89 : vector<56x128xf32>
    %91 = math.tanh %90 : vector<56x128xf32>
    %cst_57 = arith.constant dense<0.000000e+00> : vector<56x128xf32>
    %92 = tpu.matmul %83, %85, %cst_57 {dimension_numbers = #tpu.dot_dimension_numbers<[1], [0], [0], [1], [0, 0, 1, 1], [], []>} : vector<56x128xf32>, vector<128x128xf32>, vector<56x128xf32> -> vector<56x128xf32>
    %93 = vector.broadcast %87 : vector<1x128xf32> to vector<56x128xf32>
    %94 = arith.addf %92, %93 : vector<56x128xf32>
    %95 = math.tanh %94 : vector<56x128xf32>
    %c8 = arith.constant 8 : index
    %c0_58 = arith.constant 0 : index
    %c0_59 = arith.constant 0 : index
    %96 = vector.load %arg2[%c8, %c0_58, %c0_59] : memref<10x128x128xf32, #tpu.memory_space<vmem>>, vector<1x128x128xf32>
    %97 = vector.shape_cast %96 : vector<1x128x128xf32> to vector<128x128xf32>
    %c8_60 = arith.constant 8 : index
    %c0_61 = arith.constant 0 : index
    %c0_62 = arith.constant 0 : index
    %98 = vector.load %arg3[%c8_60, %c0_61, %c0_62] : memref<10x1x128xf32, #tpu.memory_space<vmem>>, vector<1x1x128xf32>
    %99 = vector.shape_cast %98 : vector<1x1x128xf32> to vector<1x128xf32>
    %cst_63 = arith.constant dense<0.000000e+00> : vector<56x128xf32>
    %100 = tpu.matmul %91, %97, %cst_63 {dimension_numbers = #tpu.dot_dimension_numbers<[1], [0], [0], [1], [0, 0, 1, 1], [], []>} : vector<56x128xf32>, vector<128x128xf32>, vector<56x128xf32> -> vector<56x128xf32>
    %101 = vector.broadcast %99 : vector<1x128xf32> to vector<56x128xf32>
    %102 = arith.addf %100, %101 : vector<56x128xf32>
    %103 = math.tanh %102 : vector<56x128xf32>
    %cst_64 = arith.constant dense<0.000000e+00> : vector<56x128xf32>
    %104 = tpu.matmul %95, %97, %cst_64 {dimension_numbers = #tpu.dot_dimension_numbers<[1], [0], [0], [1], [0, 0, 1, 1], [], []>} : vector<56x128xf32>, vector<128x128xf32>, vector<56x128xf32> -> vector<56x128xf32>
    %105 = vector.broadcast %99 : vector<1x128xf32> to vector<56x128xf32>
    %106 = arith.addf %104, %105 : vector<56x128xf32>
    %107 = math.tanh %106 : vector<56x128xf32>
    %c9 = arith.constant 9 : index
    %c0_65 = arith.constant 0 : index
    %c0_66 = arith.constant 0 : index
    %108 = vector.load %arg2[%c9, %c0_65, %c0_66] : memref<10x128x128xf32, #tpu.memory_space<vmem>>, vector<1x128x128xf32>
    %109 = vector.shape_cast %108 : vector<1x128x128xf32> to vector<128x128xf32>
    %c9_67 = arith.constant 9 : index
    %c0_68 = arith.constant 0 : index
    %c0_69 = arith.constant 0 : index
    %110 = vector.load %arg3[%c9_67, %c0_68, %c0_69] : memref<10x1x128xf32, #tpu.memory_space<vmem>>, vector<1x1x128xf32>
    %111 = vector.shape_cast %110 : vector<1x1x128xf32> to vector<1x128xf32>
    %cst_70 = arith.constant dense<0.000000e+00> : vector<56x128xf32>
    %112 = tpu.matmul %103, %109, %cst_70 {dimension_numbers = #tpu.dot_dimension_numbers<[1], [0], [0], [1], [0, 0, 1, 1], [], []>} : vector<56x128xf32>, vector<128x128xf32>, vector<56x128xf32> -> vector<56x128xf32>
    %113 = vector.broadcast %111 : vector<1x128xf32> to vector<56x128xf32>
    %114 = arith.addf %112, %113 : vector<56x128xf32>
    %cst_71 = arith.constant dense<0.000000e+00> : vector<56x128xf32>
    %115 = tpu.matmul %107, %109, %cst_71 {dimension_numbers = #tpu.dot_dimension_numbers<[1], [0], [0], [1], [0, 0, 1, 1], [], []>} : vector<56x128xf32>, vector<128x128xf32>, vector<56x128xf32> -> vector<56x128xf32>
    %116 = vector.broadcast %111 : vector<1x128xf32> to vector<56x128xf32>
    %117 = arith.addf %115, %116 : vector<56x128xf32>
    %c0_72 = arith.constant 0 : index
    %c0_73 = arith.constant 0 : index
    %118 = vector.load %arg4[%c0_72, %c0_73] : memref<112x128xf32, #tpu.memory_space<vmem>>, vector<56x128xf32>
    tpu.vector_store %arg4[%c0_72, %c0_73], %114 {strides = array<i32>} : memref<112x128xf32, #tpu.memory_space<vmem>>, vector<56x128xf32>,
    %c56_74 = arith.constant 56 : index
    %c0_75 = arith.constant 0 : index
    %119 = vector.load %arg4[%c56_74, %c0_75] : memref<112x128xf32, #tpu.memory_space<vmem>>, vector<56x128xf32>
    tpu.vector_store %arg4[%c56_74, %c0_75], %117 {strides = array<i32>} : memref<112x128xf32, #tpu.memory_space<vmem>>, vector<56x128xf32>,
    return
  }
  func.func @transform_0(%arg0: i32) -> (i32, i32) {
    %c0_i32 = arith.constant 0 : i32
    %c0_i32_0 = arith.constant 0 : i32
    return %arg0, %c0_i32 : i32, i32
  }
  func.func @transform_1(%arg0: i32) -> (i32, i32, i32) {
    %c0_i32 = arith.constant 0 : i32
    %c0_i32_0 = arith.constant 0 : i32
    %c0_i32_1 = arith.constant 0 : i32
    %c0_i32_2 = arith.constant 0 : i32
    return %c0_i32, %c0_i32_0, %c0_i32_1 : i32, i32, i32
  }
  func.func @transform_2(%arg0: i32) -> (i32, i32, i32) {
    %c0_i32 = arith.constant 0 : i32
    %c0_i32_0 = arith.constant 0 : i32
    %c0_i32_1 = arith.constant 0 : i32
    %c0_i32_2 = arith.constant 0 : i32
    return %c0_i32, %c0_i32_0, %c0_i32_1 : i32, i32, i32
  }
  func.func @transform_3(%arg0: i32) -> (i32, i32) {
    %c0_i32 = arith.constant 0 : i32
    %c0_i32_0 = arith.constant 0 : i32
    return %arg0, %c0_i32 : i32, i32
  }
}

module attributes {stable_mosaic.version = 11 : i64} {
  func.func @dae_kernel(%arg0: i32, %arg1: memref<112x16xf32, #tpu.memory_space<vmem>>, %arg2: memref<10x128x128xf32, #tpu.memory_space<vmem>>, %arg3: memref<10x1x128xf32, #tpu.memory_space<vmem>>, %arg4: memref<112x128xf32, #tpu.memory_space<vmem>>) attributes {dimension_semantics = [#tpu.dimension_semantics<parallel>], iteration_bounds = array<i64: 2>, scalar_prefetch = 0 : i64, scratch_operands = 0 : i64, tpu.core_type = #tpu.core_type<tc>, window_params = [{transform_indices = @transform_0, window_bounds = array<i64: 112, 16>}, {pipeline_mode = #tpu.pipeline_mode<synchronous>, transform_indices = @transform_1, window_bounds = array<i64: 10, 128, 128>}, {pipeline_mode = #tpu.pipeline_mode<synchronous>, transform_indices = @transform_2, window_bounds = array<i64: 10, 1, 128>}, {transform_indices = @transform_3, window_bounds = array<i64: 112, 128>}]} {
    %c0 = arith.constant 0 : index
    %c0_0 = arith.constant 0 : index
    %c0_1 = arith.constant 0 : index
    %0 = vector.load %arg2[%c0, %c0_0, %c0_1] : memref<10x128x128xf32, #tpu.memory_space<vmem>>, vector<1x16x128xf32>
    %1 = vector.shape_cast %0 : vector<1x16x128xf32> to vector<16x128xf32>
    %c0_2 = arith.constant 0 : index
    %c0_3 = arith.constant 0 : index
    %c0_4 = arith.constant 0 : index
    %2 = vector.load %arg3[%c0_2, %c0_3, %c0_4] : memref<10x1x128xf32, #tpu.memory_space<vmem>>, vector<1x1x128xf32>
    %3 = vector.shape_cast %2 : vector<1x1x128xf32> to vector<1x128xf32>
    %c0_5 = arith.constant 0 : index
    %c0_6 = arith.constant 0 : index
    %4 = vector.load %arg1[%c0_5, %c0_6] : memref<112x16xf32, #tpu.memory_space<vmem>>, vector<56x16xf32>
    %cst = arith.constant dense<0.000000e+00> : vector<56x128xf32>
    %5 = tpu.matmul %4, %1, %cst {dimension_numbers = #tpu.dot_dimension_numbers<[1], [0], [0], [1], [0, 0, 1, 1], [], []>} : vector<56x16xf32>, vector<16x128xf32>, vector<56x128xf32> -> vector<56x128xf32>
    %6 = vector.broadcast %3 : vector<1x128xf32> to vector<56x128xf32>
    %7 = arith.addf %5, %6 : vector<56x128xf32>
    %8 = math.tanh %7 : vector<56x128xf32>
    %c56 = arith.constant 56 : index
    %c0_7 = arith.constant 0 : index
    %9 = vector.load %arg1[%c56, %c0_7] : memref<112x16xf32, #tpu.memory_space<vmem>>, vector<56x16xf32>
    %cst_8 = arith.constant dense<0.000000e+00> : vector<56x128xf32>
    %10 = tpu.matmul %9, %1, %cst_8 {dimension_numbers = #tpu.dot_dimension_numbers<[1], [0], [0], [1], [0, 0, 1, 1], [], []>} : vector<56x16xf32>, vector<16x128xf32>, vector<56x128xf32> -> vector<56x128xf32>
    %11 = vector.broadcast %3 : vector<1x128xf32> to vector<56x128xf32>
    %12 = arith.addf %10, %11 : vector<56x128xf32>
    %13 = math.tanh %12 : vector<56x128xf32>
    %c1 = arith.constant 1 : index
    %c0_9 = arith.constant 0 : index
    %c0_10 = arith.constant 0 : index
    %14 = vector.load %arg2[%c1, %c0_9, %c0_10] : memref<10x128x128xf32, #tpu.memory_space<vmem>>, vector<1x128x128xf32>
    %15 = vector.shape_cast %14 : vector<1x128x128xf32> to vector<128x128xf32>
    %c1_11 = arith.constant 1 : index
    %c0_12 = arith.constant 0 : index
    %c0_13 = arith.constant 0 : index
    %16 = vector.load %arg3[%c1_11, %c0_12, %c0_13] : memref<10x1x128xf32, #tpu.memory_space<vmem>>, vector<1x1x128xf32>
    %17 = vector.shape_cast %16 : vector<1x1x128xf32> to vector<1x128xf32>
    %cst_14 = arith.constant dense<0.000000e+00> : vector<56x128xf32>
    %18 = tpu.matmul %8, %15, %cst_14 {dimension_numbers = #tpu.dot_dimension_numbers<[1], [0], [0], [1], [0, 0, 1, 1], [], []>} : vector<56x128xf32>, vector<128x128xf32>, vector<56x128xf32> -> vector<56x128xf32>
    %19 = vector.broadcast %17 : vector<1x128xf32> to vector<56x128xf32>
    %20 = arith.addf %18, %19 : vector<56x128xf32>
    %21 = math.tanh %20 : vector<56x128xf32>
    %cst_15 = arith.constant dense<0.000000e+00> : vector<56x128xf32>
    %22 = tpu.matmul %13, %15, %cst_15 {dimension_numbers = #tpu.dot_dimension_numbers<[1], [0], [0], [1], [0, 0, 1, 1], [], []>} : vector<56x128xf32>, vector<128x128xf32>, vector<56x128xf32> -> vector<56x128xf32>
    %23 = vector.broadcast %17 : vector<1x128xf32> to vector<56x128xf32>
    %24 = arith.addf %22, %23 : vector<56x128xf32>
    %25 = math.tanh %24 : vector<56x128xf32>
    %c2 = arith.constant 2 : index
    %c0_16 = arith.constant 0 : index
    %c0_17 = arith.constant 0 : index
    %26 = vector.load %arg2[%c2, %c0_16, %c0_17] : memref<10x128x128xf32, #tpu.memory_space<vmem>>, vector<1x128x128xf32>
    %27 = vector.shape_cast %26 : vector<1x128x128xf32> to vector<128x128xf32>
    %c2_18 = arith.constant 2 : index
    %c0_19 = arith.constant 0 : index
    %c0_20 = arith.constant 0 : index
    %28 = vector.load %arg3[%c2_18, %c0_19, %c0_20] : memref<10x1x128xf32, #tpu.memory_space<vmem>>, vector<1x1x128xf32>
    %29 = vector.shape_cast %28 : vector<1x1x128xf32> to vector<1x128xf32>
    %cst_21 = arith.constant dense<0.000000e+00> : vector<56x128xf32>
    %30 = tpu.matmul %21, %27, %cst_21 {dimension_numbers = #tpu.dot_dimension_numbers<[1], [0], [0], [1], [0, 0, 1, 1], [], []>} : vector<56x128xf32>, vector<128x128xf32>, vector<56x128xf32> -> vector<56x128xf32>
    %31 = vector.broadcast %29 : vector<1x128xf32> to vector<56x128xf32>
    %32 = arith.addf %30, %31 : vector<56x128xf32>
    %33 = math.tanh %32 : vector<56x128xf32>
    %cst_22 = arith.constant dense<0.000000e+00> : vector<56x128xf32>
    %34 = tpu.matmul %25, %27, %cst_22 {dimension_numbers = #tpu.dot_dimension_numbers<[1], [0], [0], [1], [0, 0, 1, 1], [], []>} : vector<56x128xf32>, vector<128x128xf32>, vector<56x128xf32> -> vector<56x128xf32>
    %35 = vector.broadcast %29 : vector<1x128xf32> to vector<56x128xf32>
    %36 = arith.addf %34, %35 : vector<56x128xf32>
    %37 = math.tanh %36 : vector<56x128xf32>
    %c3 = arith.constant 3 : index
    %c0_23 = arith.constant 0 : index
    %c0_24 = arith.constant 0 : index
    %38 = vector.load %arg2[%c3, %c0_23, %c0_24] : memref<10x128x128xf32, #tpu.memory_space<vmem>>, vector<1x128x128xf32>
    %39 = vector.shape_cast %38 : vector<1x128x128xf32> to vector<128x128xf32>
    %c3_25 = arith.constant 3 : index
    %c0_26 = arith.constant 0 : index
    %c0_27 = arith.constant 0 : index
    %40 = vector.load %arg3[%c3_25, %c0_26, %c0_27] : memref<10x1x128xf32, #tpu.memory_space<vmem>>, vector<1x1x128xf32>
    %41 = vector.shape_cast %40 : vector<1x1x128xf32> to vector<1x128xf32>
    %cst_28 = arith.constant dense<0.000000e+00> : vector<56x128xf32>
    %42 = tpu.matmul %33, %39, %cst_28 {dimension_numbers = #tpu.dot_dimension_numbers<[1], [0], [0], [1], [0, 0, 1, 1], [], []>} : vector<56x128xf32>, vector<128x128xf32>, vector<56x128xf32> -> vector<56x128xf32>
    %43 = vector.broadcast %41 : vector<1x128xf32> to vector<56x128xf32>
    %44 = arith.addf %42, %43 : vector<56x128xf32>
    %45 = math.tanh %44 : vector<56x128xf32>
    %cst_29 = arith.constant dense<0.000000e+00> : vector<56x128xf32>
    %46 = tpu.matmul %37, %39, %cst_29 {dimension_numbers = #tpu.dot_dimension_numbers<[1], [0], [0], [1], [0, 0, 1, 1], [], []>} : vector<56x128xf32>, vector<128x128xf32>, vector<56x128xf32> -> vector<56x128xf32>
    %47 = vector.broadcast %41 : vector<1x128xf32> to vector<56x128xf32>
    %48 = arith.addf %46, %47 : vector<56x128xf32>
    %49 = math.tanh %48 : vector<56x128xf32>
    %c4 = arith.constant 4 : index
    %c0_30 = arith.constant 0 : index
    %c0_31 = arith.constant 0 : index
    %50 = vector.load %arg2[%c4, %c0_30, %c0_31] : memref<10x128x128xf32, #tpu.memory_space<vmem>>, vector<1x128x128xf32>
    %51 = vector.shape_cast %50 : vector<1x128x128xf32> to vector<128x128xf32>
    %c4_32 = arith.constant 4 : index
    %c0_33 = arith.constant 0 : index
    %c0_34 = arith.constant 0 : index
    %52 = vector.load %arg3[%c4_32, %c0_33, %c0_34] : memref<10x1x128xf32, #tpu.memory_space<vmem>>, vector<1x1x128xf32>
    %53 = vector.shape_cast %52 : vector<1x1x128xf32> to vector<1x128xf32>
    %cst_35 = arith.constant dense<0.000000e+00> : vector<56x128xf32>
    %54 = tpu.matmul %45, %51, %cst_35 {dimension_numbers = #tpu.dot_dimension_numbers<[1], [0], [0], [1], [0, 0, 1, 1], [], []>} : vector<56x128xf32>, vector<128x128xf32>, vector<56x128xf32> -> vector<56x128xf32>
    %55 = vector.broadcast %53 : vector<1x128xf32> to vector<56x128xf32>
    %56 = arith.addf %54, %55 : vector<56x128xf32>
    %cst_36 = arith.constant dense<0.000000e+00> : vector<56x128xf32>
    %57 = tpu.matmul %49, %51, %cst_36 {dimension_numbers = #tpu.dot_dimension_numbers<[1], [0], [0], [1], [0, 0, 1, 1], [], []>} : vector<56x128xf32>, vector<128x128xf32>, vector<56x128xf32> -> vector<56x128xf32>
    %58 = vector.broadcast %53 : vector<1x128xf32> to vector<56x128xf32>
    %59 = arith.addf %57, %58 : vector<56x128xf32>
    %c5 = arith.constant 5 : index
    %c0_37 = arith.constant 0 : index
    %c0_38 = arith.constant 0 : index
    %60 = vector.load %arg2[%c5, %c0_37, %c0_38] : memref<10x128x128xf32, #tpu.memory_space<vmem>>, vector<1x128x128xf32>
    %61 = vector.shape_cast %60 : vector<1x128x128xf32> to vector<128x128xf32>
    %c5_39 = arith.constant 5 : index
    %c0_40 = arith.constant 0 : index
    %c0_41 = arith.constant 0 : index
    %62 = vector.load %arg3[%c5_39, %c0_40, %c0_41] : memref<10x1x128xf32, #tpu.memory_space<vmem>>, vector<1x1x128xf32>
    %63 = vector.shape_cast %62 : vector<1x1x128xf32> to vector<1x128xf32>
    %cst_42 = arith.constant dense<0.000000e+00> : vector<56x128xf32>
    %64 = tpu.matmul %56, %61, %cst_42 {dimension_numbers = #tpu.dot_dimension_numbers<[1], [0], [0], [1], [0, 0, 1, 1], [], []>} : vector<56x128xf32>, vector<128x128xf32>, vector<56x128xf32> -> vector<56x128xf32>
    %65 = vector.broadcast %63 : vector<1x128xf32> to vector<56x128xf32>
    %66 = arith.addf %64, %65 : vector<56x128xf32>
    %67 = math.tanh %66 : vector<56x128xf32>
    %cst_43 = arith.constant dense<0.000000e+00> : vector<56x128xf32>
    %68 = tpu.matmul %59, %61, %cst_43 {dimension_numbers = #tpu.dot_dimension_numbers<[1], [0], [0], [1], [0, 0, 1, 1], [], []>} : vector<56x128xf32>, vector<128x128xf32>, vector<56x128xf32> -> vector<56x128xf32>
    %69 = vector.broadcast %63 : vector<1x128xf32> to vector<56x128xf32>
    %70 = arith.addf %68, %69 : vector<56x128xf32>
    %71 = math.tanh %70 : vector<56x128xf32>
    %c6 = arith.constant 6 : index
    %c0_44 = arith.constant 0 : index
    %c0_45 = arith.constant 0 : index
    %72 = vector.load %arg2[%c6, %c0_44, %c0_45] : memref<10x128x128xf32, #tpu.memory_space<vmem>>, vector<1x128x128xf32>
    %73 = vector.shape_cast %72 : vector<1x128x128xf32> to vector<128x128xf32>
    %c6_46 = arith.constant 6 : index
    %c0_47 = arith.constant 0 : index
    %c0_48 = arith.constant 0 : index
    %74 = vector.load %arg3[%c6_46, %c0_47, %c0_48] : memref<10x1x128xf32, #tpu.memory_space<vmem>>, vector<1x1x128xf32>
    %75 = vector.shape_cast %74 : vector<1x1x128xf32> to vector<1x128xf32>
    %cst_49 = arith.constant dense<0.000000e+00> : vector<56x128xf32>
    %76 = tpu.matmul %67, %73, %cst_49 {dimension_numbers = #tpu.dot_dimension_numbers<[1], [0], [0], [1], [0, 0, 1, 1], [], []>} : vector<56x128xf32>, vector<128x128xf32>, vector<56x128xf32> -> vector<56x128xf32>
    %77 = vector.broadcast %75 : vector<1x128xf32> to vector<56x128xf32>
    %78 = arith.addf %76, %77 : vector<56x128xf32>
    %79 = math.tanh %78 : vector<56x128xf32>
    %cst_50 = arith.constant dense<0.000000e+00> : vector<56x128xf32>
    %80 = tpu.matmul %71, %73, %cst_50 {dimension_numbers = #tpu.dot_dimension_numbers<[1], [0], [0], [1], [0, 0, 1, 1], [], []>} : vector<56x128xf32>, vector<128x128xf32>, vector<56x128xf32> -> vector<56x128xf32>
    %81 = vector.broadcast %75 : vector<1x128xf32> to vector<56x128xf32>
    %82 = arith.addf %80, %81 : vector<56x128xf32>
    %83 = math.tanh %82 : vector<56x128xf32>
    %c7 = arith.constant 7 : index
    %c0_51 = arith.constant 0 : index
    %c0_52 = arith.constant 0 : index
    %84 = vector.load %arg2[%c7, %c0_51, %c0_52] : memref<10x128x128xf32, #tpu.memory_space<vmem>>, vector<1x128x128xf32>
    %85 = vector.shape_cast %84 : vector<1x128x128xf32> to vector<128x128xf32>
    %c7_53 = arith.constant 7 : index
    %c0_54 = arith.constant 0 : index
    %c0_55 = arith.constant 0 : index
    %86 = vector.load %arg3[%c7_53, %c0_54, %c0_55] : memref<10x1x128xf32, #tpu.memory_space<vmem>>, vector<1x1x128xf32>
    %87 = vector.shape_cast %86 : vector<1x1x128xf32> to vector<1x128xf32>
    %cst_56 = arith.constant dense<0.000000e+00> : vector<56x128xf32>
    %88 = tpu.matmul %79, %85, %cst_56 {dimension_numbers = #tpu.dot_dimension_numbers<[1], [0], [0], [1], [0, 0, 1, 1], [], []>} : vector<56x128xf32>, vector<128x128xf32>, vector<56x128xf32> -> vector<56x128xf32>
    %89 = vector.broadcast %87 : vector<1x128xf32> to vector<56x128xf32>
    %90 = arith.addf %88, %89 : vector<56x128xf32>
    %91 = math.tanh %90 : vector<56x128xf32>
    %cst_57 = arith.constant dense<0.000000e+00> : vector<56x128xf32>
    %92 = tpu.matmul %83, %85, %cst_57 {dimension_numbers = #tpu.dot_dimension_numbers<[1], [0], [0], [1], [0, 0, 1, 1], [], []>} : vector<56x128xf32>, vector<128x128xf32>, vector<56x128xf32> -> vector<56x128xf32>
    %93 = vector.broadcast %87 : vector<1x128xf32> to vector<56x128xf32>
    %94 = arith.addf %92, %93 : vector<56x128xf32>
    %95 = math.tanh %94 : vector<56x128xf32>
    %c8 = arith.constant 8 : index
    %c0_58 = arith.constant 0 : index
    %c0_59 = arith.constant 0 : index
    %96 = vector.load %arg2[%c8, %c0_58, %c0_59] : memref<10x128x128xf32, #tpu.memory_space<vmem>>, vector<1x128x128xf32>
    %97 = vector.shape_cast %96 : vector<1x128x128xf32> to vector<128x128xf32>
    %c8_60 = arith.constant 8 : index
    %c0_61 = arith.constant 0 : index
    %c0_62 = arith.constant 0 : index
    %98 = vector.load %arg3[%c8_60, %c0_61, %c0_62] : memref<10x1x128xf32, #tpu.memory_space<vmem>>, vector<1x1x128xf32>
    %99 = vector.shape_cast %98 : vector<1x1x128xf32> to vector<1x128xf32>
    %cst_63 = arith.constant dense<0.000000e+00> : vector<56x128xf32>
    %100 = tpu.matmul %91, %97, %cst_63 {dimension_numbers = #tpu.dot_dimension_numbers<[1], [0], [0], [1], [0, 0, 1, 1], [], []>} : vector<56x128xf32>, vector<128x128xf32>, vector<56x128xf32> -> vector<56x128xf32>
    %101 = vector.broadcast %99 : vector<1x128xf32> to vector<56x128xf32>
    %102 = arith.addf %100, %101 : vector<56x128xf32>
    %103 = math.tanh %102 : vector<56x128xf32>
    %cst_64 = arith.constant dense<0.000000e+00> : vector<56x128xf32>
    %104 = tpu.matmul %95, %97, %cst_64 {dimension_numbers = #tpu.dot_dimension_numbers<[1], [0], [0], [1], [0, 0, 1, 1], [], []>} : vector<56x128xf32>, vector<128x128xf32>, vector<56x128xf32> -> vector<56x128xf32>
    %105 = vector.broadcast %99 : vector<1x128xf32> to vector<56x128xf32>
    %106 = arith.addf %104, %105 : vector<56x128xf32>
    %107 = math.tanh %106 : vector<56x128xf32>
    %c9 = arith.constant 9 : index
    %c0_65 = arith.constant 0 : index
    %c0_66 = arith.constant 0 : index
    %108 = vector.load %arg2[%c9, %c0_65, %c0_66] : memref<10x128x128xf32, #tpu.memory_space<vmem>>, vector<1x128x128xf32>
    %109 = vector.shape_cast %108 : vector<1x128x128xf32> to vector<128x128xf32>
    %c9_67 = arith.constant 9 : index
    %c0_68 = arith.constant 0 : index
    %c0_69 = arith.constant 0 : index
    %110 = vector.load %arg3[%c9_67, %c0_68, %c0_69] : memref<10x1x128xf32, #tpu.memory_space<vmem>>, vector<1x1x128xf32>
    %111 = vector.shape_cast %110 : vector<1x1x128xf32> to vector<1x128xf32>
    %cst_70 = arith.constant dense<0.000000e+00> : vector<56x128xf32>
    %112 = tpu.matmul %103, %109, %cst_70 {dimension_numbers = #tpu.dot_dimension_numbers<[1], [0], [0], [1], [0, 0, 1, 1], [], []>} : vector<56x128xf32>, vector<128x128xf32>, vector<56x128xf32> -> vector<56x128xf32>
    %113 = vector.broadcast %111 : vector<1x128xf32> to vector<56x128xf32>
    %114 = arith.addf %112, %113 : vector<56x128xf32>
    %cst_71 = arith.constant dense<0.000000e+00> : vector<56x128xf32>
    %115 = tpu.matmul %107, %109, %cst_71 {dimension_numbers = #tpu.dot_dimension_numbers<[1], [0], [0], [1], [0, 0, 1, 1], [], []>} : vector<56x128xf32>, vector<128x128xf32>, vector<56x128xf32> -> vector<56x128xf32>
    %116 = vector.broadcast %111 : vector<1x128xf32> to vector<56x128xf32>
    %117 = arith.addf %115, %116 : vector<56x128xf32>
    %c0_72 = arith.constant 0 : index
    %c0_73 = arith.constant 0 : index
    %118 = vector.load %arg4[%c0_72, %c0_73] : memref<112x128xf32, #tpu.memory_space<vmem>>, vector<56x128xf32>
    tpu.vector_store %arg4[%c0_72, %c0_73], %114 {strides = array<i32>} : memref<112x128xf32, #tpu.memory_space<vmem>>, vector<56x128xf32>,
    %c56_74 = arith.constant 56 : index
    %c0_75 = arith.constant 0 : index
    %119 = vector.load %arg4[%c56_74, %c0_75] : memref<112x128xf32, #tpu.memory_space<vmem>>, vector<56x128xf32>
    tpu.vector_store %arg4[%c56_74, %c0_75], %117 {strides = array<i32>} : memref<112x128xf32, #tpu.memory_space<vmem>>, vector<56x128xf32>,
    return
  }
  func.func @transform_0(%arg0: i32) -> (i32, i32) {
    %c0_i32 = arith.constant 0 : i32
    %c0_i32_0 = arith.constant 0 : i32
    return %arg0, %c0_i32 : i32, i32
  }
  func.func @transform_1(%arg0: i32) -> (i32, i32, i32) {
    %c0_i32 = arith.constant 0 : i32
    %c0_i32_0 = arith.constant 0 : i32
    %c0_i32_1 = arith.constant 0 : i32
    %c0_i32_2 = arith.constant 0 : i32
    return %c0_i32, %c0_i32_0, %c0_i32_1 : i32, i32, i32
  }
  func.func @transform_2(%arg0: i32) -> (i32, i32, i32) {
    %c0_i32 = arith.constant 0 : i32
    %c0_i32_0 = arith.constant 0 : i32
    %c0_i32_1 = arith.constant 0 : i32
    %c0_i32_2 = arith.constant 0 : i32
    return %c0_i32, %c0_i32_0, %c0_i32_1 : i32, i32, i32
  }
  func.func @transform_3(%arg0: i32) -> (i32, i32) {
    %c0_i32 = arith.constant 0 : i32
    %c0_i32_0 = arith.constant 0 : i32
    return %arg0, %c0_i32 : i32, i32
  }
}

</mosaic_0001>

<llo_original>
// kernel: tpu_custom_call.1
$region0: #{tpu_custom_call.1}
  #allocation0 [shape = 'u32[]', space=smem, size = 0x4, offset = 0x4, fixed_abs, tag = 'smem constant byte address 0x4 - core index']
  #allocation1 [shape = 'u32[72,128]{1,0:T(1,128)}', space=vmem, size = 0x9000, scoped, tag = 'internal scratch']
  %s0 = inlined_call_operand.vmem [shape: f32[224,16], index: 0, kind: input, shape index: {}]
  %s1 = inlined_call_operand.hbm [shape: f32[10,128,128], index: 1, kind: input, shape index: {}]
  %s2 = inlined_call_operand.vmem [shape: f32[10,1,128], index: 2, kind: input, shape index: {}]
  %s3 = inlined_call_operand.hbm [shape: f32[224,128], index: 3, kind: output, shape index: {}]
  %s4 = sld [smem:[#allocation0]]
  $region49: #{tpu_custom_call.1} parent=0
    _
  %s6 = ssub.s32 1, %s4
  %s7 = scalar_select 0, %s6, %s4
  $region1: #{tpu_custom_call.1} parent=0
    #allocation2 [shape = 'u8[655360]{0}', space=vmem, size = 0xa0000, scoped, tag = 'input window, operand 1, single buffered']
    #allocation3 [shape = 's32[2]{0}', space=sflag, size = 0x8, scoped, tag = 'scoped memory for tpu_custom_call.1']
    #allocation4 [shape = 's32[2]{0}', space=sflag, size = 0x8, scoped, tag = 'scoped memory for tpu_custom_call.1']
    #allocation5 [shape = 'u8[114688]{0}', space=vmem, size = 0x1c000, scoped, tag = 'output window, operand 0']
    %8 = vsyncpa [#allocation3], 0
    %9 = vsyncpa [#allocation4], 0
    %s10 = scalar_lea.sflag [#allocation4], 1
    %11 = vsyncpa %s10, 0
    loop: start=0, step=1, limit=4
    $region2: #{tpu_custom_call.1} parent=1 // loop_pre_header
      _
    $region3: #{tpu_custom_call.1} parent=1 // loop_header
      %s13 = sphi 0, %s17
      %p14 = scmp.ge.s32.totalorder %s13, 4
      %s23 = sphi 0, %s25
      %s26 = sphi 0, %s23
      %s27 = sphi 0, %s26
      %s43 = sphi 0, %s27
      %s47 = sphi 0, %s47
      %s49 = sphi 0, %s47
      %s50 = sphi 0, %s49
      %s64 = sphi 0, %s50
      %s68 = sphi 0, %s68
      %s70 = sphi 0, %s68
      %s71 = sphi 0, %s70
      %s85 = sphi 0, %s71
      %s91 = sphi 0, %s93
      %s94 = sphi 0, %s91
      %s95 = sphi 0, %s94
      %s111 = sphi 0, %s95
    $region4: #{tpu_custom_call.1} parent=1 // loop_header_branch
      %16 = sbr.rel (%p14) target = $region8
    $region5: #{tpu_custom_call.1} parent=1 // loop_body
      %s18 = ssub.s32 %s13, 1
      %s19 = ssub.s32 %s13, 2
      %s20 = sadd.s32 %s13, 1
      %s21 = ssub.s32 %s13, %s20
      %p22 = scmp.eq.s32.totalorder %s21, 0
      %s24 = sadd.s32 %s23, 1
      %s25 = scalar_select %p22, %s23, %s24
      %p28 = pneg %p22
      %p29 = scmp.eq.s32.totalorder %s13, 1
      %p30 = por %p28, %p29
      %p31 = scmp.ne.s32.totalorder %s23, %s26
      %p32 = scmp.eq.s32.totalorder %s13, 0
      %p33 = por %p31, %p32
      %p34 = scmp.ne.s32.totalorder %s23, %s26
      %p35 = scmp.eq.s32.totalorder %s18, 1
      %p36 = por %p34, %p35
      %p37 = scmp.ne.s32.totalorder %s26, %s27
      %p38 = scmp.eq.s32.totalorder %s18, 0
      %p39 = por %p37, %p38
      %p40 = scmp.ne.s32.totalorder %s26, %s27
      %p41 = scmp.eq.s32.totalorder %s19, 1
      %p42 = por %p40, %p41
      %p44 = scmp.ne.s32.totalorder %s27, %s43
      %p45 = scmp.eq.s32.totalorder %s19, 0
      %p46 = por %p44, %p45
      %s48 = sadd.s32 %s47, 1
      %p51 = scmp.eq.s32.totalorder %s13, 1
      %p52 = scmp.ne.s32.totalorder %s47, %s49
      %p53 = scmp.eq.s32.totalorder %s13, 0
      %p54 = por %p52, %p53
      %p55 = scmp.ne.s32.totalorder %s47, %s49
      %p56 = scmp.eq.s32.totalorder %s18, 1
      %p57 = por %p55, %p56
      %p58 = scmp.ne.s32.totalorder %s49, %s50
      %p59 = scmp.eq.s32.totalorder %s18, 0
      %p60 = por %p58, %p59
      %p61 = scmp.ne.s32.totalorder %s49, %s50
      %p62 = scmp.eq.s32.totalorder %s19, 1
      %p63 = por %p61, %p62
      %p65 = scmp.ne.s32.totalorder %s50, %s64
      %p66 = scmp.eq.s32.totalorder %s19, 0
      %p67 = por %p65, %p66
      %s69 = sadd.s32 %s68, 1
      %p72 = scmp.eq.s32.totalorder %s13, 1
      %p73 = scmp.ne.s32.totalorder %s68, %s70
      %p74 = scmp.eq.s32.totalorder %s13, 0
      %p75 = por %p73, %p74
      %p76 = scmp.ne.s32.totalorder %s68, %s70
      %p77 = scmp.eq.s32.totalorder %s18, 1
      %p78 = por %p76, %p77
      %p79 = scmp.ne.s32.totalorder %s70, %s71
      %p80 = scmp.eq.s32.totalorder %s18, 0
      %p81 = por %p79, %p80
      %p82 = scmp.ne.s32.totalorder %s70, %s71
      %p83 = scmp.eq.s32.totalorder %s19, 1
      %p84 = por %p82, %p83
      %p86 = scmp.ne.s32.totalorder %s71, %s85
      %p87 = scmp.eq.s32.totalorder %s19, 0
      %p88 = por %p86, %p87
      %s89 = ssub.s32 %s13, %s20
      %p90 = scmp.eq.s32.totalorder %s89, 0
      %s92 = sadd.s32 %s91, 1
      %s93 = scalar_select %p90, %s91, %s92
      %p96 = pneg %p90
      %p97 = scmp.eq.s32.totalorder %s13, 1
      %p98 = por %p96, %p97
      %p99 = scmp.ne.s32.totalorder %s91, %s94
      %p100 = scmp.eq.s32.totalorder %s13, 0
      %p101 = por %p99, %p100
      %p102 = scmp.ne.s32.totalorder %s91, %s94
      %p103 = scmp.eq.s32.totalorder %s18, 1
      %p104 = por %p102, %p103
      %p105 = scmp.ne.s32.totalorder %s94, %s95
      %p106 = scmp.eq.s32.totalorder %s18, 0
      %p107 = por %p105, %p106
      %p108 = scmp.ne.s32.totalorder %s94, %s95
      %p109 = scmp.eq.s32.totalorder %s19, 1
      %p110 = por %p108, %p109
      %p112 = scmp.ne.s32.totalorder %s95, %s111
      %p113 = scmp.eq.s32.totalorder %s19, 0
      %p114 = por %p112, %p113
      %p115 = scmp.le.s32.totalorder 1, %s13
      %p116 = scmp.lt.s32.totalorder %s13, 3
      %p117 = pnand %p115, %p116
      %p118 = pneg %p117
      // Predicated region
      $region9: #{tpu_custom_call.1} parent=5 // pred_check
        _
      $region10: #{tpu_custom_call.1} parent=5 // pred_check_branch
        %120 = sbr.rel (%p117) target = $region12
      $region11: #{tpu_custom_call.1} parent=5 // pred_region
        %s121 = ssub.s32 %s13, 1
        // Predicated region
        $region13: #{tpu_custom_call.1} parent=11 // pred_check
          %p122 = pneg %p60
        $region14: #{tpu_custom_call.1} parent=11 // pred_check_branch
          %124 = sbr.rel (%p122) target = $region16
        $region15: #{tpu_custom_call.1} parent=11 // pred_region
          %126 = vsyncadd [#allocation3], 0
          %s127 = sshll.u32 %s1, 4
          %s128 = int_to_ptr.hbm [resolvable:$true] %s127
          %s129 = sshll.u32 [#allocation2], 4
          %s130 = int_to_ptr.vmem [resolvable:$true] %s129
          %135 = dma.hbm_to_vmem [thread:$0]  %s128, 20480, %s130, [#allocation3], 128, 128, 8
        $region16: #{tpu_custom_call.1} parent=11 // pred_fallthru
          _
        // Predicated region
        $region17: #{tpu_custom_call.1} parent=11 // pred_check
          %p136 = pneg %p81
        $region18: #{tpu_custom_call.1} parent=11 // pred_check_branch
          %138 = sbr.rel (%p136) target = $region20
        $region19: #{tpu_custom_call.1} parent=11 // pred_region
          _
        $region20: #{tpu_custom_call.1} parent=11 // pred_fallthru
          _
      $region12: #{tpu_custom_call.1} parent=5 // pred_fallthru
        _
      %p139 = scmp.lt.s32.totalorder %s13, 2
      // Predicated region
      $region21: #{tpu_custom_call.1} parent=5 // pred_check
        %p140 = pneg %p139
      $region22: #{tpu_custom_call.1} parent=5 // pred_check_branch
        %142 = sbr.rel (%p140) target = $region24
      $region23: #{tpu_custom_call.1} parent=5 // pred_region
        // Predicated region
        $region25: #{tpu_custom_call.1} parent=23 // pred_check
          %p143 = pneg %p33
        $region26: #{tpu_custom_call.1} parent=23 // pred_check_branch
          %145 = sbr.rel (%p143) target = $region28
        $region27: #{tpu_custom_call.1} parent=23 // pred_region
          %s146 = smul.u32 14, %s13
          %p147 = scmp.lt.s32.totalorder %s146, 27
          %s148 = scalar_select %p147, %s146, 27
          %s149 = smul.addr %s148, 8
          %s150 = scalar_lea.vmem %s0, %s149
          %s151 = smul.u32 14, %s13
        $region28: #{tpu_custom_call.1} parent=23 // pred_fallthru
          _
      $region24: #{tpu_custom_call.1} parent=5 // pred_fallthru
        _
      %p152 = scmp.le.s32.totalorder 1, %s13
      %p153 = scmp.lt.s32.totalorder %s13, 3
      %p154 = pnand %p152, %p153
      %p155 = pneg %p154
      // Predicated region
      $region29: #{tpu_custom_call.1} parent=5 // pred_check
        _
      $region30: #{tpu_custom_call.1} parent=5 // pred_check_branch
        %157 = sbr.rel (%p154) target = $region32
      $region31: #{tpu_custom_call.1} parent=5 // pred_region
        %s158 = ssub.s32 %s13, 1
        // Predicated region
        $region33: #{tpu_custom_call.1} parent=31 // pred_check
          %p159 = pneg %p60
        $region34: #{tpu_custom_call.1} parent=31 // pred_check_branch
          %161 = sbr.rel (%p159) target = $region36
        $region35: #{tpu_custom_call.1} parent=31 // pred_region
          %163 = dma.done [#allocation3], 20480
        $region36: #{tpu_custom_call.1} parent=31 // pred_fallthru
          _
        %s164 = smul.u32 14, %s18
        %p165 = scmp.lt.s32.totalorder %s164, 27
        %s166 = scalar_select %p165, %s164, 27
        %s167 = smul.addr %s166, 8
        %s168 = scalar_lea.vmem %s0, %s167
        %p169 = pneg %p39
        %p170 = pneg %p36
        %p171 = pneg %p60
        %p172 = pneg %p57
        %p173 = pneg %p81
        %p174 = pneg %p78
        %p175 = pneg %p107
        %p176 = pneg %p104
        %s177 = sand.u32 %s94, 1
        %s178 = scalar_lea.sflag [#allocation4], %s177
        %s179 = sand.u32 %s94, 1
        %s180 = smul.addr %s179, 112
        %s181 = scalar_lea.vmem [#allocation5], %s180
        %s182 = smul.u32 14, %s18
        %p183 = scmp.lt.s32.totalorder %s182, 27
        %s184 = scalar_select %p183, %s182, 27
        %s185 = smul.addr %s184, 8
        %s186 = scalar_lea.vmem %s0, %s185
        %s187 = smul.u32 14, %s18
        %s188 = smul.u32 14, %s18
        %v189 = vld [vmem:[#allocation2] sm:$0xff]
        %v190 = vld [vmem:[#allocation2 + $0x8] sm:$0xff]
        %v191 = vld [vmem:[%s2] sm:$0x1]
        %v192 = vld [vmem:[%s186] sm:$0xff]
        %v193 = vld [vmem:[%s186 + $0x8] sm:$0xff]
        %v194 = vld [vmem:[%s186 + $0x10] sm:$0xff]
        %v195 = vld [vmem:[%s186 + $0x18] sm:$0xff]
        %v196 = vld [vmem:[%s186 + $0x20] sm:$0xff]
        %v197 = vld [vmem:[%s186 + $0x28] sm:$0xff]
        %v198 = vld [vmem:[%s186 + $0x30] sm:$0xff]
        %v200 = vperm.slane %v191, 0
        %vm202 = vcmask 130048
        %v204 = vsel %vm202, %v192, 0
        %v207 = vsel %vm202, %v193, 0
        %v210 = vsel %vm202, %v194, 0
        %v213 = vsel %vm202, %v195, 0
        %v216 = vsel %vm202, %v196, 0
        %v219 = vsel %vm202, %v197, 0
        %v222 = vsel %vm202, %v198, 0
        %224 = vmatpush.msra.mxu0 0.0
        %225 = vmatpush.msra.mxu0 0.0
        %226 = vmatpush.msra.mxu0 0.0
        %227 = vmatpush.msra.mxu0 0.0
        %228 = vmatpush.msra.mxu0 0.0
        %229 = vmatpush.msra.mxu0 0.0
        %230 = vmatpush.msra.mxu0 0.0
        %231 = vmatpush.msra.mxu0 0.0
        %232 = vmatpush.msra.mxu0 0.0
        %233 = vmatpush.msra.mxu0 0.0
        %234 = vmatpush.msra.mxu0 0.0
        %235 = vmatpush.msra.mxu0 0.0
        %236 = vmatpush.msra.mxu0 0.0
        %237 = vmatpush.msra.mxu0 0.0
        %238 = vmatpush.msra.mxu0 %v190
        %239 = vmatpush.msra.mxu0 %v189
        %240 = vmatmul.f32.gmra.mxu0 %v204
        %v241 = vpop.f32.mrf.mxu0
        %v242 = vadd.f32 %v200, %v241
        %243 = vmatmul.f32.gmra.mxu0 %v207
        %v244 = vpop.f32.mrf.mxu0
        %v245 = vadd.f32 %v200, %v244
        %246 = vmatmul.f32.gmra.mxu0 %v210
        %v247 = vpop.f32.mrf.mxu0
        %v248 = vadd.f32 %v200, %v247
        %249 = vmatmul.f32.gmra.mxu0 %v213
        %v250 = vpop.f32.mrf.mxu0
        %v251 = vadd.f32 %v200, %v250
        %252 = vmatmul.f32.gmra.mxu0 %v216
        %v253 = vpop.f32.mrf.mxu0
        %v254 = vadd.f32 %v200, %v253
        %255 = vmatmul.f32.gmra.mxu0 %v219
        %v256 = vpop.f32.mrf.mxu0
        %v257 = vadd.f32 %v200, %v256
        %258 = vmatmul.f32.gmra.mxu0 %v222
        %v259 = vpop.f32.mrf.mxu0
        %v260 = vadd.f32 %v200, %v259
        %261 = vdwg.mxu0
        %v262 = vtanh.pop %v242
        %v263 = vtanh.pop %v245
        %v264 = vtanh.pop %v248
        %v265 = vtanh.pop %v251
        %v266 = vtanh.pop %v254
        %v267 = vtanh.pop %v257
        %v268 = vtanh.pop %v260
        %v269 = vld [vmem:[%s186 + $0x38] sm:$0xff]
        %v270 = vld [vmem:[%s186 + $0x40] sm:$0xff]
        %v271 = vld [vmem:[%s186 + $0x48] sm:$0xff]
        %v272 = vld [vmem:[%s186 + $0x50] sm:$0xff]
        %v273 = vld [vmem:[%s186 + $0x58] sm:$0xff]
        %v274 = vld [vmem:[%s186 + $0x60] sm:$0xff]
        %v275 = vld [vmem:[%s186 + $0x68] sm:$0xff]
        %v277 = vsel %vm202, %v269, 0
        %v280 = vsel %vm202, %v270, 0
        %v283 = vsel %vm202, %v271, 0
        %v286 = vsel %vm202, %v272, 0
        %v289 = vsel %vm202, %v273, 0
        %v292 = vsel %vm202, %v274, 0
        %v295 = vsel %vm202, %v275, 0
        %297 = vmatpush.msra.mxu0 0.0
        %298 = vmatpush.msra.mxu0 0.0
        %299 = vmatpush.msra.mxu0 0.0
        %300 = vmatpush.msra.mxu0 0.0
        %301 = vmatpush.msra.mxu0 0.0
        %302 = vmatpush.msra.mxu0 0.0
        %303 = vmatpush.msra.mxu0 0.0
        %304 = vmatpush.msra.mxu0 0.0
        %305 = vmatpush.msra.mxu0 0.0
        %306 = vmatpush.msra.mxu0 0.0
        %307 = vmatpush.msra.mxu0 0.0
        %308 = vmatpush.msra.mxu0 0.0
        %309 = vmatpush.msra.mxu0 0.0
        %310 = vmatpush.msra.mxu0 0.0
        %311 = vmatpush.msra.mxu0 %v190
        %312 = vmatpush.msra.mxu0 %v189
        %313 = vmatmul.f32.gmra.mxu0 %v277
        %v314 = vpop.f32.mrf.mxu0
        %v315 = vadd.f32 %v200, %v314
        %316 = vmatmul.f32.gmra.mxu0 %v280
        %v317 = vpop.f32.mrf.mxu0
        %v318 = vadd.f32 %v200, %v317
        %319 = vmatmul.f32.gmra.mxu0 %v283
        %v320 = vpop.f32.mrf.mxu0
        %v321 = vadd.f32 %v200, %v320
        %322 = vmatmul.f32.gmra.mxu0 %v286
        %v323 = vpop.f32.mrf.mxu0
        %v324 = vadd.f32 %v200, %v323
        %325 = vmatmul.f32.gmra.mxu0 %v289
        %v326 = vpop.f32.mrf.mxu0
        %v327 = vadd.f32 %v200, %v326
        %328 = vmatmul.f32.gmra.mxu0 %v292
        %v329 = vpop.f32.mrf.mxu0
        %v330 = vadd.f32 %v200, %v329
        %331 = vmatmul.f32.gmra.mxu0 %v295
        %v332 = vpop.f32.mrf.mxu0
        %v333 = vadd.f32 %v200, %v332
        %334 = vdwg.mxu0
        %v335 = vtanh.pop %v315
        %v336 = vtanh.pop %v318
        %v337 = vtanh.pop %v321
        %v338 = vtanh.pop %v324
        %v339 = vtanh.pop %v327
        %v340 = vtanh.pop %v330
        %v341 = vtanh.pop %v333
        %s342 = scalar_lea.vmem [#allocation2], 128
        %v343 = vld [vmem:[%s342] sm:$0xff]
        %v344 = vld [vmem:[%s342 + $0x8] sm:$0xff]
        %v345 = vld [vmem:[%s342 + $0x10] sm:$0xff]
        %v346 = vld [vmem:[%s342 + $0x18] sm:$0xff]
        %v347 = vld [vmem:[%s342 + $0x20] sm:$0xff]
        %v348 = vld [vmem:[%s342 + $0x28] sm:$0xff]
        %v349 = vld [vmem:[%s342 + $0x30] sm:$0xff]
        %v350 = vld [vmem:[%s342 + $0x38] sm:$0xff]
        %v351 = vld [vmem:[%s342 + $0x40] sm:$0xff]
        %v352 = vld [vmem:[%s342 + $0x48] sm:$0xff]
        %v353 = vld [vmem:[%s342 + $0x50] sm:$0xff]
        %v354 = vld [vmem:[%s342 + $0x58] sm:$0xff]
        %v355 = vld [vmem:[%s342 + $0x60] sm:$0xff]
        %v356 = vld [vmem:[%s342 + $0x68] sm:$0xff]
        %v357 = vld [vmem:[%s342 + $0x70] sm:$0xff]
        %v358 = vld [vmem:[%s342 + $0x78] sm:$0xff]
        %s359 = scalar_lea.vmem %s2, 1
        %v360 = vld [vmem:[%s359] sm:$0x1]
        %v362 = vperm.slane %v360, 0
        %364 = vmatpush.msra.mxu0 %v358
        %365 = vmatpush.msra.mxu0 %v357
        %366 = vmatpush.msra.mxu0 %v356
        %367 = vmatpush.msra.mxu0 %v355
        %368 = vmatpush.msra.mxu0 %v354
        %369 = vmatpush.msra.mxu0 %v353
        %370 = vmatpush.msra.mxu0 %v352
        %371 = vmatpush.msra.mxu0 %v351
        %372 = vmatpush.msra.mxu0 %v350
        %373 = vmatpush.msra.mxu0 %v349
        %374 = vmatpush.msra.mxu0 %v348
        %375 = vmatpush.msra.mxu0 %v347
        %376 = vmatpush.msra.mxu0 %v346
        %377 = vmatpush.msra.mxu0 %v345
        %378 = vmatpush.msra.mxu0 %v344
        %379 = vmatpush.msra.mxu0 %v343
        %380 = vmatmul.f32.gmra.mxu0 %v262
        %v381 = vpop.f32.mrf.mxu0
        %v382 = vadd.f32 %v362, %v381
        %383 = vmatmul.f32.gmra.mxu0 %v263
        %v384 = vpop.f32.mrf.mxu0
        %v385 = vadd.f32 %v362, %v384
        %386 = vmatmul.f32.gmra.mxu0 %v264
        %v387 = vpop.f32.mrf.mxu0
        %v388 = vadd.f32 %v362, %v387
        %389 = vmatmul.f32.gmra.mxu0 %v265
        %v390 = vpop.f32.mrf.mxu0
        %v391 = vadd.f32 %v362, %v390
        %392 = vmatmul.f32.gmra.mxu0 %v266
        %v393 = vpop.f32.mrf.mxu0
        %v394 = vadd.f32 %v362, %v393
        %395 = vmatmul.f32.gmra.mxu0 %v267
        %v396 = vpop.f32.mrf.mxu0
        %v397 = vadd.f32 %v362, %v396
        %398 = vmatmul.f32.gmra.mxu0 %v268
        %v399 = vpop.f32.mrf.mxu0
        %v400 = vadd.f32 %v362, %v399
        %401 = vdwg.mxu0
        %v402 = vtanh.pop %v382
        %v403 = vtanh.pop %v385
        %v404 = vtanh.pop %v388
        %v405 = vtanh.pop %v391
        %v406 = vtanh.pop %v394
        %v407 = vtanh.pop %v397
        %v408 = vtanh.pop %v400
        %409 = vmatpush.msra.mxu0 %v358
        %410 = vmatpush.msra.mxu0 %v357
        %411 = vmatpush.msra.mxu0 %v356
        %412 = vmatpush.msra.mxu0 %v355
        %413 = vmatpush.msra.mxu0 %v354
        %414 = vmatpush.msra.mxu0 %v353
        %415 = vmatpush.msra.mxu0 %v352
        %416 = vmatpush.msra.mxu0 %v351
        %417 = vmatpush.msra.mxu0 %v350
        %418 = vmatpush.msra.mxu0 %v349
        %419 = vmatpush.msra.mxu0 %v348
        %420 = vmatpush.msra.mxu0 %v347
        %421 = vmatpush.msra.mxu0 %v346
        %422 = vmatpush.msra.mxu0 %v345
        %423 = vmatpush.msra.mxu0 %v344
        %424 = vmatpush.msra.mxu0 %v343
        %425 = vmatmul.f32.gmra.mxu0 %v335
        %v426 = vpop.f32.mrf.mxu0
        %v427 = vadd.f32 %v362, %v426
        %428 = vmatmul.f32.gmra.mxu0 %v336
        %v429 = vpop.f32.mrf.mxu0
        %v430 = vadd.f32 %v362, %v429
        %431 = vmatmul.f32.gmra.mxu0 %v337
        %v432 = vpop.f32.mrf.mxu0
        %v433 = vadd.f32 %v362, %v432
        %434 = vmatmul.f32.gmra.mxu0 %v338
        %v435 = vpop.f32.mrf.mxu0
        %v436 = vadd.f32 %v362, %v435
        %437 = vmatmul.f32.gmra.mxu0 %v339
        %v438 = vpop.f32.mrf.mxu0
        %v439 = vadd.f32 %v362, %v438
        %440 = vmatmul.f32.gmra.mxu0 %v340
        %v441 = vpop.f32.mrf.mxu0
        %v442 = vadd.f32 %v362, %v441
        %443 = vmatmul.f32.gmra.mxu0 %v341
        %v444 = vpop.f32.mrf.mxu0
        %v445 = vadd.f32 %v362, %v444
        %446 = vdwg.mxu0
        %v447 = vtanh.pop %v427
        %v448 = vtanh.pop %v430
        %v449 = vtanh.pop %v433
        %v450 = vtanh.pop %v436
        %v451 = vtanh.pop %v439
        %v452 = vtanh.pop %v442
        %v453 = vtanh.pop %v445
        %s454 = scalar_lea.vmem [#allocation2], 256
        %v455 = vld [vmem:[%s454] sm:$0xff]
        %v456 = vld [vmem:[%s454 + $0x8] sm:$0xff]
        %v457 = vld [vmem:[%s454 + $0x10] sm:$0xff]
        %v458 = vld [vmem:[%s454 + $0x18] sm:$0xff]
        %v459 = vld [vmem:[%s454 + $0x20] sm:$0xff]
        %v460 = vld [vmem:[%s454 + $0x28] sm:$0xff]
        %v461 = vld [vmem:[%s454 + $0x30] sm:$0xff]
        %v462 = vld [vmem:[%s454 + $0x38] sm:$0xff]
        %v463 = vld [vmem:[%s454 + $0x40] sm:$0xff]
        %v464 = vld [vmem:[%s454 + $0x48] sm:$0xff]
        %v465 = vld [vmem:[%s454 + $0x50] sm:$0xff]
        %v466 = vld [vmem:[%s454 + $0x58] sm:$0xff]
        %v467 = vld [vmem:[%s454 + $0x60] sm:$0xff]
        %v468 = vld [vmem:[%s454 + $0x68] sm:$0xff]
        %v469 = vld [vmem:[%s454 + $0x70] sm:$0xff]
        %v470 = vld [vmem:[%s454 + $0x78] sm:$0xff]
        %s471 = scalar_lea.vmem %s2, 2
        %v472 = vld [vmem:[%s471] sm:$0x1]
        %v474 = vperm.slane %v472, 0
        %476 = vmatpush.msra.mxu0 %v470
        %477 = vmatpush.msra.mxu0 %v469
        %478 = vmatpush.msra.mxu0 %v468
        %479 = vmatpush.msra.mxu0 %v467
        %480 = vmatpush.msra.mxu0 %v466
        %481 = vmatpush.msra.mxu0 %v465
        %482 = vmatpush.msra.mxu0 %v464
        %483 = vmatpush.msra.mxu0 %v463
        %484 = vmatpush.msra.mxu0 %v462
        %485 = vmatpush.msra.mxu0 %v461
        %486 = vmatpush.msra.mxu0 %v460
        %487 = vmatpush.msra.mxu0 %v459
        %488 = vmatpush.msra.mxu0 %v458
        %489 = vmatpush.msra.mxu0 %v457
        %490 = vmatpush.msra.mxu0 %v456
        %491 = vmatpush.msra.mxu0 %v455
        %492 = vmatmul.f32.gmra.mxu0 %v402
        %v493 = vpop.f32.mrf.mxu0
        %v494 = vadd.f32 %v474, %v493
        %495 = vmatmul.f32.gmra.mxu0 %v403
        %v496 = vpop.f32.mrf.mxu0
        %v497 = vadd.f32 %v474, %v496
        %498 = vmatmul.f32.gmra.mxu0 %v404
        %v499 = vpop.f32.mrf.mxu0
        %v500 = vadd.f32 %v474, %v499
        %501 = vmatmul.f32.gmra.mxu0 %v405
        %v502 = vpop.f32.mrf.mxu0
        %v503 = vadd.f32 %v474, %v502
        %504 = vmatmul.f32.gmra.mxu0 %v406
        %v505 = vpop.f32.mrf.mxu0
        %v506 = vadd.f32 %v474, %v505
        %507 = vmatmul.f32.gmra.mxu0 %v407
        %v508 = vpop.f32.mrf.mxu0
        %v509 = vadd.f32 %v474, %v508
        %510 = vmatmul.f32.gmra.mxu0 %v408
        %v511 = vpop.f32.mrf.mxu0
        %v512 = vadd.f32 %v474, %v511
        %513 = vdwg.mxu0
        %v514 = vtanh.pop %v494
        %v515 = vtanh.pop %v497
        %v516 = vtanh.pop %v500
        %v517 = vtanh.pop %v503
        %v518 = vtanh.pop %v506
        %v519 = vtanh.pop %v509
        %v520 = vtanh.pop %v512
        %521 = vmatpush.msra.mxu0 %v470
        %522 = vmatpush.msra.mxu0 %v469
        %523 = vmatpush.msra.mxu0 %v468
        %524 = vmatpush.msra.mxu0 %v467
        %525 = vmatpush.msra.mxu0 %v466
        %526 = vmatpush.msra.mxu0 %v465
        %527 = vmatpush.msra.mxu0 %v464
        %528 = vmatpush.msra.mxu0 %v463
        %529 = vmatpush.msra.mxu0 %v462
        %530 = vmatpush.msra.mxu0 %v461
        %531 = vmatpush.msra.mxu0 %v460
        %532 = vmatpush.msra.mxu0 %v459
        %533 = vmatpush.msra.mxu0 %v458
        %534 = vmatpush.msra.mxu0 %v457
        %535 = vmatpush.msra.mxu0 %v456
        %536 = vmatpush.msra.mxu0 %v455
        %537 = vmatmul.f32.gmra.mxu0 %v447
        %v538 = vpop.f32.mrf.mxu0
        %v539 = vadd.f32 %v474, %v538
        %540 = vmatmul.f32.gmra.mxu0 %v448
        %v541 = vpop.f32.mrf.mxu0
        %v542 = vadd.f32 %v474, %v541
        %543 = vmatmul.f32.gmra.mxu0 %v449
        %v544 = vpop.f32.mrf.mxu0
        %v545 = vadd.f32 %v474, %v544
        %546 = vmatmul.f32.gmra.mxu0 %v450
        %v547 = vpop.f32.mrf.mxu0
        %v548 = vadd.f32 %v474, %v547
        %549 = vmatmul.f32.gmra.mxu0 %v451
        %v550 = vpop.f32.mrf.mxu0
        %v551 = vadd.f32 %v474, %v550
        %552 = vmatmul.f32.gmra.mxu0 %v452
        %v553 = vpop.f32.mrf.mxu0
        %v554 = vadd.f32 %v474, %v553
        %555 = vmatmul.f32.gmra.mxu0 %v453
        %v556 = vpop.f32.mrf.mxu0
        %v557 = vadd.f32 %v474, %v556
        %558 = vdwg.mxu0
        %v559 = vtanh.pop %v539
        %v560 = vtanh.pop %v542
        %v561 = vtanh.pop %v545
        %v562 = vtanh.pop %v548
        %v563 = vtanh.pop %v551
        %v564 = vtanh.pop %v554
        %v565 = vtanh.pop %v557
        %s566 = scalar_lea.vmem [#allocation2], 384
        %v567 = vld [vmem:[%s566] sm:$0xff]
        %v568 = vld [vmem:[%s566 + $0x8] sm:$0xff]
        %v569 = vld [vmem:[%s566 + $0x10] sm:$0xff]
        %v570 = vld [vmem:[%s566 + $0x18] sm:$0xff]
        %v571 = vld [vmem:[%s566 + $0x20] sm:$0xff]
        %v572 = vld [vmem:[%s566 + $0x28] sm:$0xff]
        %v573 = vld [vmem:[%s566 + $0x30] sm:$0xff]
        %v574 = vld [vmem:[%s566 + $0x38] sm:$0xff]
        %v575 = vld [vmem:[%s566 + $0x40] sm:$0xff]
        %v576 = vld [vmem:[%s566 + $0x48] sm:$0xff]
        %v577 = vld [vmem:[%s566 + $0x50] sm:$0xff]
        %v578 = vld [vmem:[%s566 + $0x58] sm:$0xff]
        %v579 = vld [vmem:[%s566 + $0x60] sm:$0xff]
        %v580 = vld [vmem:[%s566 + $0x68] sm:$0xff]
        %v581 = vld [vmem:[%s566 + $0x70] sm:$0xff]
        %v582 = vld [vmem:[%s566 + $0x78] sm:$0xff]
        %s583 = scalar_lea.vmem %s2, 3
        %v584 = vld [vmem:[%s583] sm:$0x1]
        %v586 = vperm.slane %v584, 0
        %588 = vmatpush.msra.mxu0 %v582
        %589 = vmatpush.msra.mxu0 %v581
        %590 = vmatpush.msra.mxu0 %v580
        %591 = vmatpush.msra.mxu0 %v579
        %592 = vmatpush.msra.mxu0 %v578
        %593 = vmatpush.msra.mxu0 %v577
        %594 = vmatpush.msra.mxu0 %v576
        %595 = vmatpush.msra.mxu0 %v575
        %596 = vmatpush.msra.mxu0 %v574
        %597 = vmatpush.msra.mxu0 %v573
        %598 = vmatpush.msra.mxu0 %v572
        %599 = vmatpush.msra.mxu0 %v571
        %600 = vmatpush.msra.mxu0 %v570
        %601 = vmatpush.msra.mxu0 %v569
        %602 = vmatpush.msra.mxu0 %v568
        %603 = vmatpush.msra.mxu0 %v567
        %604 = vmatmul.f32.gmra.mxu0 %v514
        %v605 = vpop.f32.mrf.mxu0
        %v606 = vadd.f32 %v586, %v605
        %607 = vmatmul.f32.gmra.mxu0 %v515
        %v608 = vpop.f32.mrf.mxu0
        %v609 = vadd.f32 %v586, %v608
        %610 = vmatmul.f32.gmra.mxu0 %v516
        %v611 = vpop.f32.mrf.mxu0
        %v612 = vadd.f32 %v586, %v611
        %613 = vmatmul.f32.gmra.mxu0 %v517
        %v614 = vpop.f32.mrf.mxu0
        %v615 = vadd.f32 %v586, %v614
        %616 = vmatmul.f32.gmra.mxu0 %v518
        %v617 = vpop.f32.mrf.mxu0
        %v618 = vadd.f32 %v586, %v617
        %619 = vmatmul.f32.gmra.mxu0 %v519
        %v620 = vpop.f32.mrf.mxu0
        %v621 = vadd.f32 %v586, %v620
        %622 = vmatmul.f32.gmra.mxu0 %v520
        %v623 = vpop.f32.mrf.mxu0
        %v624 = vadd.f32 %v586, %v623
        %625 = vdwg.mxu0
        %v626 = vtanh.pop %v606
        %v627 = vtanh.pop %v609
        %v628 = vtanh.pop %v612
        %v629 = vtanh.pop %v615
        %v630 = vtanh.pop %v618
        %v631 = vtanh.pop %v621
        %v632 = vtanh.pop %v624
        %633 = vmatpush.msra.mxu0 %v582
        %634 = vmatpush.msra.mxu0 %v581
        %635 = vmatpush.msra.mxu0 %v580
        %636 = vmatpush.msra.mxu0 %v579
        %637 = vmatpush.msra.mxu0 %v578
        %638 = vmatpush.msra.mxu0 %v577
        %639 = vmatpush.msra.mxu0 %v576
        %640 = vmatpush.msra.mxu0 %v575
        %641 = vmatpush.msra.mxu0 %v574
        %642 = vmatpush.msra.mxu0 %v573
        %643 = vmatpush.msra.mxu0 %v572
        %644 = vmatpush.msra.mxu0 %v571
        %645 = vmatpush.msra.mxu0 %v570
        %646 = vmatpush.msra.mxu0 %v569
        %647 = vmatpush.msra.mxu0 %v568
        %648 = vmatpush.msra.mxu0 %v567
        %649 = vmatmul.f32.gmra.mxu0 %v559
        %v650 = vpop.f32.mrf.mxu0
        %v651 = vadd.f32 %v586, %v650
        %652 = vmatmul.f32.gmra.mxu0 %v560
        %v653 = vpop.f32.mrf.mxu0
        %v654 = vadd.f32 %v586, %v653
        %655 = vmatmul.f32.gmra.mxu0 %v561
        %v656 = vpop.f32.mrf.mxu0
        %v657 = vadd.f32 %v586, %v656
        %658 = vmatmul.f32.gmra.mxu0 %v562
        %v659 = vpop.f32.mrf.mxu0
        %v660 = vadd.f32 %v586, %v659
        %661 = vmatmul.f32.gmra.mxu0 %v563
        %v662 = vpop.f32.mrf.mxu0
        %v663 = vadd.f32 %v586, %v662
        %664 = vmatmul.f32.gmra.mxu0 %v564
        %v665 = vpop.f32.mrf.mxu0
        %v666 = vadd.f32 %v586, %v665
        %667 = vmatmul.f32.gmra.mxu0 %v565
        %v668 = vpop.f32.mrf.mxu0
        %v669 = vadd.f32 %v586, %v668
        %670 = vdwg.mxu0
        %v671 = vtanh.pop %v651
        %v672 = vtanh.pop %v654
        %v673 = vtanh.pop %v657
        %v674 = vtanh.pop %v660
        %v675 = vtanh.pop %v663
        %v676 = vtanh.pop %v666
        %v677 = vtanh.pop %v669
        %s678 = scalar_lea.vmem [#allocation2], 512
        %v679 = vld [vmem:[%s678] sm:$0xff]
        %v680 = vld [vmem:[%s678 + $0x8] sm:$0xff]
        %v681 = vld [vmem:[%s678 + $0x10] sm:$0xff]
        %v682 = vld [vmem:[%s678 + $0x18] sm:$0xff]
        %v683 = vld [vmem:[%s678 + $0x20] sm:$0xff]
        %v684 = vld [vmem:[%s678 + $0x28] sm:$0xff]
        %v685 = vld [vmem:[%s678 + $0x30] sm:$0xff]
        %v686 = vld [vmem:[%s678 + $0x38] sm:$0xff]
        %v687 = vld [vmem:[%s678 + $0x40] sm:$0xff]
        %v688 = vld [vmem:[%s678 + $0x48] sm:$0xff]
        %v689 = vld [vmem:[%s678 + $0x50] sm:$0xff]
        %v690 = vld [vmem:[%s678 + $0x58] sm:$0xff]
        %v691 = vld [vmem:[%s678 + $0x60] sm:$0xff]
        %v692 = vld [vmem:[%s678 + $0x68] sm:$0xff]
        %v693 = vld [vmem:[%s678 + $0x70] sm:$0xff]
        %v694 = vld [vmem:[%s678 + $0x78] sm:$0xff]
        %s695 = scalar_lea.vmem %s2, 4
        %v696 = vld [vmem:[%s695] sm:$0x1]
        %v698 = vperm.slane %v696, 0
        %700 = vmatpush.msra.mxu0 %v694
        %701 = vmatpush.msra.mxu0 %v693
        %702 = vmatpush.msra.mxu0 %v692
        %703 = vmatpush.msra.mxu0 %v691
        %704 = vmatpush.msra.mxu0 %v690
        %705 = vmatpush.msra.mxu0 %v689
        %706 = vmatpush.msra.mxu0 %v688
        %707 = vmatpush.msra.mxu0 %v687
        %708 = vmatpush.msra.mxu0 %v686
        %709 = vmatpush.msra.mxu0 %v685
        %710 = vmatpush.msra.mxu0 %v684
        %711 = vmatpush.msra.mxu0 %v683
        %712 = vmatpush.msra.mxu0 %v682
        %713 = vmatpush.msra.mxu0 %v681
        %714 = vmatpush.msra.mxu0 %v680
        %715 = vmatpush.msra.mxu0 %v679
        %716 = vmatmul.f32.gmra.mxu0 %v626
        %v717 = vpop.f32.mrf.mxu0
        %v718 = vadd.f32 %v698, %v717
        %719 = vmatmul.f32.gmra.mxu0 %v627
        %v720 = vpop.f32.mrf.mxu0
        %v721 = vadd.f32 %v698, %v720
        %722 = vmatmul.f32.gmra.mxu0 %v628
        %v723 = vpop.f32.mrf.mxu0
        %v724 = vadd.f32 %v698, %v723
        %725 = vmatmul.f32.gmra.mxu0 %v629
        %v726 = vpop.f32.mrf.mxu0
        %v727 = vadd.f32 %v698, %v726
        %728 = vmatmul.f32.gmra.mxu0 %v630
        %v729 = vpop.f32.mrf.mxu0
        %v730 = vadd.f32 %v698, %v729
        %731 = vmatmul.f32.gmra.mxu0 %v631
        %v732 = vpop.f32.mrf.mxu0
        %v733 = vadd.f32 %v698, %v732
        %734 = vmatmul.f32.gmra.mxu0 %v632
        %v735 = vpop.f32.mrf.mxu0
        %v736 = vadd.f32 %v698, %v735
        %737 = vdwg.mxu0
        %738 = vmatpush.msra.mxu0 %v694
        %739 = vmatpush.msra.mxu0 %v693
        %740 = vmatpush.msra.mxu0 %v692
        %741 = vmatpush.msra.mxu0 %v691
        %742 = vmatpush.msra.mxu0 %v690
        %743 = vmatpush.msra.mxu0 %v689
        %744 = vmatpush.msra.mxu0 %v688
        %745 = vmatpush.msra.mxu0 %v687
        %746 = vmatpush.msra.mxu0 %v686
        %747 = vmatpush.msra.mxu0 %v685
        %748 = vmatpush.msra.mxu0 %v684
        %749 = vmatpush.msra.mxu0 %v683
        %750 = vmatpush.msra.mxu0 %v682
        %751 = vmatpush.msra.mxu0 %v681
        %752 = vmatpush.msra.mxu0 %v680
        %753 = vmatpush.msra.mxu0 %v679
        %754 = vmatmul.f32.gmra.mxu0 %v671
        %v755 = vpop.f32.mrf.mxu0
        %v756 = vadd.f32 %v698, %v755
        %757 = vmatmul.f32.gmra.mxu0 %v672
        %v758 = vpop.f32.mrf.mxu0
        %v759 = vadd.f32 %v698, %v758
        %760 = vmatmul.f32.gmra.mxu0 %v673
        %v761 = vpop.f32.mrf.mxu0
        %v762 = vadd.f32 %v698, %v761
        %763 = vmatmul.f32.gmra.mxu0 %v674
        %v764 = vpop.f32.mrf.mxu0
        %v765 = vadd.f32 %v698, %v764
        %766 = vmatmul.f32.gmra.mxu0 %v675
        %v767 = vpop.f32.mrf.mxu0
        %v768 = vadd.f32 %v698, %v767
        %769 = vmatmul.f32.gmra.mxu0 %v676
        %v770 = vpop.f32.mrf.mxu0
        %v771 = vadd.f32 %v698, %v770
        %772 = vmatmul.f32.gmra.mxu0 %v677
        %v773 = vpop.f32.mrf.mxu0
        %v774 = vadd.f32 %v698, %v773
        %775 = vdwg.mxu0
        %s776 = scalar_lea.vmem [#allocation2], 640
        %v777 = vld [vmem:[%s776] sm:$0xff]
        %v778 = vld [vmem:[%s776 + $0x8] sm:$0xff]
        %v779 = vld [vmem:[%s776 + $0x10] sm:$0xff]
        %v780 = vld [vmem:[%s776 + $0x18] sm:$0xff]
        %v781 = vld [vmem:[%s776 + $0x20] sm:$0xff]
        %v782 = vld [vmem:[%s776 + $0x28] sm:$0xff]
        %v783 = vld [vmem:[%s776 + $0x30] sm:$0xff]
        %v784 = vld [vmem:[%s776 + $0x38] sm:$0xff]
        %v785 = vld [vmem:[%s776 + $0x40] sm:$0xff]
        %v786 = vld [vmem:[%s776 + $0x48] sm:$0xff]
        %v787 = vld [vmem:[%s776 + $0x50] sm:$0xff]
        %v788 = vld [vmem:[%s776 + $0x58] sm:$0xff]
        %v789 = vld [vmem:[%s776 + $0x60] sm:$0xff]
        %v790 = vld [vmem:[%s776 + $0x68] sm:$0xff]
        %v791 = vld [vmem:[%s776 + $0x70] sm:$0xff]
        %v792 = vld [vmem:[%s776 + $0x78] sm:$0xff]
        %s793 = scalar_lea.vmem %s2, 5
        %v794 = vld [vmem:[%s793] sm:$0x1]
        %v796 = vperm.slane %v794, 0
        %798 = vmatpush.msra.mxu0 %v792
        %799 = vmatpush.msra.mxu0 %v791
        %800 = vmatpush.msra.mxu0 %v790
        %801 = vmatpush.msra.mxu0 %v789
        %802 = vmatpush.msra.mxu0 %v788
        %803 = vmatpush.msra.mxu0 %v787
        %804 = vmatpush.msra.mxu0 %v786
        %805 = vmatpush.msra.mxu0 %v785
        %806 = vmatpush.msra.mxu0 %v784
        %807 = vmatpush.msra.mxu0 %v783
        %808 = vmatpush.msra.mxu0 %v782
        %809 = vmatpush.msra.mxu0 %v781
        %810 = vmatpush.msra.mxu0 %v780
        %811 = vmatpush.msra.mxu0 %v779
        %812 = vmatpush.msra.mxu0 %v778
        %813 = vmatpush.msra.mxu0 %v777
        %814 = vmatmul.f32.gmra.mxu0 %v718
        %v815 = vpop.f32.mrf.mxu0
        %v816 = vadd.f32 %v796, %v815
        %817 = vmatmul.f32.gmra.mxu0 %v721
        %v818 = vpop.f32.mrf.mxu0
        %v819 = vadd.f32 %v796, %v818
        %820 = vmatmul.f32.gmra.mxu0 %v724
        %v821 = vpop.f32.mrf.mxu0
        %v822 = vadd.f32 %v796, %v821
        %823 = vmatmul.f32.gmra.mxu0 %v727
        %v824 = vpop.f32.mrf.mxu0
        %v825 = vadd.f32 %v796, %v824
        %826 = vmatmul.f32.gmra.mxu0 %v730
        %v827 = vpop.f32.mrf.mxu0
        %v828 = vadd.f32 %v796, %v827
        %829 = vmatmul.f32.gmra.mxu0 %v733
        %v830 = vpop.f32.mrf.mxu0
        %v831 = vadd.f32 %v796, %v830
        %832 = vmatmul.f32.gmra.mxu0 %v736
        %v833 = vpop.f32.mrf.mxu0
        %v834 = vadd.f32 %v796, %v833
        %835 = vdwg.mxu0
        %v836 = vtanh.pop %v816
        %v837 = vtanh.pop %v819
        %v838 = vtanh.pop %v822
        %v839 = vtanh.pop %v825
        %v840 = vtanh.pop %v828
        %v841 = vtanh.pop %v831
        %v842 = vtanh.pop %v834
        %843 = vmatpush.msra.mxu0 %v792
        %844 = vmatpush.msra.mxu0 %v791
        %845 = vmatpush.msra.mxu0 %v790
        %846 = vmatpush.msra.mxu0 %v789
        %847 = vmatpush.msra.mxu0 %v788
        %848 = vmatpush.msra.mxu0 %v787
        %849 = vmatpush.msra.mxu0 %v786
        %850 = vmatpush.msra.mxu0 %v785
        %851 = vmatpush.msra.mxu0 %v784
        %852 = vmatpush.msra.mxu0 %v783
        %853 = vmatpush.msra.mxu0 %v782
        %854 = vmatpush.msra.mxu0 %v781
        %855 = vmatpush.msra.mxu0 %v780
        %856 = vmatpush.msra.mxu0 %v779
        %857 = vmatpush.msra.mxu0 %v778
        %858 = vmatpush.msra.mxu0 %v777
        %859 = vmatmul.f32.gmra.mxu0 %v756
        %v860 = vpop.f32.mrf.mxu0
        %v861 = vadd.f32 %v796, %v860
        %862 = vmatmul.f32.gmra.mxu0 %v759
        %v863 = vpop.f32.mrf.mxu0
        %v864 = vadd.f32 %v796, %v863
        %865 = vmatmul.f32.gmra.mxu0 %v762
        %v866 = vpop.f32.mrf.mxu0
        %v867 = vadd.f32 %v796, %v866
        %868 = vmatmul.f32.gmra.mxu0 %v765
        %v869 = vpop.f32.mrf.mxu0
        %v870 = vadd.f32 %v796, %v869
        %871 = vmatmul.f32.gmra.mxu0 %v768
        %v872 = vpop.f32.mrf.mxu0
        %v873 = vadd.f32 %v796, %v872
        %874 = vmatmul.f32.gmra.mxu0 %v771
        %v875 = vpop.f32.mrf.mxu0
        %v876 = vadd.f32 %v796, %v875
        %877 = vmatmul.f32.gmra.mxu0 %v774
        %v878 = vpop.f32.mrf.mxu0
        %v879 = vadd.f32 %v796, %v878
        %880 = vdwg.mxu0
        %v881 = vtanh.pop %v861
        %v882 = vtanh.pop %v864
        %v883 = vtanh.pop %v867
        %v884 = vtanh.pop %v870
        %v885 = vtanh.pop %v873
        %v886 = vtanh.pop %v876
        %v887 = vtanh.pop %v879
        %s888 = scalar_lea.vmem [#allocation2], 768
        %v889 = vld [vmem:[%s888] sm:$0xff]
        %v890 = vld [vmem:[%s888 + $0x8] sm:$0xff]
        %v891 = vld [vmem:[%s888 + $0x10] sm:$0xff]
        %v892 = vld [vmem:[%s888 + $0x18] sm:$0xff]
        %v893 = vld [vmem:[%s888 + $0x20] sm:$0xff]
        %v894 = vld [vmem:[%s888 + $0x28] sm:$0xff]
        %v895 = vld [vmem:[%s888 + $0x30] sm:$0xff]
        %v896 = vld [vmem:[%s888 + $0x38] sm:$0xff]
        %v897 = vld [vmem:[%s888 + $0x40] sm:$0xff]
        %v898 = vld [vmem:[%s888 + $0x48] sm:$0xff]
        %v899 = vld [vmem:[%s888 + $0x50] sm:$0xff]
        %v900 = vld [vmem:[%s888 + $0x58] sm:$0xff]
        %v901 = vld [vmem:[%s888 + $0x60] sm:$0xff]
        %v902 = vld [vmem:[%s888 + $0x68] sm:$0xff]
        %v903 = vld [vmem:[%s888 + $0x70] sm:$0xff]
        %v904 = vld [vmem:[%s888 + $0x78] sm:$0xff]
        %s905 = scalar_lea.vmem %s2, 6
        %v906 = vld [vmem:[%s905] sm:$0x1]
        %v908 = vperm.slane %v906, 0
        %910 = vmatpush.msra.mxu0 %v904
        %911 = vmatpush.msra.mxu0 %v903
        %912 = vmatpush.msra.mxu0 %v902
        %913 = vmatpush.msra.mxu0 %v901
        %914 = vmatpush.msra.mxu0 %v900
        %915 = vmatpush.msra.mxu0 %v899
        %916 = vmatpush.msra.mxu0 %v898
        %917 = vmatpush.msra.mxu0 %v897
        %918 = vmatpush.msra.mxu0 %v896
        %919 = vmatpush.msra.mxu0 %v895
        %920 = vmatpush.msra.mxu0 %v894
        %921 = vmatpush.msra.mxu0 %v893
        %922 = vmatpush.msra.mxu0 %v892
        %923 = vmatpush.msra.mxu0 %v891
        %924 = vmatpush.msra.mxu0 %v890
        %925 = vmatpush.msra.mxu0 %v889
        %926 = vmatmul.f32.gmra.mxu0 %v836
        %v927 = vpop.f32.mrf.mxu0
        %v928 = vadd.f32 %v908, %v927
        %929 = vmatmul.f32.gmra.mxu0 %v837
        %v930 = vpop.f32.mrf.mxu0
        %v931 = vadd.f32 %v908, %v930
        %932 = vmatmul.f32.gmra.mxu0 %v838
        %v933 = vpop.f32.mrf.mxu0
        %v934 = vadd.f32 %v908, %v933
        %935 = vmatmul.f32.gmra.mxu0 %v839
        %v936 = vpop.f32.mrf.mxu0
        %v937 = vadd.f32 %v908, %v936
        %938 = vmatmul.f32.gmra.mxu0 %v840
        %v939 = vpop.f32.mrf.mxu0
        %v940 = vadd.f32 %v908, %v939
        %941 = vmatmul.f32.gmra.mxu0 %v841
        %v942 = vpop.f32.mrf.mxu0
        %v943 = vadd.f32 %v908, %v942
        %944 = vmatmul.f32.gmra.mxu0 %v842
        %v945 = vpop.f32.mrf.mxu0
        %v946 = vadd.f32 %v908, %v945
        %947 = vdwg.mxu0
        %v948 = vtanh.pop %v928
        %v949 = vtanh.pop %v931
        %v950 = vtanh.pop %v934
        %v951 = vtanh.pop %v937
        %v952 = vtanh.pop %v940
        %v953 = vtanh.pop %v943
        %v954 = vtanh.pop %v946
        %955 = vmatpush.msra.mxu0 %v904
        %956 = vmatpush.msra.mxu0 %v903
        %957 = vmatpush.msra.mxu0 %v902
        %958 = vmatpush.msra.mxu0 %v901
        %959 = vmatpush.msra.mxu0 %v900
        %960 = vmatpush.msra.mxu0 %v899
        %961 = vmatpush.msra.mxu0 %v898
        %962 = vmatpush.msra.mxu0 %v897
        %963 = vmatpush.msra.mxu0 %v896
        %964 = vmatpush.msra.mxu0 %v895
        %965 = vmatpush.msra.mxu0 %v894
        %966 = vmatpush.msra.mxu0 %v893
        %967 = vmatpush.msra.mxu0 %v892
        %968 = vmatpush.msra.mxu0 %v891
        %969 = vmatpush.msra.mxu0 %v890
        %970 = vmatpush.msra.mxu0 %v889
        %971 = vmatmul.f32.gmra.mxu0 %v881
        %v972 = vpop.f32.mrf.mxu0
        %v973 = vadd.f32 %v908, %v972
        %974 = vmatmul.f32.gmra.mxu0 %v882
        %v975 = vpop.f32.mrf.mxu0
        %v976 = vadd.f32 %v908, %v975
        %977 = vmatmul.f32.gmra.mxu0 %v883
        %v978 = vpop.f32.mrf.mxu0
        %v979 = vadd.f32 %v908, %v978
        %980 = vmatmul.f32.gmra.mxu0 %v884
        %v981 = vpop.f32.mrf.mxu0
        %v982 = vadd.f32 %v908, %v981
        %983 = vmatmul.f32.gmra.mxu0 %v885
        %v984 = vpop.f32.mrf.mxu0
        %v985 = vadd.f32 %v908, %v984
        %986 = vmatmul.f32.gmra.mxu0 %v886
        %v987 = vpop.f32.mrf.mxu0
        %v988 = vadd.f32 %v908, %v987
        %989 = vmatmul.f32.gmra.mxu0 %v887
        %v990 = vpop.f32.mrf.mxu0
        %v991 = vadd.f32 %v908, %v990
        %992 = vdwg.mxu0
        %v993 = vtanh.pop %v973
        %v994 = vtanh.pop %v976
        %v995 = vtanh.pop %v979
        %v996 = vtanh.pop %v982
        %v997 = vtanh.pop %v985
        %v998 = vtanh.pop %v988
        %v999 = vtanh.pop %v991
        %s1000 = scalar_lea.vmem [#allocation2], 896
        %v1001 = vld [vmem:[%s1000] sm:$0xff]
        %v1002 = vld [vmem:[%s1000 + $0x8] sm:$0xff]
        %v1003 = vld [vmem:[%s1000 + $0x10] sm:$0xff]
        %v1004 = vld [vmem:[%s1000 + $0x18] sm:$0xff]
        %v1005 = vld [vmem:[%s1000 + $0x20] sm:$0xff]
        %v1006 = vld [vmem:[%s1000 + $0x28] sm:$0xff]
        %v1007 = vld [vmem:[%s1000 + $0x30] sm:$0xff]
        %v1008 = vld [vmem:[%s1000 + $0x38] sm:$0xff]
        %v1009 = vld [vmem:[%s1000 + $0x40] sm:$0xff]
        %v1010 = vld [vmem:[%s1000 + $0x48] sm:$0xff]
        %v1011 = vld [vmem:[%s1000 + $0x50] sm:$0xff]
        %v1012 = vld [vmem:[%s1000 + $0x58] sm:$0xff]
        %v1013 = vld [vmem:[%s1000 + $0x60] sm:$0xff]
        %v1014 = vld [vmem:[%s1000 + $0x68] sm:$0xff]
        %v1015 = vld [vmem:[%s1000 + $0x70] sm:$0xff]
        %v1016 = vld [vmem:[%s1000 + $0x78] sm:$0xff]
        %s1017 = scalar_lea.vmem %s2, 7
        %v1018 = vld [vmem:[%s1017] sm:$0x1]
        %v1020 = vperm.slane %v1018, 0
        %1022 = vmatpush.msra.mxu0 %v1016
        %1023 = vmatpush.msra.mxu0 %v1015
        %1024 = vmatpush.msra.mxu0 %v1014
        %1025 = vmatpush.msra.mxu0 %v1013
        %1026 = vmatpush.msra.mxu0 %v1012
        %1027 = vmatpush.msra.mxu0 %v1011
        %1028 = vmatpush.msra.mxu0 %v1010
        %1029 = vmatpush.msra.mxu0 %v1009
        %1030 = vmatpush.msra.mxu0 %v1008
        %1031 = vmatpush.msra.mxu0 %v1007
        %1032 = vmatpush.msra.mxu0 %v1006
        %1033 = vmatpush.msra.mxu0 %v1005
        %1034 = vmatpush.msra.mxu0 %v1004
        %1035 = vmatpush.msra.mxu0 %v1003
        %1036 = vmatpush.msra.mxu0 %v1002
        %1037 = vmatpush.msra.mxu0 %v1001
        %1038 = vmatmul.f32.gmra.mxu0 %v948
        %v1039 = vpop.f32.mrf.mxu0
        %v1040 = vadd.f32 %v1020, %v1039
        %1041 = vmatmul.f32.gmra.mxu0 %v949
        %v1042 = vpop.f32.mrf.mxu0
        %v1043 = vadd.f32 %v1020, %v1042
        %1044 = vmatmul.f32.gmra.mxu0 %v950
        %v1045 = vpop.f32.mrf.mxu0
        %v1046 = vadd.f32 %v1020, %v1045
        %1047 = vmatmul.f32.gmra.mxu0 %v951
        %v1048 = vpop.f32.mrf.mxu0
        %v1049 = vadd.f32 %v1020, %v1048
        %1050 = vmatmul.f32.gmra.mxu0 %v952
        %v1051 = vpop.f32.mrf.mxu0
        %v1052 = vadd.f32 %v1020, %v1051
        %1053 = vmatmul.f32.gmra.mxu0 %v953
        %v1054 = vpop.f32.mrf.mxu0
        %v1055 = vadd.f32 %v1020, %v1054
        %1056 = vmatmul.f32.gmra.mxu0 %v954
        %v1057 = vpop.f32.mrf.mxu0
        %v1058 = vadd.f32 %v1020, %v1057
        %1059 = vdwg.mxu0
        %v1060 = vtanh.pop %v1040
        %v1061 = vtanh.pop %v1043
        %v1062 = vtanh.pop %v1046
        %v1063 = vtanh.pop %v1049
        %v1064 = vtanh.pop %v1052
        %v1065 = vtanh.pop %v1055
        %v1066 = vtanh.pop %v1058
        %1067 = vmatpush.msra.mxu0 %v1016
        %1068 = vmatpush.msra.mxu0 %v1015
        %1069 = vmatpush.msra.mxu0 %v1014
        %1070 = vmatpush.msra.mxu0 %v1013
        %1071 = vmatpush.msra.mxu0 %v1012
        %1072 = vmatpush.msra.mxu0 %v1011
        %1073 = vmatpush.msra.mxu0 %v1010
        %1074 = vmatpush.msra.mxu0 %v1009
        %1075 = vmatpush.msra.mxu0 %v1008
        %1076 = vmatpush.msra.mxu0 %v1007
        %1077 = vmatpush.msra.mxu0 %v1006
        %1078 = vmatpush.msra.mxu0 %v1005
        %1079 = vmatpush.msra.mxu0 %v1004
        %1080 = vmatpush.msra.mxu0 %v1003
        %1081 = vmatpush.msra.mxu0 %v1002
        %1082 = vmatpush.msra.mxu0 %v1001
        %1083 = vmatmul.f32.gmra.mxu0 %v993
        %v1084 = vpop.f32.mrf.mxu0
        %v1085 = vadd.f32 %v1020, %v1084
        %1086 = vmatmul.f32.gmra.mxu0 %v994
        %v1087 = vpop.f32.mrf.mxu0
        %v1088 = vadd.f32 %v1020, %v1087
        %1089 = vmatmul.f32.gmra.mxu0 %v995
        %v1090 = vpop.f32.mrf.mxu0
        %v1091 = vadd.f32 %v1020, %v1090
        %1092 = vmatmul.f32.gmra.mxu0 %v996
        %v1093 = vpop.f32.mrf.mxu0
        %v1094 = vadd.f32 %v1020, %v1093
        %1095 = vmatmul.f32.gmra.mxu0 %v997
        %v1096 = vpop.f32.mrf.mxu0
        %v1097 = vadd.f32 %v1020, %v1096
        %1098 = vmatmul.f32.gmra.mxu0 %v998
        %v1099 = vpop.f32.mrf.mxu0
        %v1100 = vadd.f32 %v1020, %v1099
        %1101 = vmatmul.f32.gmra.mxu0 %v999
        %v1102 = vpop.f32.mrf.mxu0
        %v1103 = vadd.f32 %v1020, %v1102
        %1104 = vdwg.mxu0
        %v1105 = vtanh.pop %v1085
        %v1106 = vtanh.pop %v1088
        %v1107 = vtanh.pop %v1091
        %v1108 = vtanh.pop %v1094
        %v1109 = vtanh.pop %v1097
        %v1110 = vtanh.pop %v1100
        %v1111 = vtanh.pop %v1103
        %s1112 = scalar_lea.vmem [#allocation2], 1024
        %v1113 = vld [vmem:[%s1112] sm:$0xff]
        %v1114 = vld [vmem:[%s1112 + $0x8] sm:$0xff]
        %v1115 = vld [vmem:[%s1112 + $0x10] sm:$0xff]
        %v1116 = vld [vmem:[%s1112 + $0x18] sm:$0xff]
        %v1117 = vld [vmem:[%s1112 + $0x20] sm:$0xff]
        %v1118 = vld [vmem:[%s1112 + $0x28] sm:$0xff]
        %v1119 = vld [vmem:[%s1112 + $0x30] sm:$0xff]
        %v1120 = vld [vmem:[%s1112 + $0x38] sm:$0xff]
        %v1121 = vld [vmem:[%s1112 + $0x40] sm:$0xff]
        %v1122 = vld [vmem:[%s1112 + $0x48] sm:$0xff]
        %v1123 = vld [vmem:[%s1112 + $0x50] sm:$0xff]
        %v1124 = vld [vmem:[%s1112 + $0x58] sm:$0xff]
        %v1125 = vld [vmem:[%s1112 + $0x60] sm:$0xff]
        %v1126 = vld [vmem:[%s1112 + $0x68] sm:$0xff]
        %v1127 = vld [vmem:[%s1112 + $0x70] sm:$0xff]
        %v1128 = vld [vmem:[%s1112 + $0x78] sm:$0xff]
        %s1129 = scalar_lea.vmem %s2, 8
        %v1130 = vld [vmem:[%s1129] sm:$0x1]
        %v1132 = vperm.slane %v1130, 0
        %1134 = vmatpush.msra.mxu0 %v1128
        %1135 = vmatpush.msra.mxu0 %v1127
        %1136 = vmatpush.msra.mxu0 %v1126
        %1137 = vmatpush.msra.mxu0 %v1125
        %1138 = vmatpush.msra.mxu0 %v1124
        %1139 = vmatpush.msra.mxu0 %v1123
        %1140 = vmatpush.msra.mxu0 %v1122
        %1141 = vmatpush.msra.mxu0 %v1121
        %1142 = vmatpush.msra.mxu0 %v1120
        %1143 = vmatpush.msra.mxu0 %v1119
        %1144 = vmatpush.msra.mxu0 %v1118
        %1145 = vmatpush.msra.mxu0 %v1117
        %1146 = vmatpush.msra.mxu0 %v1116
        %1147 = vmatpush.msra.mxu0 %v1115
        %1148 = vmatpush.msra.mxu0 %v1114
        %1149 = vmatpush.msra.mxu0 %v1113
        %1150 = vmatmul.f32.gmra.mxu0 %v1060
        %v1151 = vpop.f32.mrf.mxu0
        %v1152 = vadd.f32 %v1132, %v1151
        %1153 = vmatmul.f32.gmra.mxu0 %v1061
        %v1154 = vpop.f32.mrf.mxu0
        %v1155 = vadd.f32 %v1132, %v1154
        %1156 = vmatmul.f32.gmra.mxu0 %v1062
        %v1157 = vpop.f32.mrf.mxu0
        %v1158 = vadd.f32 %v1132, %v1157
        %1159 = vmatmul.f32.gmra.mxu0 %v1063
        %v1160 = vpop.f32.mrf.mxu0
        %v1161 = vadd.f32 %v1132, %v1160
        %1162 = vmatmul.f32.gmra.mxu0 %v1064
        %v1163 = vpop.f32.mrf.mxu0
        %v1164 = vadd.f32 %v1132, %v1163
        %1165 = vmatmul.f32.gmra.mxu0 %v1065
        %v1166 = vpop.f32.mrf.mxu0
        %v1167 = vadd.f32 %v1132, %v1166
        %1168 = vmatmul.f32.gmra.mxu0 %v1066
        %v1169 = vpop.f32.mrf.mxu0
        %v1170 = vadd.f32 %v1132, %v1169
        %1171 = vdwg.mxu0
        %v1172 = vtanh.pop %v1152
        %v1173 = vtanh.pop %v1155
        %v1174 = vtanh.pop %v1158
        %v1175 = vtanh.pop %v1161
        %v1176 = vtanh.pop %v1164
        %v1177 = vtanh.pop %v1167
        %v1178 = vtanh.pop %v1170
        %1179 = vmatpush.msra.mxu0 %v1128
        %1180 = vmatpush.msra.mxu0 %v1127
        %1181 = vmatpush.msra.mxu0 %v1126
        %1182 = vmatpush.msra.mxu0 %v1125
        %1183 = vmatpush.msra.mxu0 %v1124
        %1184 = vmatpush.msra.mxu0 %v1123
        %1185 = vmatpush.msra.mxu0 %v1122
        %1186 = vmatpush.msra.mxu0 %v1121
        %1187 = vmatpush.msra.mxu0 %v1120
        %1188 = vmatpush.msra.mxu0 %v1119
        %1189 = vmatpush.msra.mxu0 %v1118
        %1190 = vmatpush.msra.mxu0 %v1117
        %1191 = vmatpush.msra.mxu0 %v1116
        %1192 = vmatpush.msra.mxu0 %v1115
        %1193 = vmatpush.msra.mxu0 %v1114
        %1194 = vmatpush.msra.mxu0 %v1113
        %1195 = vmatmul.f32.gmra.mxu0 %v1105
        %v1196 = vpop.f32.mrf.mxu0
        %v1197 = vadd.f32 %v1132, %v1196
        %1198 = vmatmul.f32.gmra.mxu0 %v1106
        %v1199 = vpop.f32.mrf.mxu0
        %v1200 = vadd.f32 %v1132, %v1199
        %1201 = vmatmul.f32.gmra.mxu0 %v1107
        %v1202 = vpop.f32.mrf.mxu0
        %v1203 = vadd.f32 %v1132, %v1202
        %1204 = vmatmul.f32.gmra.mxu0 %v1108
        %v1205 = vpop.f32.mrf.mxu0
        %v1206 = vadd.f32 %v1132, %v1205
        %1207 = vmatmul.f32.gmra.mxu0 %v1109
        %v1208 = vpop.f32.mrf.mxu0
        %v1209 = vadd.f32 %v1132, %v1208
        %1210 = vmatmul.f32.gmra.mxu0 %v1110
        %v1211 = vpop.f32.mrf.mxu0
        %v1212 = vadd.f32 %v1132, %v1211
        %1213 = vmatmul.f32.gmra.mxu0 %v1111
        %v1214 = vpop.f32.mrf.mxu0
        %v1215 = vadd.f32 %v1132, %v1214
        %1216 = vdwg.mxu0
        %v1217 = vtanh.pop %v1197
        %v1218 = vtanh.pop %v1200
        %v1219 = vtanh.pop %v1203
        %v1220 = vtanh.pop %v1206
        %v1221 = vtanh.pop %v1209
        %v1222 = vtanh.pop %v1212
        %v1223 = vtanh.pop %v1215
        %s1224 = scalar_lea.vmem [#allocation2], 1152
        %v1225 = vld [vmem:[%s1224] sm:$0xff]
        %v1226 = vld [vmem:[%s1224 + $0x8] sm:$0xff]
        %v1227 = vld [vmem:[%s1224 + $0x10] sm:$0xff]
        %v1228 = vld [vmem:[%s1224 + $0x18] sm:$0xff]
        %v1229 = vld [vmem:[%s1224 + $0x20] sm:$0xff]
        %v1230 = vld [vmem:[%s1224 + $0x28] sm:$0xff]
        %v1231 = vld [vmem:[%s1224 + $0x30] sm:$0xff]
        %v1232 = vld [vmem:[%s1224 + $0x38] sm:$0xff]
        %v1233 = vld [vmem:[%s1224 + $0x40] sm:$0xff]
        %v1234 = vld [vmem:[%s1224 + $0x48] sm:$0xff]
        %v1235 = vld [vmem:[%s1224 + $0x50] sm:$0xff]
        %v1236 = vld [vmem:[%s1224 + $0x58] sm:$0xff]
        %v1237 = vld [vmem:[%s1224 + $0x60] sm:$0xff]
        %v1238 = vld [vmem:[%s1224 + $0x68] sm:$0xff]
        %v1239 = vld [vmem:[%s1224 + $0x70] sm:$0xff]
        %v1240 = vld [vmem:[%s1224 + $0x78] sm:$0xff]
        %s1241 = scalar_lea.vmem %s2, 9
        %v1242 = vld [vmem:[%s1241] sm:$0x1]
        %v1244 = vperm.slane %v1242, 0
        %1246 = vmatpush.msra.mxu0 %v1240
        %1247 = vmatpush.msra.mxu0 %v1239
        %1248 = vmatpush.msra.mxu0 %v1238
        %1249 = vmatpush.msra.mxu0 %v1237
        %1250 = vmatpush.msra.mxu0 %v1236
        %1251 = vmatpush.msra.mxu0 %v1235
        %1252 = vmatpush.msra.mxu0 %v1234
        %1253 = vmatpush.msra.mxu0 %v1233
        %1254 = vmatpush.msra.mxu0 %v1232
        %1255 = vmatpush.msra.mxu0 %v1231
        %1256 = vmatpush.msra.mxu0 %v1230
        %1257 = vmatpush.msra.mxu0 %v1229
        %1258 = vmatpush.msra.mxu0 %v1228
        %1259 = vmatpush.msra.mxu0 %v1227
        %1260 = vmatpush.msra.mxu0 %v1226
        %1261 = vmatpush.msra.mxu0 %v1225
        %1262 = vmatmul.f32.gmra.mxu0 %v1172
        %v1263 = vpop.f32.mrf.mxu0
        %v1264 = vadd.f32 %v1244, %v1263
        %1265 = vmatmul.f32.gmra.mxu0 %v1173
        %v1266 = vpop.f32.mrf.mxu0
        %v1267 = vadd.f32 %v1244, %v1266
        %1268 = vmatmul.f32.gmra.mxu0 %v1174
        %v1269 = vpop.f32.mrf.mxu0
        %v1270 = vadd.f32 %v1244, %v1269
        %1271 = vmatmul.f32.gmra.mxu0 %v1175
        %v1272 = vpop.f32.mrf.mxu0
        %v1273 = vadd.f32 %v1244, %v1272
        %1274 = vmatmul.f32.gmra.mxu0 %v1176
        %v1275 = vpop.f32.mrf.mxu0
        %v1276 = vadd.f32 %v1244, %v1275
        %1277 = vmatmul.f32.gmra.mxu0 %v1177
        %v1278 = vpop.f32.mrf.mxu0
        %v1279 = vadd.f32 %v1244, %v1278
        %1280 = vmatmul.f32.gmra.mxu0 %v1178
        %v1281 = vpop.f32.mrf.mxu0
        %v1282 = vadd.f32 %v1244, %v1281
        %1283 = vdwg.mxu0
        %1284 = vmatpush.msra.mxu0 %v1240
        %1285 = vmatpush.msra.mxu0 %v1239
        %1286 = vmatpush.msra.mxu0 %v1238
        %1287 = vmatpush.msra.mxu0 %v1237
        %1288 = vmatpush.msra.mxu0 %v1236
        %1289 = vmatpush.msra.mxu0 %v1235
        %1290 = vmatpush.msra.mxu0 %v1234
        %1291 = vmatpush.msra.mxu0 %v1233
        %1292 = vmatpush.msra.mxu0 %v1232
        %1293 = vmatpush.msra.mxu0 %v1231
        %1294 = vmatpush.msra.mxu0 %v1230
        %1295 = vmatpush.msra.mxu0 %v1229
        %1296 = vmatpush.msra.mxu0 %v1228
        %1297 = vmatpush.msra.mxu0 %v1227
        %1298 = vmatpush.msra.mxu0 %v1226
        %1299 = vmatpush.msra.mxu0 %v1225
        %1300 = vmatmul.f32.gmra.mxu0 %v1217
        %v1301 = vpop.f32.mrf.mxu0
        %v1302 = vadd.f32 %v1244, %v1301
        %1303 = vmatmul.f32.gmra.mxu0 %v1218
        %v1304 = vpop.f32.mrf.mxu0
        %v1305 = vadd.f32 %v1244, %v1304
        %1306 = vmatmul.f32.gmra.mxu0 %v1219
        %v1307 = vpop.f32.mrf.mxu0
        %v1308 = vadd.f32 %v1244, %v1307
        %1309 = vmatmul.f32.gmra.mxu0 %v1220
        %v1310 = vpop.f32.mrf.mxu0
        %v1311 = vadd.f32 %v1244, %v1310
        %1312 = vmatmul.f32.gmra.mxu0 %v1221
        %v1313 = vpop.f32.mrf.mxu0
        %v1314 = vadd.f32 %v1244, %v1313
        %1315 = vmatmul.f32.gmra.mxu0 %v1222
        %v1316 = vpop.f32.mrf.mxu0
        %v1317 = vadd.f32 %v1244, %v1316
        %1318 = vmatmul.f32.gmra.mxu0 %v1223
        %v1319 = vpop.f32.mrf.mxu0
        %v1320 = vadd.f32 %v1244, %v1319
        %1321 = vdwg.mxu0
        %1322 = vst [vmem:[%s181] sm:$0xff] %v1264
        %1323 = vst [vmem:[%s181 + $0x8] sm:$0xff] %v1267
        %1324 = vst [vmem:[%s181 + $0x10] sm:$0xff] %v1270
        %1325 = vst [vmem:[%s181 + $0x18] sm:$0xff] %v1273
        %1326 = vst [vmem:[%s181 + $0x20] sm:$0xff] %v1276
        %1327 = vst [vmem:[%s181 + $0x28] sm:$0xff] %v1279
        %1328 = vst [vmem:[%s181 + $0x30] sm:$0xff] %v1282
        %1329 = vst [vmem:[%s181 + $0x38] sm:$0xff] %v1302
        %1330 = vst [vmem:[%s181 + $0x40] sm:$0xff] %v1305
        %1331 = vst [vmem:[%s181 + $0x48] sm:$0xff] %v1308
        %1332 = vst [vmem:[%s181 + $0x50] sm:$0xff] %v1311
        %1333 = vst [vmem:[%s181 + $0x58] sm:$0xff] %v1314
        %1334 = vst [vmem:[%s181 + $0x60] sm:$0xff] %v1317
        %1335 = vst [vmem:[%s181 + $0x68] sm:$0xff] %v1320
        %s1336 = sand.u32 %s94, 1
        %s1337 = scalar_lea.sflag [#allocation4], %s1336
        %s1338 = sand.u32 %s94, 1
        %s1339 = smul.addr %s1338, 112
        %s1340 = scalar_lea.vmem [#allocation5], %s1339
        // Predicated region
        $region37: #{tpu_custom_call.1} parent=31 // pred_check
          %p1341 = pneg %p104
        $region38: #{tpu_custom_call.1} parent=31 // pred_check_branch
          %1343 = sbr.rel (%p1341) target = $region40
        $region39: #{tpu_custom_call.1} parent=31 // pred_region
          %s1344 = smul.u32 14, %s18
          %1346 = vsyncadd %s1337, 0
          %s1347 = smul.addr %s1344, 8
          %s1348 = scalar_lea.hbm %s3, %s1347
          %s1349 = sshll.u32 %s1340, 4
          %s1350 = int_to_ptr.vmem [resolvable:$true] %s1349
          %s1351 = sshll.u32 %s1348, 4
          %s1352 = int_to_ptr.hbm [resolvable:$true] %s1351
          %1357 = dma.vmem_to_hbm [thread:$0]  %s1350, 1792, %s1352, %s1337, 128, 128, 8
        $region40: #{tpu_custom_call.1} parent=31 // pred_fallthru
          _
      $region32: #{tpu_custom_call.1} parent=5 // pred_fallthru
        _
      %p1358 = scmp.le.s32.totalorder 2, %s13
      // Predicated region
      $region41: #{tpu_custom_call.1} parent=5 // pred_check
        %p1359 = pneg %p1358
      $region42: #{tpu_custom_call.1} parent=5 // pred_check_branch
        %1361 = sbr.rel (%p1359) target = $region44
      $region43: #{tpu_custom_call.1} parent=5 // pred_region
        %s1362 = ssub.s32 %s13, 2
        // Predicated region
        $region45: #{tpu_custom_call.1} parent=43 // pred_check
          %p1363 = pneg %p110
        $region46: #{tpu_custom_call.1} parent=43 // pred_check_branch
          %1365 = sbr.rel (%p1363) target = $region48
        $region47: #{tpu_custom_call.1} parent=43 // pred_region
          %s1366 = sand.u32 %s95, 1
          %s1367 = scalar_lea.sflag [#allocation4], %s1366
          %s1368 = sand.u32 %s95, 1
          %s1369 = smul.addr %s1368, 112
          %s1370 = scalar_lea.vmem [#allocation5], %s1369
          %1372 = dma.done %s1367, 1792
        $region48: #{tpu_custom_call.1} parent=43 // pred_fallthru
          _
      $region44: #{tpu_custom_call.1} parent=5 // pred_fallthru
        _
    $region6: #{tpu_custom_call.1} parent=1 // loop_footer
      %s17 = sadd.s32 1, %s13
    $region7: #{tpu_custom_call.1} parent=1 // loop_footer_branch
      %12 = sbr.rel target = $region3
    $region8: #{tpu_custom_call.1} parent=1 // loop_exit
      _
    %1373 = vsyncpa [#allocation3], 1
    %s1374 = scalar_lea.sflag [#allocation3], 1
    %1375 = vsyncpa %s1374, 1
    %1376 = vsyncpa [#allocation4], 1
    %s1377 = scalar_lea.sflag [#allocation4], 1
    %1378 = vsyncpa %s1377, 1

// kernel: tpu_custom_call.1
$region0: #{tpu_custom_call.1}
  #allocation0 [shape = 'u32[]', space=smem, size = 0x4, offset = 0x4, fixed_abs, tag = 'smem constant byte address 0x4 - core index']
  #allocation1 [shape = 'u32[72,128]{1,0:T(1,128)}', space=vmem, size = 0x9000, scoped, tag = 'internal scratch']
  %s0 = inlined_call_operand.vmem [shape: f32[224,16], index: 0, kind: input, shape index: {}]
  %s1 = inlined_call_operand.hbm [shape: f32[10,128,128], index: 1, kind: input, shape index: {}]
  %s2 = inlined_call_operand.vmem [shape: f32[10,1,128], index: 2, kind: input, shape index: {}]
  %s3 = inlined_call_operand.hbm [shape: f32[224,128], index: 3, kind: output, shape index: {}]
  %s4 = sld [smem:[#allocation0]]
  $region49: #{tpu_custom_call.1} parent=0
    _
  %s6 = ssub.s32 1, %s4
  %s7 = scalar_select 0, %s6, %s4
  $region1: #{tpu_custom_call.1} parent=0
    #allocation2 [shape = 'u8[655360]{0}', space=vmem, size = 0xa0000, scoped, tag = 'input window, operand 1, single buffered']
    #allocation3 [shape = 's32[2]{0}', space=sflag, size = 0x8, scoped, tag = 'scoped memory for tpu_custom_call.1']
    #allocation4 [shape = 's32[2]{0}', space=sflag, size = 0x8, scoped, tag = 'scoped memory for tpu_custom_call.1']
    #allocation5 [shape = 'u8[114688]{0}', space=vmem, size = 0x1c000, scoped, tag = 'output window, operand 0']
    %8 = vsyncpa [#allocation3], 0
    %9 = vsyncpa [#allocation4], 0
    %s10 = scalar_lea.sflag [#allocation4], 1
    %11 = vsyncpa %s10, 0
    loop: start=0, step=1, limit=4
    $region2: #{tpu_custom_call.1} parent=1 // loop_pre_header
      _
    $region3: #{tpu_custom_call.1} parent=1 // loop_header
      %s13 = sphi 0, %s17
      %p14 = scmp.ge.s32.totalorder %s13, 4
      %s23 = sphi 0, %s25
      %s26 = sphi 0, %s23
      %s27 = sphi 0, %s26
      %s43 = sphi 0, %s27
      %s47 = sphi 0, %s47
      %s49 = sphi 0, %s47
      %s50 = sphi 0, %s49
      %s64 = sphi 0, %s50
      %s68 = sphi 0, %s68
      %s70 = sphi 0, %s68
      %s71 = sphi 0, %s70
      %s85 = sphi 0, %s71
      %s91 = sphi 0, %s93
      %s94 = sphi 0, %s91
      %s95 = sphi 0, %s94
      %s111 = sphi 0, %s95
    $region4: #{tpu_custom_call.1} parent=1 // loop_header_branch
      %16 = sbr.rel (%p14) target = $region8
    $region5: #{tpu_custom_call.1} parent=1 // loop_body
      %s18 = ssub.s32 %s13, 1
      %s19 = ssub.s32 %s13, 2
      %s20 = sadd.s32 %s13, 1
      %s21 = ssub.s32 %s13, %s20
      %p22 = scmp.eq.s32.totalorder %s21, 0
      %s24 = sadd.s32 %s23, 1
      %s25 = scalar_select %p22, %s23, %s24
      %p28 = pneg %p22
      %p29 = scmp.eq.s32.totalorder %s13, 1
      %p30 = por %p28, %p29
      %p31 = scmp.ne.s32.totalorder %s23, %s26
      %p32 = scmp.eq.s32.totalorder %s13, 0
      %p33 = por %p31, %p32
      %p34 = scmp.ne.s32.totalorder %s23, %s26
      %p35 = scmp.eq.s32.totalorder %s18, 1
      %p36 = por %p34, %p35
      %p37 = scmp.ne.s32.totalorder %s26, %s27
      %p38 = scmp.eq.s32.totalorder %s18, 0
      %p39 = por %p37, %p38
      %p40 = scmp.ne.s32.totalorder %s26, %s27
      %p41 = scmp.eq.s32.totalorder %s19, 1
      %p42 = por %p40, %p41
      %p44 = scmp.ne.s32.totalorder %s27, %s43
      %p45 = scmp.eq.s32.totalorder %s19, 0
      %p46 = por %p44, %p45
      %s48 = sadd.s32 %s47, 1
      %p51 = scmp.eq.s32.totalorder %s13, 1
      %p52 = scmp.ne.s32.totalorder %s47, %s49
      %p53 = scmp.eq.s32.totalorder %s13, 0
      %p54 = por %p52, %p53
      %p55 = scmp.ne.s32.totalorder %s47, %s49
      %p56 = scmp.eq.s32.totalorder %s18, 1
      %p57 = por %p55, %p56
      %p58 = scmp.ne.s32.totalorder %s49, %s50
      %p59 = scmp.eq.s32.totalorder %s18, 0
      %p60 = por %p58, %p59
      %p61 = scmp.ne.s32.totalorder %s49, %s50
      %p62 = scmp.eq.s32.totalorder %s19, 1
      %p63 = por %p61, %p62
      %p65 = scmp.ne.s32.totalorder %s50, %s64
      %p66 = scmp.eq.s32.totalorder %s19, 0
      %p67 = por %p65, %p66
      %s69 = sadd.s32 %s68, 1
      %p72 = scmp.eq.s32.totalorder %s13, 1
      %p73 = scmp.ne.s32.totalorder %s68, %s70
      %p74 = scmp.eq.s32.totalorder %s13, 0
      %p75 = por %p73, %p74
      %p76 = scmp.ne.s32.totalorder %s68, %s70
      %p77 = scmp.eq.s32.totalorder %s18, 1
      %p78 = por %p76, %p77
      %p79 = scmp.ne.s32.totalorder %s70, %s71
      %p80 = scmp.eq.s32.totalorder %s18, 0
      %p81 = por %p79, %p80
      %p82 = scmp.ne.s32.totalorder %s70, %s71
      %p83 = scmp.eq.s32.totalorder %s19, 1
      %p84 = por %p82, %p83
      %p86 = scmp.ne.s32.totalorder %s71, %s85
      %p87 = scmp.eq.s32.totalorder %s19, 0
      %p88 = por %p86, %p87
      %s89 = ssub.s32 %s13, %s20
      %p90 = scmp.eq.s32.totalorder %s89, 0
      %s92 = sadd.s32 %s91, 1
      %s93 = scalar_select %p90, %s91, %s92
      %p96 = pneg %p90
      %p97 = scmp.eq.s32.totalorder %s13, 1
      %p98 = por %p96, %p97
      %p99 = scmp.ne.s32.totalorder %s91, %s94
      %p100 = scmp.eq.s32.totalorder %s13, 0
      %p101 = por %p99, %p100
      %p102 = scmp.ne.s32.totalorder %s91, %s94
      %p103 = scmp.eq.s32.totalorder %s18, 1
      %p104 = por %p102, %p103
      %p105 = scmp.ne.s32.totalorder %s94, %s95
      %p106 = scmp.eq.s32.totalorder %s18, 0
      %p107 = por %p105, %p106
      %p108 = scmp.ne.s32.totalorder %s94, %s95
      %p109 = scmp.eq.s32.totalorder %s19, 1
      %p110 = por %p108, %p109
      %p112 = scmp.ne.s32.totalorder %s95, %s111
      %p113 = scmp.eq.s32.totalorder %s19, 0
      %p114 = por %p112, %p113
      %p115 = scmp.le.s32.totalorder 1, %s13
      %p116 = scmp.lt.s32.totalorder %s13, 3
      %p117 = pnand %p115, %p116
      %p118 = pneg %p117
      // Predicated region
      $region9: #{tpu_custom_call.1} parent=5 // pred_check
        _
      $region10: #{tpu_custom_call.1} parent=5 // pred_check_branch
        %120 = sbr.rel (%p117) target = $region12
      $region11: #{tpu_custom_call.1} parent=5 // pred_region
        %s121 = ssub.s32 %s13, 1
        // Predicated region
        $region13: #{tpu_custom_call.1} parent=11 // pred_check
          %p122 = pneg %p60
        $region14: #{tpu_custom_call.1} parent=11 // pred_check_branch
          %124 = sbr.rel (%p122) target = $region16
        $region15: #{tpu_custom_call.1} parent=11 // pred_region
          %126 = vsyncadd [#allocation3], 0
          %s127 = sshll.u32 %s1, 4
          %s128 = int_to_ptr.hbm [resolvable:$true] %s127
          %s129 = sshll.u32 [#allocation2], 4
          %s130 = int_to_ptr.vmem [resolvable:$true] %s129
          %135 = dma.hbm_to_vmem [thread:$0]  %s128, 20480, %s130, [#allocation3], 128, 128, 8
        $region16: #{tpu_custom_call.1} parent=11 // pred_fallthru
          _
        // Predicated region
        $region17: #{tpu_custom_call.1} parent=11 // pred_check
          %p136 = pneg %p81
        $region18: #{tpu_custom_call.1} parent=11 // pred_check_branch
          %138 = sbr.rel (%p136) target = $region20
        $region19: #{tpu_custom_call.1} parent=11 // pred_region
          _
        $region20: #{tpu_custom_call.1} parent=11 // pred_fallthru
          _
      $region12: #{tpu_custom_call.1} parent=5 // pred_fallthru
        _
      %p139 = scmp.lt.s32.totalorder %s13, 2
      // Predicated region
      $region21: #{tpu_custom_call.1} parent=5 // pred_check
        %p140 = pneg %p139
      $region22: #{tpu_custom_call.1} parent=5 // pred_check_branch
        %142 = sbr.rel (%p140) target = $region24
      $region23: #{tpu_custom_call.1} parent=5 // pred_region
        // Predicated region
        $region25: #{tpu_custom_call.1} parent=23 // pred_check
          %p143 = pneg %p33
        $region26: #{tpu_custom_call.1} parent=23 // pred_check_branch
          %145 = sbr.rel (%p143) target = $region28
        $region27: #{tpu_custom_call.1} parent=23 // pred_region
          %s146 = smul.u32 14, %s13
          %p147 = scmp.lt.s32.totalorder %s146, 27
          %s148 = scalar_select %p147, %s146, 27
          %s149 = smul.addr %s148, 8
          %s150 = scalar_lea.vmem %s0, %s149
          %s151 = smul.u32 14, %s13
        $region28: #{tpu_custom_call.1} parent=23 // pred_fallthru
          _
      $region24: #{tpu_custom_call.1} parent=5 // pred_fallthru
        _
      %p152 = scmp.le.s32.totalorder 1, %s13
      %p153 = scmp.lt.s32.totalorder %s13, 3
      %p154 = pnand %p152, %p153
      %p155 = pneg %p154
      // Predicated region
      $region29: #{tpu_custom_call.1} parent=5 // pred_check
        _
      $region30: #{tpu_custom_call.1} parent=5 // pred_check_branch
        %157 = sbr.rel (%p154) target = $region32
      $region31: #{tpu_custom_call.1} parent=5 // pred_region
        %s158 = ssub.s32 %s13, 1
        // Predicated region
        $region33: #{tpu_custom_call.1} parent=31 // pred_check
          %p159 = pneg %p60
        $region34: #{tpu_custom_call.1} parent=31 // pred_check_branch
          %161 = sbr.rel (%p159) target = $region36
        $region35: #{tpu_custom_call.1} parent=31 // pred_region
          %163 = dma.done [#allocation3], 20480
        $region36: #{tpu_custom_call.1} parent=31 // pred_fallthru
          _
        %s164 = smul.u32 14, %s18
        %p165 = scmp.lt.s32.totalorder %s164, 27
        %s166 = scalar_select %p165, %s164, 27
        %s167 = smul.addr %s166, 8
        %s168 = scalar_lea.vmem %s0, %s167
        %p169 = pneg %p39
        %p170 = pneg %p36
        %p171 = pneg %p60
        %p172 = pneg %p57
        %p173 = pneg %p81
        %p174 = pneg %p78
        %p175 = pneg %p107
        %p176 = pneg %p104
        %s177 = sand.u32 %s94, 1
        %s178 = scalar_lea.sflag [#allocation4], %s177
        %s179 = sand.u32 %s94, 1
        %s180 = smul.addr %s179, 112
        %s181 = scalar_lea.vmem [#allocation5], %s180
        %s182 = smul.u32 14, %s18
        %p183 = scmp.lt.s32.totalorder %s182, 27
        %s184 = scalar_select %p183, %s182, 27
        %s185 = smul.addr %s184, 8
        %s186 = scalar_lea.vmem %s0, %s185
        %s187 = smul.u32 14, %s18
        %s188 = smul.u32 14, %s18
        %v189 = vld [vmem:[#allocation2] sm:$0xff]
        %v190 = vld [vmem:[#allocation2 + $0x8] sm:$0xff]
        %v191 = vld [vmem:[%s2] sm:$0x1]
        %v192 = vld [vmem:[%s186] sm:$0xff]
        %v193 = vld [vmem:[%s186 + $0x8] sm:$0xff]
        %v194 = vld [vmem:[%s186 + $0x10] sm:$0xff]
        %v195 = vld [vmem:[%s186 + $0x18] sm:$0xff]
        %v196 = vld [vmem:[%s186 + $0x20] sm:$0xff]
        %v197 = vld [vmem:[%s186 + $0x28] sm:$0xff]
        %v198 = vld [vmem:[%s186 + $0x30] sm:$0xff]
        %v200 = vperm.slane %v191, 0
        %vm202 = vcmask 130048
        %v204 = vsel %vm202, %v192, 0
        %v207 = vsel %vm202, %v193, 0
        %v210 = vsel %vm202, %v194, 0
        %v213 = vsel %vm202, %v195, 0
        %v216 = vsel %vm202, %v196, 0
        %v219 = vsel %vm202, %v197, 0
        %v222 = vsel %vm202, %v198, 0
        %224 = vmatpush.msra.mxu0 0.0
        %225 = vmatpush.msra.mxu0 0.0
        %226 = vmatpush.msra.mxu0 0.0
        %227 = vmatpush.msra.mxu0 0.0
        %228 = vmatpush.msra.mxu0 0.0
        %229 = vmatpush.msra.mxu0 0.0
        %230 = vmatpush.msra.mxu0 0.0
        %231 = vmatpush.msra.mxu0 0.0
        %232 = vmatpush.msra.mxu0 0.0
        %233 = vmatpush.msra.mxu0 0.0
        %234 = vmatpush.msra.mxu0 0.0
        %235 = vmatpush.msra.mxu0 0.0
        %236 = vmatpush.msra.mxu0 0.0
        %237 = vmatpush.msra.mxu0 0.0
        %238 = vmatpush.msra.mxu0 %v190
        %239 = vmatpush.msra.mxu0 %v189
        %240 = vmatmul.f32.gmra.mxu0 %v204
        %v241 = vpop.f32.mrf.mxu0
        %v242 = vadd.f32 %v200, %v241
        %243 = vmatmul.f32.gmra.mxu0 %v207
        %v244 = vpop.f32.mrf.mxu0
        %v245 = vadd.f32 %v200, %v244
        %246 = vmatmul.f32.gmra.mxu0 %v210
        %v247 = vpop.f32.mrf.mxu0
        %v248 = vadd.f32 %v200, %v247
        %249 = vmatmul.f32.gmra.mxu0 %v213
        %v250 = vpop.f32.mrf.mxu0
        %v251 = vadd.f32 %v200, %v250
        %252 = vmatmul.f32.gmra.mxu0 %v216
        %v253 = vpop.f32.mrf.mxu0
        %v254 = vadd.f32 %v200, %v253
        %255 = vmatmul.f32.gmra.mxu0 %v219
        %v256 = vpop.f32.mrf.mxu0
        %v257 = vadd.f32 %v200, %v256
        %258 = vmatmul.f32.gmra.mxu0 %v222
        %v259 = vpop.f32.mrf.mxu0
        %v260 = vadd.f32 %v200, %v259
        %261 = vdwg.mxu0
        %v262 = vtanh.pop %v242
        %v263 = vtanh.pop %v245
        %v264 = vtanh.pop %v248
        %v265 = vtanh.pop %v251
        %v266 = vtanh.pop %v254
        %v267 = vtanh.pop %v257
        %v268 = vtanh.pop %v260
        %v269 = vld [vmem:[%s186 + $0x38] sm:$0xff]
        %v270 = vld [vmem:[%s186 + $0x40] sm:$0xff]
        %v271 = vld [vmem:[%s186 + $0x48] sm:$0xff]
        %v272 = vld [vmem:[%s186 + $0x50] sm:$0xff]
        %v273 = vld [vmem:[%s186 + $0x58] sm:$0xff]
        %v274 = vld [vmem:[%s186 + $0x60] sm:$0xff]
        %v275 = vld [vmem:[%s186 + $0x68] sm:$0xff]
        %v277 = vsel %vm202, %v269, 0
        %v280 = vsel %vm202, %v270, 0
        %v283 = vsel %vm202, %v271, 0
        %v286 = vsel %vm202, %v272, 0
        %v289 = vsel %vm202, %v273, 0
        %v292 = vsel %vm202, %v274, 0
        %v295 = vsel %vm202, %v275, 0
        %297 = vmatpush.msra.mxu0 0.0
        %298 = vmatpush.msra.mxu0 0.0
        %299 = vmatpush.msra.mxu0 0.0
        %300 = vmatpush.msra.mxu0 0.0
        %301 = vmatpush.msra.mxu0 0.0
        %302 = vmatpush.msra.mxu0 0.0
        %303 = vmatpush.msra.mxu0 0.0
        %304 = vmatpush.msra.mxu0 0.0
        %305 = vmatpush.msra.mxu0 0.0
        %306 = vmatpush.msra.mxu0 0.0
        %307 = vmatpush.msra.mxu0 0.0
        %308 = vmatpush.msra.mxu0 0.0
        %309 = vmatpush.msra.mxu0 0.0
        %310 = vmatpush.msra.mxu0 0.0
        %311 = vmatpush.msra.mxu0 %v190
        %312 = vmatpush.msra.mxu0 %v189
        %313 = vmatmul.f32.gmra.mxu0 %v277
        %v314 = vpop.f32.mrf.mxu0
        %v315 = vadd.f32 %v200, %v314
        %316 = vmatmul.f32.gmra.mxu0 %v280
        %v317 = vpop.f32.mrf.mxu0
        %v318 = vadd.f32 %v200, %v317
        %319 = vmatmul.f32.gmra.mxu0 %v283
        %v320 = vpop.f32.mrf.mxu0
        %v321 = vadd.f32 %v200, %v320
        %322 = vmatmul.f32.gmra.mxu0 %v286
        %v323 = vpop.f32.mrf.mxu0
        %v324 = vadd.f32 %v200, %v323
        %325 = vmatmul.f32.gmra.mxu0 %v289
        %v326 = vpop.f32.mrf.mxu0
        %v327 = vadd.f32 %v200, %v326
        %328 = vmatmul.f32.gmra.mxu0 %v292
        %v329 = vpop.f32.mrf.mxu0
        %v330 = vadd.f32 %v200, %v329
        %331 = vmatmul.f32.gmra.mxu0 %v295
        %v332 = vpop.f32.mrf.mxu0
        %v333 = vadd.f32 %v200, %v332
        %334 = vdwg.mxu0
        %v335 = vtanh.pop %v315
        %v336 = vtanh.pop %v318
        %v337 = vtanh.pop %v321
        %v338 = vtanh.pop %v324
        %v339 = vtanh.pop %v327
        %v340 = vtanh.pop %v330
        %v341 = vtanh.pop %v333
        %s342 = scalar_lea.vmem [#allocation2], 128
        %v343 = vld [vmem:[%s342] sm:$0xff]
        %v344 = vld [vmem:[%s342 + $0x8] sm:$0xff]
        %v345 = vld [vmem:[%s342 + $0x10] sm:$0xff]
        %v346 = vld [vmem:[%s342 + $0x18] sm:$0xff]
        %v347 = vld [vmem:[%s342 + $0x20] sm:$0xff]
        %v348 = vld [vmem:[%s342 + $0x28] sm:$0xff]
        %v349 = vld [vmem:[%s342 + $0x30] sm:$0xff]
        %v350 = vld [vmem:[%s342 + $0x38] sm:$0xff]
        %v351 = vld [vmem:[%s342 + $0x40] sm:$0xff]
        %v352 = vld [vmem:[%s342 + $0x48] sm:$0xff]
        %v353 = vld [vmem:[%s342 + $0x50] sm:$0xff]
        %v354 = vld [vmem:[%s342 + $0x58] sm:$0xff]
        %v355 = vld [vmem:[%s342 + $0x60] sm:$0xff]
        %v356 = vld [vmem:[%s342 + $0x68] sm:$0xff]
        %v357 = vld [vmem:[%s342 + $0x70] sm:$0xff]
        %v358 = vld [vmem:[%s342 + $0x78] sm:$0xff]
        %s359 = scalar_lea.vmem %s2, 1
        %v360 = vld [vmem:[%s359] sm:$0x1]
        %v362 = vperm.slane %v360, 0
        %364 = vmatpush.msra.mxu0 %v358
        %365 = vmatpush.msra.mxu0 %v357
        %366 = vmatpush.msra.mxu0 %v356
        %367 = vmatpush.msra.mxu0 %v355
        %368 = vmatpush.msra.mxu0 %v354
        %369 = vmatpush.msra.mxu0 %v353
        %370 = vmatpush.msra.mxu0 %v352
        %371 = vmatpush.msra.mxu0 %v351
        %372 = vmatpush.msra.mxu0 %v350
        %373 = vmatpush.msra.mxu0 %v349
        %374 = vmatpush.msra.mxu0 %v348
        %375 = vmatpush.msra.mxu0 %v347
        %376 = vmatpush.msra.mxu0 %v346
        %377 = vmatpush.msra.mxu0 %v345
        %378 = vmatpush.msra.mxu0 %v344
        %379 = vmatpush.msra.mxu0 %v343
        %380 = vmatmul.f32.gmra.mxu0 %v262
        %v381 = vpop.f32.mrf.mxu0
        %v382 = vadd.f32 %v362, %v381
        %383 = vmatmul.f32.gmra.mxu0 %v263
        %v384 = vpop.f32.mrf.mxu0
        %v385 = vadd.f32 %v362, %v384
        %386 = vmatmul.f32.gmra.mxu0 %v264
        %v387 = vpop.f32.mrf.mxu0
        %v388 = vadd.f32 %v362, %v387
        %389 = vmatmul.f32.gmra.mxu0 %v265
        %v390 = vpop.f32.mrf.mxu0
        %v391 = vadd.f32 %v362, %v390
        %392 = vmatmul.f32.gmra.mxu0 %v266
        %v393 = vpop.f32.mrf.mxu0
        %v394 = vadd.f32 %v362, %v393
        %395 = vmatmul.f32.gmra.mxu0 %v267
        %v396 = vpop.f32.mrf.mxu0
        %v397 = vadd.f32 %v362, %v396
        %398 = vmatmul.f32.gmra.mxu0 %v268
        %v399 = vpop.f32.mrf.mxu0
        %v400 = vadd.f32 %v362, %v399
        %401 = vdwg.mxu0
        %v402 = vtanh.pop %v382
        %v403 = vtanh.pop %v385
        %v404 = vtanh.pop %v388
        %v405 = vtanh.pop %v391
        %v406 = vtanh.pop %v394
        %v407 = vtanh.pop %v397
        %v408 = vtanh.pop %v400
        %409 = vmatpush.msra.mxu0 %v358
        %410 = vmatpush.msra.mxu0 %v357
        %411 = vmatpush.msra.mxu0 %v356
        %412 = vmatpush.msra.mxu0 %v355
        %413 = vmatpush.msra.mxu0 %v354
        %414 = vmatpush.msra.mxu0 %v353
        %415 = vmatpush.msra.mxu0 %v352
        %416 = vmatpush.msra.mxu0 %v351
        %417 = vmatpush.msra.mxu0 %v350
        %418 = vmatpush.msra.mxu0 %v349
        %419 = vmatpush.msra.mxu0 %v348
        %420 = vmatpush.msra.mxu0 %v347
        %421 = vmatpush.msra.mxu0 %v346
        %422 = vmatpush.msra.mxu0 %v345
        %423 = vmatpush.msra.mxu0 %v344
        %424 = vmatpush.msra.mxu0 %v343
        %425 = vmatmul.f32.gmra.mxu0 %v335
        %v426 = vpop.f32.mrf.mxu0
        %v427 = vadd.f32 %v362, %v426
        %428 = vmatmul.f32.gmra.mxu0 %v336
        %v429 = vpop.f32.mrf.mxu0
        %v430 = vadd.f32 %v362, %v429
        %431 = vmatmul.f32.gmra.mxu0 %v337
        %v432 = vpop.f32.mrf.mxu0
        %v433 = vadd.f32 %v362, %v432
        %434 = vmatmul.f32.gmra.mxu0 %v338
        %v435 = vpop.f32.mrf.mxu0
        %v436 = vadd.f32 %v362, %v435
        %437 = vmatmul.f32.gmra.mxu0 %v339
        %v438 = vpop.f32.mrf.mxu0
        %v439 = vadd.f32 %v362, %v438
        %440 = vmatmul.f32.gmra.mxu0 %v340
        %v441 = vpop.f32.mrf.mxu0
        %v442 = vadd.f32 %v362, %v441
        %443 = vmatmul.f32.gmra.mxu0 %v341
        %v444 = vpop.f32.mrf.mxu0
        %v445 = vadd.f32 %v362, %v444
        %446 = vdwg.mxu0
        %v447 = vtanh.pop %v427
        %v448 = vtanh.pop %v430
        %v449 = vtanh.pop %v433
        %v450 = vtanh.pop %v436
        %v451 = vtanh.pop %v439
        %v452 = vtanh.pop %v442
        %v453 = vtanh.pop %v445
        %s454 = scalar_lea.vmem [#allocation2], 256
        %v455 = vld [vmem:[%s454] sm:$0xff]
        %v456 = vld [vmem:[%s454 + $0x8] sm:$0xff]
        %v457 = vld [vmem:[%s454 + $0x10] sm:$0xff]
        %v458 = vld [vmem:[%s454 + $0x18] sm:$0xff]
        %v459 = vld [vmem:[%s454 + $0x20] sm:$0xff]
        %v460 = vld [vmem:[%s454 + $0x28] sm:$0xff]
        %v461 = vld [vmem:[%s454 + $0x30] sm:$0xff]
        %v462 = vld [vmem:[%s454 + $0x38] sm:$0xff]
        %v463 = vld [vmem:[%s454 + $0x40] sm:$0xff]
        %v464 = vld [vmem:[%s454 + $0x48] sm:$0xff]
        %v465 = vld [vmem:[%s454 + $0x50] sm:$0xff]
        %v466 = vld [vmem:[%s454 + $0x58] sm:$0xff]
        %v467 = vld [vmem:[%s454 + $0x60] sm:$0xff]
        %v468 = vld [vmem:[%s454 + $0x68] sm:$0xff]
        %v469 = vld [vmem:[%s454 + $0x70] sm:$0xff]
        %v470 = vld [vmem:[%s454 + $0x78] sm:$0xff]
        %s471 = scalar_lea.vmem %s2, 2
        %v472 = vld [vmem:[%s471] sm:$0x1]
        %v474 = vperm.slane %v472, 0
        %476 = vmatpush.msra.mxu0 %v470
        %477 = vmatpush.msra.mxu0 %v469
        %478 = vmatpush.msra.mxu0 %v468
        %479 = vmatpush.msra.mxu0 %v467
        %480 = vmatpush.msra.mxu0 %v466
        %481 = vmatpush.msra.mxu0 %v465
        %482 = vmatpush.msra.mxu0 %v464
        %483 = vmatpush.msra.mxu0 %v463
        %484 = vmatpush.msra.mxu0 %v462
        %485 = vmatpush.msra.mxu0 %v461
        %486 = vmatpush.msra.mxu0 %v460
        %487 = vmatpush.msra.mxu0 %v459
        %488 = vmatpush.msra.mxu0 %v458
        %489 = vmatpush.msra.mxu0 %v457
        %490 = vmatpush.msra.mxu0 %v456
        %491 = vmatpush.msra.mxu0 %v455
        %492 = vmatmul.f32.gmra.mxu0 %v402
        %v493 = vpop.f32.mrf.mxu0
        %v494 = vadd.f32 %v474, %v493
        %495 = vmatmul.f32.gmra.mxu0 %v403
        %v496 = vpop.f32.mrf.mxu0
        %v497 = vadd.f32 %v474, %v496
        %498 = vmatmul.f32.gmra.mxu0 %v404
        %v499 = vpop.f32.mrf.mxu0
        %v500 = vadd.f32 %v474, %v499
        %501 = vmatmul.f32.gmra.mxu0 %v405
        %v502 = vpop.f32.mrf.mxu0
        %v503 = vadd.f32 %v474, %v502
        %504 = vmatmul.f32.gmra.mxu0 %v406
        %v505 = vpop.f32.mrf.mxu0
        %v506 = vadd.f32 %v474, %v505
        %507 = vmatmul.f32.gmra.mxu0 %v407
        %v508 = vpop.f32.mrf.mxu0
        %v509 = vadd.f32 %v474, %v508
        %510 = vmatmul.f32.gmra.mxu0 %v408
        %v511 = vpop.f32.mrf.mxu0
        %v512 = vadd.f32 %v474, %v511
        %513 = vdwg.mxu0
        %v514 = vtanh.pop %v494
        %v515 = vtanh.pop %v497
        %v516 = vtanh.pop %v500
        %v517 = vtanh.pop %v503
        %v518 = vtanh.pop %v506
        %v519 = vtanh.pop %v509
        %v520 = vtanh.pop %v512
        %521 = vmatpush.msra.mxu0 %v470
        %522 = vmatpush.msra.mxu0 %v469
        %523 = vmatpush.msra.mxu0 %v468
        %524 = vmatpush.msra.mxu0 %v467
        %525 = vmatpush.msra.mxu0 %v466
        %526 = vmatpush.msra.mxu0 %v465
        %527 = vmatpush.msra.mxu0 %v464
        %528 = vmatpush.msra.mxu0 %v463
        %529 = vmatpush.msra.mxu0 %v462
        %530 = vmatpush.msra.mxu0 %v461
        %531 = vmatpush.msra.mxu0 %v460
        %532 = vmatpush.msra.mxu0 %v459
        %533 = vmatpush.msra.mxu0 %v458
        %534 = vmatpush.msra.mxu0 %v457
        %535 = vmatpush.msra.mxu0 %v456
        %536 = vmatpush.msra.mxu0 %v455
        %537 = vmatmul.f32.gmra.mxu0 %v447
        %v538 = vpop.f32.mrf.mxu0
        %v539 = vadd.f32 %v474, %v538
        %540 = vmatmul.f32.gmra.mxu0 %v448
        %v541 = vpop.f32.mrf.mxu0
        %v542 = vadd.f32 %v474, %v541
        %543 = vmatmul.f32.gmra.mxu0 %v449
        %v544 = vpop.f32.mrf.mxu0
        %v545 = vadd.f32 %v474, %v544
        %546 = vmatmul.f32.gmra.mxu0 %v450
        %v547 = vpop.f32.mrf.mxu0
        %v548 = vadd.f32 %v474, %v547
        %549 = vmatmul.f32.gmra.mxu0 %v451
        %v550 = vpop.f32.mrf.mxu0
        %v551 = vadd.f32 %v474, %v550
        %552 = vmatmul.f32.gmra.mxu0 %v452
        %v553 = vpop.f32.mrf.mxu0
        %v554 = vadd.f32 %v474, %v553
        %555 = vmatmul.f32.gmra.mxu0 %v453
        %v556 = vpop.f32.mrf.mxu0
        %v557 = vadd.f32 %v474, %v556
        %558 = vdwg.mxu0
        %v559 = vtanh.pop %v539
        %v560 = vtanh.pop %v542
        %v561 = vtanh.pop %v545
        %v562 = vtanh.pop %v548
        %v563 = vtanh.pop %v551
        %v564 = vtanh.pop %v554
        %v565 = vtanh.pop %v557
        %s566 = scalar_lea.vmem [#allocation2], 384
        %v567 = vld [vmem:[%s566] sm:$0xff]
        %v568 = vld [vmem:[%s566 + $0x8] sm:$0xff]
        %v569 = vld [vmem:[%s566 + $0x10] sm:$0xff]
        %v570 = vld [vmem:[%s566 + $0x18] sm:$0xff]
        %v571 = vld [vmem:[%s566 + $0x20] sm:$0xff]
        %v572 = vld [vmem:[%s566 + $0x28] sm:$0xff]
        %v573 = vld [vmem:[%s566 + $0x30] sm:$0xff]
        %v574 = vld [vmem:[%s566 + $0x38] sm:$0xff]
        %v575 = vld [vmem:[%s566 + $0x40] sm:$0xff]
        %v576 = vld [vmem:[%s566 + $0x48] sm:$0xff]
        %v577 = vld [vmem:[%s566 + $0x50] sm:$0xff]
        %v578 = vld [vmem:[%s566 + $0x58] sm:$0xff]
        %v579 = vld [vmem:[%s566 + $0x60] sm:$0xff]
        %v580 = vld [vmem:[%s566 + $0x68] sm:$0xff]
        %v581 = vld [vmem:[%s566 + $0x70] sm:$0xff]
        %v582 = vld [vmem:[%s566 + $0x78] sm:$0xff]
        %s583 = scalar_lea.vmem %s2, 3
        %v584 = vld [vmem:[%s583] sm:$0x1]
        %v586 = vperm.slane %v584, 0
        %588 = vmatpush.msra.mxu0 %v582
        %589 = vmatpush.msra.mxu0 %v581
        %590 = vmatpush.msra.mxu0 %v580
        %591 = vmatpush.msra.mxu0 %v579
        %592 = vmatpush.msra.mxu0 %v578
        %593 = vmatpush.msra.mxu0 %v577
        %594 = vmatpush.msra.mxu0 %v576
        %595 = vmatpush.msra.mxu0 %v575
        %596 = vmatpush.msra.mxu0 %v574
        %597 = vmatpush.msra.mxu0 %v573
        %598 = vmatpush.msra.mxu0 %v572
        %599 = vmatpush.msra.mxu0 %v571
        %600 = vmatpush.msra.mxu0 %v570
        %601 = vmatpush.msra.mxu0 %v569
        %602 = vmatpush.msra.mxu0 %v568
        %603 = vmatpush.msra.mxu0 %v567
        %604 = vmatmul.f32.gmra.mxu0 %v514
        %v605 = vpop.f32.mrf.mxu0
        %v606 = vadd.f32 %v586, %v605
        %607 = vmatmul.f32.gmra.mxu0 %v515
        %v608 = vpop.f32.mrf.mxu0
        %v609 = vadd.f32 %v586, %v608
        %610 = vmatmul.f32.gmra.mxu0 %v516
        %v611 = vpop.f32.mrf.mxu0
        %v612 = vadd.f32 %v586, %v611
        %613 = vmatmul.f32.gmra.mxu0 %v517
        %v614 = vpop.f32.mrf.mxu0
        %v615 = vadd.f32 %v586, %v614
        %616 = vmatmul.f32.gmra.mxu0 %v518
        %v617 = vpop.f32.mrf.mxu0
        %v618 = vadd.f32 %v586, %v617
        %619 = vmatmul.f32.gmra.mxu0 %v519
        %v620 = vpop.f32.mrf.mxu0
        %v621 = vadd.f32 %v586, %v620
        %622 = vmatmul.f32.gmra.mxu0 %v520
        %v623 = vpop.f32.mrf.mxu0
        %v624 = vadd.f32 %v586, %v623
        %625 = vdwg.mxu0
        %v626 = vtanh.pop %v606
        %v627 = vtanh.pop %v609
        %v628 = vtanh.pop %v612
        %v629 = vtanh.pop %v615
        %v630 = vtanh.pop %v618
        %v631 = vtanh.pop %v621
        %v632 = vtanh.pop %v624
        %633 = vmatpush.msra.mxu0 %v582
        %634 = vmatpush.msra.mxu0 %v581
        %635 = vmatpush.msra.mxu0 %v580
        %636 = vmatpush.msra.mxu0 %v579
        %637 = vmatpush.msra.mxu0 %v578
        %638 = vmatpush.msra.mxu0 %v577
        %639 = vmatpush.msra.mxu0 %v576
        %640 = vmatpush.msra.mxu0 %v575
        %641 = vmatpush.msra.mxu0 %v574
        %642 = vmatpush.msra.mxu0 %v573
        %643 = vmatpush.msra.mxu0 %v572
        %644 = vmatpush.msra.mxu0 %v571
        %645 = vmatpush.msra.mxu0 %v570
        %646 = vmatpush.msra.mxu0 %v569
        %647 = vmatpush.msra.mxu0 %v568
        %648 = vmatpush.msra.mxu0 %v567
        %649 = vmatmul.f32.gmra.mxu0 %v559
        %v650 = vpop.f32.mrf.mxu0
        %v651 = vadd.f32 %v586, %v650
        %652 = vmatmul.f32.gmra.mxu0 %v560
        %v653 = vpop.f32.mrf.mxu0
        %v654 = vadd.f32 %v586, %v653
        %655 = vmatmul.f32.gmra.mxu0 %v561
        %v656 = vpop.f32.mrf.mxu0
        %v657 = vadd.f32 %v586, %v656
        %658 = vmatmul.f32.gmra.mxu0 %v562
        %v659 = vpop.f32.mrf.mxu0
        %v660 = vadd.f32 %v586, %v659
        %661 = vmatmul.f32.gmra.mxu0 %v563
        %v662 = vpop.f32.mrf.mxu0
        %v663 = vadd.f32 %v586, %v662
        %664 = vmatmul.f32.gmra.mxu0 %v564
        %v665 = vpop.f32.mrf.mxu0
        %v666 = vadd.f32 %v586, %v665
        %667 = vmatmul.f32.gmra.mxu0 %v565
        %v668 = vpop.f32.mrf.mxu0
        %v669 = vadd.f32 %v586, %v668
        %670 = vdwg.mxu0
        %v671 = vtanh.pop %v651
        %v672 = vtanh.pop %v654
        %v673 = vtanh.pop %v657
        %v674 = vtanh.pop %v660
        %v675 = vtanh.pop %v663
        %v676 = vtanh.pop %v666
        %v677 = vtanh.pop %v669
        %s678 = scalar_lea.vmem [#allocation2], 512
        %v679 = vld [vmem:[%s678] sm:$0xff]
        %v680 = vld [vmem:[%s678 + $0x8] sm:$0xff]
        %v681 = vld [vmem:[%s678 + $0x10] sm:$0xff]
        %v682 = vld [vmem:[%s678 + $0x18] sm:$0xff]
        %v683 = vld [vmem:[%s678 + $0x20] sm:$0xff]
        %v684 = vld [vmem:[%s678 + $0x28] sm:$0xff]
        %v685 = vld [vmem:[%s678 + $0x30] sm:$0xff]
        %v686 = vld [vmem:[%s678 + $0x38] sm:$0xff]
        %v687 = vld [vmem:[%s678 + $0x40] sm:$0xff]
        %v688 = vld [vmem:[%s678 + $0x48] sm:$0xff]
        %v689 = vld [vmem:[%s678 + $0x50] sm:$0xff]
        %v690 = vld [vmem:[%s678 + $0x58] sm:$0xff]
        %v691 = vld [vmem:[%s678 + $0x60] sm:$0xff]
        %v692 = vld [vmem:[%s678 + $0x68] sm:$0xff]
        %v693 = vld [vmem:[%s678 + $0x70] sm:$0xff]
        %v694 = vld [vmem:[%s678 + $0x78] sm:$0xff]
        %s695 = scalar_lea.vmem %s2, 4
        %v696 = vld [vmem:[%s695] sm:$0x1]
        %v698 = vperm.slane %v696, 0
        %700 = vmatpush.msra.mxu0 %v694
        %701 = vmatpush.msra.mxu0 %v693
        %702 = vmatpush.msra.mxu0 %v692
        %703 = vmatpush.msra.mxu0 %v691
        %704 = vmatpush.msra.mxu0 %v690
        %705 = vmatpush.msra.mxu0 %v689
        %706 = vmatpush.msra.mxu0 %v688
        %707 = vmatpush.msra.mxu0 %v687
        %708 = vmatpush.msra.mxu0 %v686
        %709 = vmatpush.msra.mxu0 %v685
        %710 = vmatpush.msra.mxu0 %v684
        %711 = vmatpush.msra.mxu0 %v683
        %712 = vmatpush.msra.mxu0 %v682
        %713 = vmatpush.msra.mxu0 %v681
        %714 = vmatpush.msra.mxu0 %v680
        %715 = vmatpush.msra.mxu0 %v679
        %716 = vmatmul.f32.gmra.mxu0 %v626
        %v717 = vpop.f32.mrf.mxu0
        %v718 = vadd.f32 %v698, %v717
        %719 = vmatmul.f32.gmra.mxu0 %v627
        %v720 = vpop.f32.mrf.mxu0
        %v721 = vadd.f32 %v698, %v720
        %722 = vmatmul.f32.gmra.mxu0 %v628
        %v723 = vpop.f32.mrf.mxu0
        %v724 = vadd.f32 %v698, %v723
        %725 = vmatmul.f32.gmra.mxu0 %v629
        %v726 = vpop.f32.mrf.mxu0
        %v727 = vadd.f32 %v698, %v726
        %728 = vmatmul.f32.gmra.mxu0 %v630
        %v729 = vpop.f32.mrf.mxu0
        %v730 = vadd.f32 %v698, %v729
        %731 = vmatmul.f32.gmra.mxu0 %v631
        %v732 = vpop.f32.mrf.mxu0
        %v733 = vadd.f32 %v698, %v732
        %734 = vmatmul.f32.gmra.mxu0 %v632
        %v735 = vpop.f32.mrf.mxu0
        %v736 = vadd.f32 %v698, %v735
        %737 = vdwg.mxu0
        %738 = vmatpush.msra.mxu0 %v694
        %739 = vmatpush.msra.mxu0 %v693
        %740 = vmatpush.msra.mxu0 %v692
        %741 = vmatpush.msra.mxu0 %v691
        %742 = vmatpush.msra.mxu0 %v690
        %743 = vmatpush.msra.mxu0 %v689
        %744 = vmatpush.msra.mxu0 %v688
        %745 = vmatpush.msra.mxu0 %v687
        %746 = vmatpush.msra.mxu0 %v686
        %747 = vmatpush.msra.mxu0 %v685
        %748 = vmatpush.msra.mxu0 %v684
        %749 = vmatpush.msra.mxu0 %v683
        %750 = vmatpush.msra.mxu0 %v682
        %751 = vmatpush.msra.mxu0 %v681
        %752 = vmatpush.msra.mxu0 %v680
        %753 = vmatpush.msra.mxu0 %v679
        %754 = vmatmul.f32.gmra.mxu0 %v671
        %v755 = vpop.f32.mrf.mxu0
        %v756 = vadd.f32 %v698, %v755
        %757 = vmatmul.f32.gmra.mxu0 %v672
        %v758 = vpop.f32.mrf.mxu0
        %v759 = vadd.f32 %v698, %v758
        %760 = vmatmul.f32.gmra.mxu0 %v673
        %v761 = vpop.f32.mrf.mxu0
        %v762 = vadd.f32 %v698, %v761
        %763 = vmatmul.f32.gmra.mxu0 %v674
        %v764 = vpop.f32.mrf.mxu0
        %v765 = vadd.f32 %v698, %v764
        %766 = vmatmul.f32.gmra.mxu0 %v675
        %v767 = vpop.f32.mrf.mxu0
        %v768 = vadd.f32 %v698, %v767
        %769 = vmatmul.f32.gmra.mxu0 %v676
        %v770 = vpop.f32.mrf.mxu0
        %v771 = vadd.f32 %v698, %v770
        %772 = vmatmul.f32.gmra.mxu0 %v677
        %v773 = vpop.f32.mrf.mxu0
        %v774 = vadd.f32 %v698, %v773
        %775 = vdwg.mxu0
        %s776 = scalar_lea.vmem [#allocation2], 640
        %v777 = vld [vmem:[%s776] sm:$0xff]
        %v778 = vld [vmem:[%s776 + $0x8] sm:$0xff]
        %v779 = vld [vmem:[%s776 + $0x10] sm:$0xff]
        %v780 = vld [vmem:[%s776 + $0x18] sm:$0xff]
        %v781 = vld [vmem:[%s776 + $0x20] sm:$0xff]
        %v782 = vld [vmem:[%s776 + $0x28] sm:$0xff]
        %v783 = vld [vmem:[%s776 + $0x30] sm:$0xff]
        %v784 = vld [vmem:[%s776 + $0x38] sm:$0xff]
        %v785 = vld [vmem:[%s776 + $0x40] sm:$0xff]
        %v786 = vld [vmem:[%s776 + $0x48] sm:$0xff]
        %v787 = vld [vmem:[%s776 + $0x50] sm:$0xff]
        %v788 = vld [vmem:[%s776 + $0x58] sm:$0xff]
        %v789 = vld [vmem:[%s776 + $0x60] sm:$0xff]
        %v790 = vld [vmem:[%s776 + $0x68] sm:$0xff]
        %v791 = vld [vmem:[%s776 + $0x70] sm:$0xff]
        %v792 = vld [vmem:[%s776 + $0x78] sm:$0xff]
        %s793 = scalar_lea.vmem %s2, 5
        %v794 = vld [vmem:[%s793] sm:$0x1]
        %v796 = vperm.slane %v794, 0
        %798 = vmatpush.msra.mxu0 %v792
        %799 = vmatpush.msra.mxu0 %v791
        %800 = vmatpush.msra.mxu0 %v790
        %801 = vmatpush.msra.mxu0 %v789
        %802 = vmatpush.msra.mxu0 %v788
        %803 = vmatpush.msra.mxu0 %v787
        %804 = vmatpush.msra.mxu0 %v786
        %805 = vmatpush.msra.mxu0 %v785
        %806 = vmatpush.msra.mxu0 %v784
        %807 = vmatpush.msra.mxu0 %v783
        %808 = vmatpush.msra.mxu0 %v782
        %809 = vmatpush.msra.mxu0 %v781
        %810 = vmatpush.msra.mxu0 %v780
        %811 = vmatpush.msra.mxu0 %v779
        %812 = vmatpush.msra.mxu0 %v778
        %813 = vmatpush.msra.mxu0 %v777
        %814 = vmatmul.f32.gmra.mxu0 %v718
        %v815 = vpop.f32.mrf.mxu0
        %v816 = vadd.f32 %v796, %v815
        %817 = vmatmul.f32.gmra.mxu0 %v721
        %v818 = vpop.f32.mrf.mxu0
        %v819 = vadd.f32 %v796, %v818
        %820 = vmatmul.f32.gmra.mxu0 %v724
        %v821 = vpop.f32.mrf.mxu0
        %v822 = vadd.f32 %v796, %v821
        %823 = vmatmul.f32.gmra.mxu0 %v727
        %v824 = vpop.f32.mrf.mxu0
        %v825 = vadd.f32 %v796, %v824
        %826 = vmatmul.f32.gmra.mxu0 %v730
        %v827 = vpop.f32.mrf.mxu0
        %v828 = vadd.f32 %v796, %v827
        %829 = vmatmul.f32.gmra.mxu0 %v733
        %v830 = vpop.f32.mrf.mxu0
        %v831 = vadd.f32 %v796, %v830
        %832 = vmatmul.f32.gmra.mxu0 %v736
        %v833 = vpop.f32.mrf.mxu0
        %v834 = vadd.f32 %v796, %v833
        %835 = vdwg.mxu0
        %v836 = vtanh.pop %v816
        %v837 = vtanh.pop %v819
        %v838 = vtanh.pop %v822
        %v839 = vtanh.pop %v825
        %v840 = vtanh.pop %v828
        %v841 = vtanh.pop %v831
        %v842 = vtanh.pop %v834
        %843 = vmatpush.msra.mxu0 %v792
        %844 = vmatpush.msra.mxu0 %v791
        %845 = vmatpush.msra.mxu0 %v790
        %846 = vmatpush.msra.mxu0 %v789
        %847 = vmatpush.msra.mxu0 %v788
        %848 = vmatpush.msra.mxu0 %v787
        %849 = vmatpush.msra.mxu0 %v786
        %850 = vmatpush.msra.mxu0 %v785
        %851 = vmatpush.msra.mxu0 %v784
        %852 = vmatpush.msra.mxu0 %v783
        %853 = vmatpush.msra.mxu0 %v782
        %854 = vmatpush.msra.mxu0 %v781
        %855 = vmatpush.msra.mxu0 %v780
        %856 = vmatpush.msra.mxu0 %v779
        %857 = vmatpush.msra.mxu0 %v778
        %858 = vmatpush.msra.mxu0 %v777
        %859 = vmatmul.f32.gmra.mxu0 %v756
        %v860 = vpop.f32.mrf.mxu0
        %v861 = vadd.f32 %v796, %v860
        %862 = vmatmul.f32.gmra.mxu0 %v759
        %v863 = vpop.f32.mrf.mxu0
        %v864 = vadd.f32 %v796, %v863
        %865 = vmatmul.f32.gmra.mxu0 %v762
        %v866 = vpop.f32.mrf.mxu0
        %v867 = vadd.f32 %v796, %v866
        %868 = vmatmul.f32.gmra.mxu0 %v765
        %v869 = vpop.f32.mrf.mxu0
        %v870 = vadd.f32 %v796, %v869
        %871 = vmatmul.f32.gmra.mxu0 %v768
        %v872 = vpop.f32.mrf.mxu0
        %v873 = vadd.f32 %v796, %v872
        %874 = vmatmul.f32.gmra.mxu0 %v771
        %v875 = vpop.f32.mrf.mxu0
        %v876 = vadd.f32 %v796, %v875
        %877 = vmatmul.f32.gmra.mxu0 %v774
        %v878 = vpop.f32.mrf.mxu0
        %v879 = vadd.f32 %v796, %v878
        %880 = vdwg.mxu0
        %v881 = vtanh.pop %v861
        %v882 = vtanh.pop %v864
        %v883 = vtanh.pop %v867
        %v884 = vtanh.pop %v870
        %v885 = vtanh.pop %v873
        %v886 = vtanh.pop %v876
        %v887 = vtanh.pop %v879
        %s888 = scalar_lea.vmem [#allocation2], 768
        %v889 = vld [vmem:[%s888] sm:$0xff]
        %v890 = vld [vmem:[%s888 + $0x8] sm:$0xff]
        %v891 = vld [vmem:[%s888 + $0x10] sm:$0xff]
        %v892 = vld [vmem:[%s888 + $0x18] sm:$0xff]
        %v893 = vld [vmem:[%s888 + $0x20] sm:$0xff]
        %v894 = vld [vmem:[%s888 + $0x28] sm:$0xff]
        %v895 = vld [vmem:[%s888 + $0x30] sm:$0xff]
        %v896 = vld [vmem:[%s888 + $0x38] sm:$0xff]
        %v897 = vld [vmem:[%s888 + $0x40] sm:$0xff]
        %v898 = vld [vmem:[%s888 + $0x48] sm:$0xff]
        %v899 = vld [vmem:[%s888 + $0x50] sm:$0xff]
        %v900 = vld [vmem:[%s888 + $0x58] sm:$0xff]
        %v901 = vld [vmem:[%s888 + $0x60] sm:$0xff]
        %v902 = vld [vmem:[%s888 + $0x68] sm:$0xff]
        %v903 = vld [vmem:[%s888 + $0x70] sm:$0xff]
        %v904 = vld [vmem:[%s888 + $0x78] sm:$0xff]
        %s905 = scalar_lea.vmem %s2, 6
        %v906 = vld [vmem:[%s905] sm:$0x1]
        %v908 = vperm.slane %v906, 0
        %910 = vmatpush.msra.mxu0 %v904
        %911 = vmatpush.msra.mxu0 %v903
        %912 = vmatpush.msra.mxu0 %v902
        %913 = vmatpush.msra.mxu0 %v901
        %914 = vmatpush.msra.mxu0 %v900
        %915 = vmatpush.msra.mxu0 %v899
        %916 = vmatpush.msra.mxu0 %v898
        %917 = vmatpush.msra.mxu0 %v897
        %918 = vmatpush.msra.mxu0 %v896
        %919 = vmatpush.msra.mxu0 %v895
        %920 = vmatpush.msra.mxu0 %v894
        %921 = vmatpush.msra.mxu0 %v893
        %922 = vmatpush.msra.mxu0 %v892
        %923 = vmatpush.msra.mxu0 %v891
        %924 = vmatpush.msra.mxu0 %v890
        %925 = vmatpush.msra.mxu0 %v889
        %926 = vmatmul.f32.gmra.mxu0 %v836
        %v927 = vpop.f32.mrf.mxu0
        %v928 = vadd.f32 %v908, %v927
        %929 = vmatmul.f32.gmra.mxu0 %v837
        %v930 = vpop.f32.mrf.mxu0
        %v931 = vadd.f32 %v908, %v930
        %932 = vmatmul.f32.gmra.mxu0 %v838
        %v933 = vpop.f32.mrf.mxu0
        %v934 = vadd.f32 %v908, %v933
        %935 = vmatmul.f32.gmra.mxu0 %v839
        %v936 = vpop.f32.mrf.mxu0
        %v937 = vadd.f32 %v908, %v936
        %938 = vmatmul.f32.gmra.mxu0 %v840
        %v939 = vpop.f32.mrf.mxu0
        %v940 = vadd.f32 %v908, %v939
        %941 = vmatmul.f32.gmra.mxu0 %v841
        %v942 = vpop.f32.mrf.mxu0
        %v943 = vadd.f32 %v908, %v942
        %944 = vmatmul.f32.gmra.mxu0 %v842
        %v945 = vpop.f32.mrf.mxu0
        %v946 = vadd.f32 %v908, %v945
        %947 = vdwg.mxu0
        %v948 = vtanh.pop %v928
        %v949 = vtanh.pop %v931
        %v950 = vtanh.pop %v934
        %v951 = vtanh.pop %v937
        %v952 = vtanh.pop %v940
        %v953 = vtanh.pop %v943
        %v954 = vtanh.pop %v946
        %955 = vmatpush.msra.mxu0 %v904
        %956 = vmatpush.msra.mxu0 %v903
        %957 = vmatpush.msra.mxu0 %v902
        %958 = vmatpush.msra.mxu0 %v901
        %959 = vmatpush.msra.mxu0 %v900
        %960 = vmatpush.msra.mxu0 %v899
        %961 = vmatpush.msra.mxu0 %v898
        %962 = vmatpush.msra.mxu0 %v897
        %963 = vmatpush.msra.mxu0 %v896
        %964 = vmatpush.msra.mxu0 %v895
        %965 = vmatpush.msra.mxu0 %v894
        %966 = vmatpush.msra.mxu0 %v893
        %967 = vmatpush.msra.mxu0 %v892
        %968 = vmatpush.msra.mxu0 %v891
        %969 = vmatpush.msra.mxu0 %v890
        %970 = vmatpush.msra.mxu0 %v889
        %971 = vmatmul.f32.gmra.mxu0 %v881
        %v972 = vpop.f32.mrf.mxu0
        %v973 = vadd.f32 %v908, %v972
        %974 = vmatmul.f32.gmra.mxu0 %v882
        %v975 = vpop.f32.mrf.mxu0
        %v976 = vadd.f32 %v908, %v975
        %977 = vmatmul.f32.gmra.mxu0 %v883
        %v978 = vpop.f32.mrf.mxu0
        %v979 = vadd.f32 %v908, %v978
        %980 = vmatmul.f32.gmra.mxu0 %v884
        %v981 = vpop.f32.mrf.mxu0
        %v982 = vadd.f32 %v908, %v981
        %983 = vmatmul.f32.gmra.mxu0 %v885
        %v984 = vpop.f32.mrf.mxu0
        %v985 = vadd.f32 %v908, %v984
        %986 = vmatmul.f32.gmra.mxu0 %v886
        %v987 = vpop.f32.mrf.mxu0
        %v988 = vadd.f32 %v908, %v987
        %989 = vmatmul.f32.gmra.mxu0 %v887
        %v990 = vpop.f32.mrf.mxu0
        %v991 = vadd.f32 %v908, %v990
        %992 = vdwg.mxu0
        %v993 = vtanh.pop %v973
        %v994 = vtanh.pop %v976
        %v995 = vtanh.pop %v979
        %v996 = vtanh.pop %v982
        %v997 = vtanh.pop %v985
        %v998 = vtanh.pop %v988
        %v999 = vtanh.pop %v991
        %s1000 = scalar_lea.vmem [#allocation2], 896
        %v1001 = vld [vmem:[%s1000] sm:$0xff]
        %v1002 = vld [vmem:[%s1000 + $0x8] sm:$0xff]
        %v1003 = vld [vmem:[%s1000 + $0x10] sm:$0xff]
        %v1004 = vld [vmem:[%s1000 + $0x18] sm:$0xff]
        %v1005 = vld [vmem:[%s1000 + $0x20] sm:$0xff]
        %v1006 = vld [vmem:[%s1000 + $0x28] sm:$0xff]
        %v1007 = vld [vmem:[%s1000 + $0x30] sm:$0xff]
        %v1008 = vld [vmem:[%s1000 + $0x38] sm:$0xff]
        %v1009 = vld [vmem:[%s1000 + $0x40] sm:$0xff]
        %v1010 = vld [vmem:[%s1000 + $0x48] sm:$0xff]
        %v1011 = vld [vmem:[%s1000 + $0x50] sm:$0xff]
        %v1012 = vld [vmem:[%s1000 + $0x58] sm:$0xff]
        %v1013 = vld [vmem:[%s1000 + $0x60] sm:$0xff]
        %v1014 = vld [vmem:[%s1000 + $0x68] sm:$0xff]
        %v1015 = vld [vmem:[%s1000 + $0x70] sm:$0xff]
        %v1016 = vld [vmem:[%s1000 + $0x78] sm:$0xff]
        %s1017 = scalar_lea.vmem %s2, 7
        %v1018 = vld [vmem:[%s1017] sm:$0x1]
        %v1020 = vperm.slane %v1018, 0
        %1022 = vmatpush.msra.mxu0 %v1016
        %1023 = vmatpush.msra.mxu0 %v1015
        %1024 = vmatpush.msra.mxu0 %v1014
        %1025 = vmatpush.msra.mxu0 %v1013
        %1026 = vmatpush.msra.mxu0 %v1012
        %1027 = vmatpush.msra.mxu0 %v1011
        %1028 = vmatpush.msra.mxu0 %v1010
        %1029 = vmatpush.msra.mxu0 %v1009
        %1030 = vmatpush.msra.mxu0 %v1008
        %1031 = vmatpush.msra.mxu0 %v1007
        %1032 = vmatpush.msra.mxu0 %v1006
        %1033 = vmatpush.msra.mxu0 %v1005
        %1034 = vmatpush.msra.mxu0 %v1004
        %1035 = vmatpush.msra.mxu0 %v1003
        %1036 = vmatpush.msra.mxu0 %v1002
        %1037 = vmatpush.msra.mxu0 %v1001
        %1038 = vmatmul.f32.gmra.mxu0 %v948
        %v1039 = vpop.f32.mrf.mxu0
        %v1040 = vadd.f32 %v1020, %v1039
        %1041 = vmatmul.f32.gmra.mxu0 %v949
        %v1042 = vpop.f32.mrf.mxu0
        %v1043 = vadd.f32 %v1020, %v1042
        %1044 = vmatmul.f32.gmra.mxu0 %v950
        %v1045 = vpop.f32.mrf.mxu0
        %v1046 = vadd.f32 %v1020, %v1045
        %1047 = vmatmul.f32.gmra.mxu0 %v951
        %v1048 = vpop.f32.mrf.mxu0
        %v1049 = vadd.f32 %v1020, %v1048
        %1050 = vmatmul.f32.gmra.mxu0 %v952
        %v1051 = vpop.f32.mrf.mxu0
        %v1052 = vadd.f32 %v1020, %v1051
        %1053 = vmatmul.f32.gmra.mxu0 %v953
        %v1054 = vpop.f32.mrf.mxu0
        %v1055 = vadd.f32 %v1020, %v1054
        %1056 = vmatmul.f32.gmra.mxu0 %v954
        %v1057 = vpop.f32.mrf.mxu0
        %v1058 = vadd.f32 %v1020, %v1057
        %1059 = vdwg.mxu0
        %v1060 = vtanh.pop %v1040
        %v1061 = vtanh.pop %v1043
        %v1062 = vtanh.pop %v1046
        %v1063 = vtanh.pop %v1049
        %v1064 = vtanh.pop %v1052
        %v1065 = vtanh.pop %v1055
        %v1066 = vtanh.pop %v1058
        %1067 = vmatpush.msra.mxu0 %v1016
        %1068 = vmatpush.msra.mxu0 %v1015
        %1069 = vmatpush.msra.mxu0 %v1014
        %1070 = vmatpush.msra.mxu0 %v1013
        %1071 = vmatpush.msra.mxu0 %v1012
        %1072 = vmatpush.msra.mxu0 %v1011
        %1073 = vmatpush.msra.mxu0 %v1010
        %1074 = vmatpush.msra.mxu0 %v1009
        %1075 = vmatpush.msra.mxu0 %v1008
        %1076 = vmatpush.msra.mxu0 %v1007
        %1077 = vmatpush.msra.mxu0 %v1006
        %1078 = vmatpush.msra.mxu0 %v1005
        %1079 = vmatpush.msra.mxu0 %v1004
        %1080 = vmatpush.msra.mxu0 %v1003
        %1081 = vmatpush.msra.mxu0 %v1002
        %1082 = vmatpush.msra.mxu0 %v1001
        %1083 = vmatmul.f32.gmra.mxu0 %v993
        %v1084 = vpop.f32.mrf.mxu0
        %v1085 = vadd.f32 %v1020, %v1084
        %1086 = vmatmul.f32.gmra.mxu0 %v994
        %v1087 = vpop.f32.mrf.mxu0
        %v1088 = vadd.f32 %v1020, %v1087
        %1089 = vmatmul.f32.gmra.mxu0 %v995
        %v1090 = vpop.f32.mrf.mxu0
        %v1091 = vadd.f32 %v1020, %v1090
        %1092 = vmatmul.f32.gmra.mxu0 %v996
        %v1093 = vpop.f32.mrf.mxu0
        %v1094 = vadd.f32 %v1020, %v1093
        %1095 = vmatmul.f32.gmra.mxu0 %v997
        %v1096 = vpop.f32.mrf.mxu0
        %v1097 = vadd.f32 %v1020, %v1096
        %1098 = vmatmul.f32.gmra.mxu0 %v998
        %v1099 = vpop.f32.mrf.mxu0
        %v1100 = vadd.f32 %v1020, %v1099
        %1101 = vmatmul.f32.gmra.mxu0 %v999
        %v1102 = vpop.f32.mrf.mxu0
        %v1103 = vadd.f32 %v1020, %v1102
        %1104 = vdwg.mxu0
        %v1105 = vtanh.pop %v1085
        %v1106 = vtanh.pop %v1088
        %v1107 = vtanh.pop %v1091
        %v1108 = vtanh.pop %v1094
        %v1109 = vtanh.pop %v1097
        %v1110 = vtanh.pop %v1100
        %v1111 = vtanh.pop %v1103
        %s1112 = scalar_lea.vmem [#allocation2], 1024
        %v1113 = vld [vmem:[%s1112] sm:$0xff]
        %v1114 = vld [vmem:[%s1112 + $0x8] sm:$0xff]
        %v1115 = vld [vmem:[%s1112 + $0x10] sm:$0xff]
        %v1116 = vld [vmem:[%s1112 + $0x18] sm:$0xff]
        %v1117 = vld [vmem:[%s1112 + $0x20] sm:$0xff]
        %v1118 = vld [vmem:[%s1112 + $0x28] sm:$0xff]
        %v1119 = vld [vmem:[%s1112 + $0x30] sm:$0xff]
        %v1120 = vld [vmem:[%s1112 + $0x38] sm:$0xff]
        %v1121 = vld [vmem:[%s1112 + $0x40] sm:$0xff]
        %v1122 = vld [vmem:[%s1112 + $0x48] sm:$0xff]
        %v1123 = vld [vmem:[%s1112 + $0x50] sm:$0xff]
        %v1124 = vld [vmem:[%s1112 + $0x58] sm:$0xff]
        %v1125 = vld [vmem:[%s1112 + $0x60] sm:$0xff]
        %v1126 = vld [vmem:[%s1112 + $0x68] sm:$0xff]
        %v1127 = vld [vmem:[%s1112 + $0x70] sm:$0xff]
        %v1128 = vld [vmem:[%s1112 + $0x78] sm:$0xff]
        %s1129 = scalar_lea.vmem %s2, 8
        %v1130 = vld [vmem:[%s1129] sm:$0x1]
        %v1132 = vperm.slane %v1130, 0
        %1134 = vmatpush.msra.mxu0 %v1128
        %1135 = vmatpush.msra.mxu0 %v1127
        %1136 = vmatpush.msra.mxu0 %v1126
        %1137 = vmatpush.msra.mxu0 %v1125
        %1138 = vmatpush.msra.mxu0 %v1124
        %1139 = vmatpush.msra.mxu0 %v1123
        %1140 = vmatpush.msra.mxu0 %v1122
        %1141 = vmatpush.msra.mxu0 %v1121
        %1142 = vmatpush.msra.mxu0 %v1120
        %1143 = vmatpush.msra.mxu0 %v1119
        %1144 = vmatpush.msra.mxu0 %v1118
        %1145 = vmatpush.msra.mxu0 %v1117
        %1146 = vmatpush.msra.mxu0 %v1116
        %1147 = vmatpush.msra.mxu0 %v1115
        %1148 = vmatpush.msra.mxu0 %v1114
        %1149 = vmatpush.msra.mxu0 %v1113
        %1150 = vmatmul.f32.gmra.mxu0 %v1060
        %v1151 = vpop.f32.mrf.mxu0
        %v1152 = vadd.f32 %v1132, %v1151
        %1153 = vmatmul.f32.gmra.mxu0 %v1061
        %v1154 = vpop.f32.mrf.mxu0
        %v1155 = vadd.f32 %v1132, %v1154
        %1156 = vmatmul.f32.gmra.mxu0 %v1062
        %v1157 = vpop.f32.mrf.mxu0
        %v1158 = vadd.f32 %v1132, %v1157
        %1159 = vmatmul.f32.gmra.mxu0 %v1063
        %v1160 = vpop.f32.mrf.mxu0
        %v1161 = vadd.f32 %v1132, %v1160
        %1162 = vmatmul.f32.gmra.mxu0 %v1064
        %v1163 = vpop.f32.mrf.mxu0
        %v1164 = vadd.f32 %v1132, %v1163
        %1165 = vmatmul.f32.gmra.mxu0 %v1065
        %v1166 = vpop.f32.mrf.mxu0
        %v1167 = vadd.f32 %v1132, %v1166
        %1168 = vmatmul.f32.gmra.mxu0 %v1066
        %v1169 = vpop.f32.mrf.mxu0
        %v1170 = vadd.f32 %v1132, %v1169
        %1171 = vdwg.mxu0
        %v1172 = vtanh.pop %v1152
        %v1173 = vtanh.pop %v1155
        %v1174 = vtanh.pop %v1158
        %v1175 = vtanh.pop %v1161
        %v1176 = vtanh.pop %v1164
        %v1177 = vtanh.pop %v1167
        %v1178 = vtanh.pop %v1170
        %1179 = vmatpush.msra.mxu0 %v1128
        %1180 = vmatpush.msra.mxu0 %v1127
        %1181 = vmatpush.msra.mxu0 %v1126
        %1182 = vmatpush.msra.mxu0 %v1125
        %1183 = vmatpush.msra.mxu0 %v1124
        %1184 = vmatpush.msra.mxu0 %v1123
        %1185 = vmatpush.msra.mxu0 %v1122
        %1186 = vmatpush.msra.mxu0 %v1121
        %1187 = vmatpush.msra.mxu0 %v1120
        %1188 = vmatpush.msra.mxu0 %v1119
        %1189 = vmatpush.msra.mxu0 %v1118
        %1190 = vmatpush.msra.mxu0 %v1117
        %1191 = vmatpush.msra.mxu0 %v1116
        %1192 = vmatpush.msra.mxu0 %v1115
        %1193 = vmatpush.msra.mxu0 %v1114
        %1194 = vmatpush.msra.mxu0 %v1113
        %1195 = vmatmul.f32.gmra.mxu0 %v1105
        %v1196 = vpop.f32.mrf.mxu0
        %v1197 = vadd.f32 %v1132, %v1196
        %1198 = vmatmul.f32.gmra.mxu0 %v1106
        %v1199 = vpop.f32.mrf.mxu0
        %v1200 = vadd.f32 %v1132, %v1199
        %1201 = vmatmul.f32.gmra.mxu0 %v1107
        %v1202 = vpop.f32.mrf.mxu0
        %v1203 = vadd.f32 %v1132, %v1202
        %1204 = vmatmul.f32.gmra.mxu0 %v1108
        %v1205 = vpop.f32.mrf.mxu0
        %v1206 = vadd.f32 %v1132, %v1205
        %1207 = vmatmul.f32.gmra.mxu0 %v1109
        %v1208 = vpop.f32.mrf.mxu0
        %v1209 = vadd.f32 %v1132, %v1208
        %1210 = vmatmul.f32.gmra.mxu0 %v1110
        %v1211 = vpop.f32.mrf.mxu0
        %v1212 = vadd.f32 %v1132, %v1211
        %1213 = vmatmul.f32.gmra.mxu0 %v1111
        %v1214 = vpop.f32.mrf.mxu0
        %v1215 = vadd.f32 %v1132, %v1214
        %1216 = vdwg.mxu0
        %v1217 = vtanh.pop %v1197
        %v1218 = vtanh.pop %v1200
        %v1219 = vtanh.pop %v1203
        %v1220 = vtanh.pop %v1206
        %v1221 = vtanh.pop %v1209
        %v1222 = vtanh.pop %v1212
        %v1223 = vtanh.pop %v1215
        %s1224 = scalar_lea.vmem [#allocation2], 1152
        %v1225 = vld [vmem:[%s1224] sm:$0xff]
        %v1226 = vld [vmem:[%s1224 + $0x8] sm:$0xff]
        %v1227 = vld [vmem:[%s1224 + $0x10] sm:$0xff]
        %v1228 = vld [vmem:[%s1224 + $0x18] sm:$0xff]
        %v1229 = vld [vmem:[%s1224 + $0x20] sm:$0xff]
        %v1230 = vld [vmem:[%s1224 + $0x28] sm:$0xff]
        %v1231 = vld [vmem:[%s1224 + $0x30] sm:$0xff]
        %v1232 = vld [vmem:[%s1224 + $0x38] sm:$0xff]
        %v1233 = vld [vmem:[%s1224 + $0x40] sm:$0xff]
        %v1234 = vld [vmem:[%s1224 + $0x48] sm:$0xff]
        %v1235 = vld [vmem:[%s1224 + $0x50] sm:$0xff]
        %v1236 = vld [vmem:[%s1224 + $0x58] sm:$0xff]
        %v1237 = vld [vmem:[%s1224 + $0x60] sm:$0xff]
        %v1238 = vld [vmem:[%s1224 + $0x68] sm:$0xff]
        %v1239 = vld [vmem:[%s1224 + $0x70] sm:$0xff]
        %v1240 = vld [vmem:[%s1224 + $0x78] sm:$0xff]
        %s1241 = scalar_lea.vmem %s2, 9
        %v1242 = vld [vmem:[%s1241] sm:$0x1]
        %v1244 = vperm.slane %v1242, 0
        %1246 = vmatpush.msra.mxu0 %v1240
        %1247 = vmatpush.msra.mxu0 %v1239
        %1248 = vmatpush.msra.mxu0 %v1238
        %1249 = vmatpush.msra.mxu0 %v1237
        %1250 = vmatpush.msra.mxu0 %v1236
        %1251 = vmatpush.msra.mxu0 %v1235
        %1252 = vmatpush.msra.mxu0 %v1234
        %1253 = vmatpush.msra.mxu0 %v1233
        %1254 = vmatpush.msra.mxu0 %v1232
        %1255 = vmatpush.msra.mxu0 %v1231
        %1256 = vmatpush.msra.mxu0 %v1230
        %1257 = vmatpush.msra.mxu0 %v1229
        %1258 = vmatpush.msra.mxu0 %v1228
        %1259 = vmatpush.msra.mxu0 %v1227
        %1260 = vmatpush.msra.mxu0 %v1226
        %1261 = vmatpush.msra.mxu0 %v1225
        %1262 = vmatmul.f32.gmra.mxu0 %v1172
        %v1263 = vpop.f32.mrf.mxu0
        %v1264 = vadd.f32 %v1244, %v1263
        %1265 = vmatmul.f32.gmra.mxu0 %v1173
        %v1266 = vpop.f32.mrf.mxu0
        %v1267 = vadd.f32 %v1244, %v1266
        %1268 = vmatmul.f32.gmra.mxu0 %v1174
        %v1269 = vpop.f32.mrf.mxu0
        %v1270 = vadd.f32 %v1244, %v1269
        %1271 = vmatmul.f32.gmra.mxu0 %v1175
        %v1272 = vpop.f32.mrf.mxu0
        %v1273 = vadd.f32 %v1244, %v1272
        %1274 = vmatmul.f32.gmra.mxu0 %v1176
        %v1275 = vpop.f32.mrf.mxu0
        %v1276 = vadd.f32 %v1244, %v1275
        %1277 = vmatmul.f32.gmra.mxu0 %v1177
        %v1278 = vpop.f32.mrf.mxu0
        %v1279 = vadd.f32 %v1244, %v1278
        %1280 = vmatmul.f32.gmra.mxu0 %v1178
        %v1281 = vpop.f32.mrf.mxu0
        %v1282 = vadd.f32 %v1244, %v1281
        %1283 = vdwg.mxu0
        %1284 = vmatpush.msra.mxu0 %v1240
        %1285 = vmatpush.msra.mxu0 %v1239
        %1286 = vmatpush.msra.mxu0 %v1238
        %1287 = vmatpush.msra.mxu0 %v1237
        %1288 = vmatpush.msra.mxu0 %v1236
        %1289 = vmatpush.msra.mxu0 %v1235
        %1290 = vmatpush.msra.mxu0 %v1234
        %1291 = vmatpush.msra.mxu0 %v1233
        %1292 = vmatpush.msra.mxu0 %v1232
        %1293 = vmatpush.msra.mxu0 %v1231
        %1294 = vmatpush.msra.mxu0 %v1230
        %1295 = vmatpush.msra.mxu0 %v1229
        %1296 = vmatpush.msra.mxu0 %v1228
        %1297 = vmatpush.msra.mxu0 %v1227
        %1298 = vmatpush.msra.mxu0 %v1226
        %1299 = vmatpush.msra.mxu0 %v1225
        %1300 = vmatmul.f32.gmra.mxu0 %v1217
        %v1301 = vpop.f32.mrf.mxu0
        %v1302 = vadd.f32 %v1244, %v1301
        %1303 = vmatmul.f32.gmra.mxu0 %v1218
        %v1304 = vpop.f32.mrf.mxu0
        %v1305 = vadd.f32 %v1244, %v1304
        %1306 = vmatmul.f32.gmra.mxu0 %v1219
        %v1307 = vpop.f32.mrf.mxu0
        %v1308 = vadd.f32 %v1244, %v1307
        %1309 = vmatmul.f32.gmra.mxu0 %v1220
        %v1310 = vpop.f32.mrf.mxu0
        %v1311 = vadd.f32 %v1244, %v1310
        %1312 = vmatmul.f32.gmra.mxu0 %v1221
        %v1313 = vpop.f32.mrf.mxu0
        %v1314 = vadd.f32 %v1244, %v1313
        %1315 = vmatmul.f32.gmra.mxu0 %v1222
        %v1316 = vpop.f32.mrf.mxu0
        %v1317 = vadd.f32 %v1244, %v1316
        %1318 = vmatmul.f32.gmra.mxu0 %v1223
        %v1319 = vpop.f32.mrf.mxu0
        %v1320 = vadd.f32 %v1244, %v1319
        %1321 = vdwg.mxu0
        %1322 = vst [vmem:[%s181] sm:$0xff] %v1264
        %1323 = vst [vmem:[%s181 + $0x8] sm:$0xff] %v1267
        %1324 = vst [vmem:[%s181 + $0x10] sm:$0xff] %v1270
        %1325 = vst [vmem:[%s181 + $0x18] sm:$0xff] %v1273
        %1326 = vst [vmem:[%s181 + $0x20] sm:$0xff] %v1276
        %1327 = vst [vmem:[%s181 + $0x28] sm:$0xff] %v1279
        %1328 = vst [vmem:[%s181 + $0x30] sm:$0xff] %v1282
        %1329 = vst [vmem:[%s181 + $0x38] sm:$0xff] %v1302
        %1330 = vst [vmem:[%s181 + $0x40] sm:$0xff] %v1305
        %1331 = vst [vmem:[%s181 + $0x48] sm:$0xff] %v1308
        %1332 = vst [vmem:[%s181 + $0x50] sm:$0xff] %v1311
        %1333 = vst [vmem:[%s181 + $0x58] sm:$0xff] %v1314
        %1334 = vst [vmem:[%s181 + $0x60] sm:$0xff] %v1317
        %1335 = vst [vmem:[%s181 + $0x68] sm:$0xff] %v1320
        %s1336 = sand.u32 %s94, 1
        %s1337 = scalar_lea.sflag [#allocation4], %s1336
        %s1338 = sand.u32 %s94, 1
        %s1339 = smul.addr %s1338, 112
        %s1340 = scalar_lea.vmem [#allocation5], %s1339
        // Predicated region
        $region37: #{tpu_custom_call.1} parent=31 // pred_check
          %p1341 = pneg %p104
        $region38: #{tpu_custom_call.1} parent=31 // pred_check_branch
          %1343 = sbr.rel (%p1341) target = $region40
        $region39: #{tpu_custom_call.1} parent=31 // pred_region
          %s1344 = smul.u32 14, %s18
          %1346 = vsyncadd %s1337, 0
          %s1347 = smul.addr %s1344, 8
          %s1348 = scalar_lea.hbm %s3, %s1347
          %s1349 = sshll.u32 %s1340, 4
          %s1350 = int_to_ptr.vmem [resolvable:$true] %s1349
          %s1351 = sshll.u32 %s1348, 4
          %s1352 = int_to_ptr.hbm [resolvable:$true] %s1351
          %1357 = dma.vmem_to_hbm [thread:$0]  %s1350, 1792, %s1352, %s1337, 128, 128, 8
        $region40: #{tpu_custom_call.1} parent=31 // pred_fallthru
          _
      $region32: #{tpu_custom_call.1} parent=5 // pred_fallthru
        _
      %p1358 = scmp.le.s32.totalorder 2, %s13
      // Predicated region
      $region41: #{tpu_custom_call.1} parent=5 // pred_check
        %p1359 = pneg %p1358
      $region42: #{tpu_custom_call.1} parent=5 // pred_check_branch
        %1361 = sbr.rel (%p1359) target = $region44
      $region43: #{tpu_custom_call.1} parent=5 // pred_region
        %s1362 = ssub.s32 %s13, 2
        // Predicated region
        $region45: #{tpu_custom_call.1} parent=43 // pred_check
          %p1363 = pneg %p110
        $region46: #{tpu_custom_call.1} parent=43 // pred_check_branch
          %1365 = sbr.rel (%p1363) target = $region48
        $region47: #{tpu_custom_call.1} parent=43 // pred_region
          %s1366 = sand.u32 %s95, 1
          %s1367 = scalar_lea.sflag [#allocation4], %s1366
          %s1368 = sand.u32 %s95, 1
          %s1369 = smul.addr %s1368, 112
          %s1370 = scalar_lea.vmem [#allocation5], %s1369
          %1372 = dma.done %s1367, 1792
        $region48: #{tpu_custom_call.1} parent=43 // pred_fallthru
          _
      $region44: #{tpu_custom_call.1} parent=5 // pred_fallthru
        _
    $region6: #{tpu_custom_call.1} parent=1 // loop_footer
      %s17 = sadd.s32 1, %s13
    $region7: #{tpu_custom_call.1} parent=1 // loop_footer_branch
      %12 = sbr.rel target = $region3
    $region8: #{tpu_custom_call.1} parent=1 // loop_exit
      _
    %1373 = vsyncpa [#allocation3], 1
    %s1374 = scalar_lea.sflag [#allocation3], 1
    %1375 = vsyncpa %s1374, 1
    %1376 = vsyncpa [#allocation4], 1
    %s1377 = scalar_lea.sflag [#allocation4], 1
    %1378 = vsyncpa %s1377, 1

</llo_original>
